<compile_context>
chip_gen: v7x
topology: tpu7x:2x2x1
jax: 0.10.0
libtpu: 0.0.40
codegen_flags: <defaults>
</compile_context>

<pallas_src>
import functools
import math

import jax
import jax.numpy as jnp
from jax import lax
from jax.experimental import pallas as pl
from jax.experimental.pallas import tpu as pltpu


# Order of the fused weight/bias/LN operands passed to the kernel.
WEIGHT_ORDER = (
    "w_sa_t", "b_sa_t", "w_sa_p", "b_sa_p", "w_sa_o", "b_sa_o", "g1", "be1",
    "w_ca_q", "b_ca_q", "w_ca_s", "b_ca_s", "w_ca_m", "b_ca_m",
    "w_ca_p", "b_ca_p", "w_ca_o", "b_ca_o", "g2", "be2",
    "w1", "b1", "w2", "b2", "g3", "be3",
)


# --------------------------------------------------------------------------
# Fused Pallas kernel: one grid step == one batch element, full decoder layer.
# --------------------------------------------------------------------------
def _decoder_layer_kernel(
    # per-batch activation blocks
    tgt_ref, qpos_ref, qsine_ref, mem_ref, pos_ref,
    # self-attention block
    w_sa_t_ref, b_sa_t_ref,      # (D, 3D) [q_content|k_content|v] (q pre-scaled)
    w_sa_p_ref, b_sa_p_ref,      # (D, 2D) [q_pos | k_pos]         (q pre-scaled)
    w_sa_o_ref, b_sa_o_ref,      # (H, hd, D) out_proj with head-merge folded in
    g1_ref, be1_ref,             # (1, D) norm1
    # cross-attention block
    w_ca_q_ref, b_ca_q_ref,      # (D, D) ca_qcontent_proj (pre-scaled)
    w_ca_s_ref, b_ca_s_ref,      # (D, D) ca_qpos_sine_proj (pre-scaled)
    w_ca_m_ref, b_ca_m_ref,      # (D, 2D) [k_content | v] from memory
    w_ca_p_ref, b_ca_p_ref,      # (D, D) ca_kpos_proj
    w_ca_o_ref, b_ca_o_ref,      # (H, hd, D) cross out_proj, head-merge folded
    g2_ref, be2_ref,             # (1, D) norm2
    # feed-forward block
    w1_ref, b1_ref,              # (D, F), (1, F)
    w2_ref, b2_ref,              # (F, D), (1, D)
    g3_ref, be3_ref,             # (1, D) norm3
    out_ref,                     # (1, L, D)
    *, nhead):
    f32 = jnp.float32
    cdt = w_sa_t_ref.dtype        # compute dtype for MXU matmuls (bf16)

    tgt = tgt_ref[0]              # (L, D) f32
    qpos = qpos_ref[0]            # (L, D)
    qsine = qsine_ref[0]          # (L, D)
    mem = mem_ref[0]              # (S, D)
    pos = pos_ref[0]              # (S, D)

    L, D = tgt.shape
    S = mem.shape[0]
    H = nhead
    hd = D // H

    def mm(x, w_ref, b_ref):
        # bf16 x bf16 -> f32 accumulate on the MXU, f32 bias add.
        return jnp.dot(x.astype(cdt), w_ref[...],
                       preferred_element_type=f32) + b_ref[...]

    def layer_norm(x, g_ref, b_ref):
        mu = jnp.mean(x, axis=-1, keepdims=True)
        var = jnp.mean(jnp.square(x - mu), axis=-1, keepdims=True)
        return (x - mu) * lax.rsqrt(var + 1e-5) * g_ref[...] + b_ref[...]

    def split_heads(x):
        # (N, H*hd) f32 -> (H, N, hd): one-time static lane slices stacked on a
        # NEW leading axis; all downstream attention math is head-batched.
        return jnp.stack([x[:, h * hd:(h + 1) * hd] for h in range(H)], axis=0)

    def softmax_last(s):
        # exact softmax over the last axis, f32.
        s = s - jnp.max(s, axis=-1, keepdims=True)
        p = jnp.exp(s)
        inv = 1.0 / jnp.sum(p, axis=-1, keepdims=True)
        return p * inv

    def head_out_proj(o3, wo_ref, bo_ref):
        # o3 (H, L, hd) x wo (H, hd, D) -> (L, D); head merge folded into the
        # weight layout (no lane-concat), reduction over heads on the VPU.
        t = jnp.einsum('hld,hdo->hlo', o3.astype(cdt), wo_ref[...],
                       preferred_element_type=f32)
        return jnp.sum(t, axis=0) + bo_ref[...]

    # ---------------- self attention ----------------
    t_proj = mm(tgt, w_sa_t_ref, b_sa_t_ref)        # (L, 3D)
    p_proj = mm(qpos, w_sa_p_ref, b_sa_p_ref)       # (L, 2D)
    q3 = split_heads(t_proj[:, :D] + p_proj[:, :D])          # (H, L, hd)
    k3 = split_heads(t_proj[:, D:2 * D] + p_proj[:, D:])     # (H, L, hd)
    v3 = split_heads(t_proj[:, 2 * D:])                      # (H, L, hd)

    s = jnp.einsum('hld,hsd->hls', q3.astype(cdt), k3.astype(cdt),
                   preferred_element_type=f32)                # scale pre-folded
    p = softmax_last(s)
    o3 = jnp.einsum('hls,hsd->hld', p.astype(cdt), v3.astype(cdt),
                    preferred_element_type=f32)
    x = layer_norm(tgt + head_out_proj(o3, w_sa_o_ref, b_sa_o_ref),
                   g1_ref, be1_ref)

    # ---------------- cross attention ----------------
    qc3 = split_heads(mm(x, w_ca_q_ref, b_ca_q_ref))          # (H, L, hd)
    qs3 = split_heads(mm(qsine, w_ca_s_ref, b_ca_s_ref))      # (H, L, hd)
    m_proj = mm(mem, w_ca_m_ref, b_ca_m_ref)                  # (S, 2D)
    kc3 = split_heads(m_proj[:, :D])                          # (H, S, hd)
    vv3 = split_heads(m_proj[:, D:])                          # (H, S, hd)
    kp3 = split_heads(mm(pos, w_ca_p_ref, b_ca_p_ref))        # (H, S, hd)

    # per-head q = [qc_h|qs_h], k = [kc_h|kp_h]  ==  two-term score sum
    s = (jnp.einsum('hld,hsd->hls', qc3.astype(cdt), kc3.astype(cdt),
                    preferred_element_type=f32)
         + jnp.einsum('hld,hsd->hls', qs3.astype(cdt), kp3.astype(cdt),
                      preferred_element_type=f32))            # scale pre-folded
    p = softmax_last(s)
    o3 = jnp.einsum('hls,hsd->hld', p.astype(cdt), vv3.astype(cdt),
                    preferred_element_type=f32)
    x = layer_norm(x + head_out_proj(o3, w_ca_o_ref, b_ca_o_ref),
                   g2_ref, be2_ref)

    # ---------------- feed forward ----------------
    h1 = jnp.maximum(mm(x, w1_ref, b1_ref), 0.0).astype(cdt)  # bf16 hidden
    ff = mm(h1, w2_ref, b2_ref)
    out_ref[0] = layer_norm(x + ff, g3_ref, be3_ref).astype(out_ref.dtype)


# --------------------------------------------------------------------------
# Wrappers
# --------------------------------------------------------------------------
def transformer_decoder_layer_batch_major(fused, tgt, memory, pos, query_pos,
                                          query_sine_embed, *, nhead,
                                          out_dtype=jnp.float32):
    """Batch-major entry point: all activations are (B, seq, D)."""
    B, L, D = tgt.shape
    S = memory.shape[1]
    assert D % nhead == 0, "d_model must be divisible by nhead"
    # NOTE: for TPU efficiency D should be a multiple of 128 (lane-dense).

    weights = [fused[k] for k in WEIGHT_ORDER]

    def const_map(n):
        return lambda b, _n=n: (0,) * _n

    in_specs = [
        pl.BlockSpec((1, L, D), lambda b: (b, 0, 0)),   # tgt
        pl.BlockSpec((1, L, D), lambda b: (b, 0, 0)),   # query_pos
        pl.BlockSpec((1, L, D), lambda b: (b, 0, 0)),   # query_sine_embed
        pl.BlockSpec((1, S, D), lambda b: (b, 0, 0)),   # memory
        pl.BlockSpec((1, S, D), lambda b: (b, 0, 0)),   # pos
    ] + [pl.BlockSpec(w.shape, const_map(w.ndim)) for w in weights]

    kern = functools.partial(_decoder_layer_kernel, nhead=nhead)

    return pl.pallas_call(
        kern,
        out_shape=jax.ShapeDtypeStruct((B, L, D), out_dtype),
        grid=(B,),
        in_specs=in_specs,
        out_specs=pl.BlockSpec((1, L, D), lambda b: (b, 0, 0)),
        compiler_params=pltpu.CompilerParams(
            dimension_semantics=("parallel",),
            vmem_limit_bytes=64 * 1024 * 1024),
    )(tgt, query_pos, query_sine_embed, memory, pos, *weights)


def transformer_decoder_layer(fused, tgt, memory, pos, query_pos,
                              query_sine_embed, *, nhead,
                              out_dtype=jnp.float32):
    """PyTorch-layout convenience wrapper: activations are (seq, B, D).
    For best performance keep activations batch-major upstream and call
    transformer_decoder_layer_batch_major directly (no transposes)."""
    out = transformer_decoder_layer_batch_major(
        fused,
        jnp.transpose(tgt, (1, 0, 2)),
        jnp.transpose(memory, (1, 0, 2)),
        jnp.transpose(pos, (1, 0, 2)),
        jnp.transpose(query_pos, (1, 0, 2)),
        jnp.transpose(query_sine_embed, (1, 0, 2)),
        nhead=nhead, out_dtype=out_dtype)
    return jnp.transpose(out, (1, 0, 2))


# --------------------------------------------------------------------------
# Parameter setup (nn.Linear-style init) and fusion into kernel layout
# --------------------------------------------------------------------------
def init_params(key, d_model, dim_feedforward):
    shapes = {
        "sa_qcontent_proj": (d_model, d_model),
        "sa_qpos_proj": (d_model, d_model),
        "sa_kcontent_proj": (d_model, d_model),
        "sa_kpos_proj": (d_model, d_model),
        "sa_v_proj": (d_model, d_model),
        "sa_out_proj": (d_model, d_model),
        "ca_qcontent_proj": (d_model, d_model),
        "ca_kcontent_proj": (d_model, d_model),
        "ca_kpos_proj": (d_model, d_model),
        "ca_v_proj": (d_model, d_model),
        "ca_qpos_sine_proj": (d_model, d_model),
        "ca_out_proj": (d_model, d_model),
        "linear1": (dim_feedforward, d_model),
        "linear2": (d_model, dim_feedforward),
    }
    params = {}
    keys = jax.random.split(key, 2 * len(shapes))
    for i, (name, (n_out, n_in)) in enumerate(shapes.items()):
        bound = 1.0 / math.sqrt(n_in)
        w = jax.random.uniform(keys[2 * i], (n_out, n_in), jnp.float32,
                               -bound, bound)
        b = jax.random.uniform(keys[2 * i + 1], (n_out,), jnp.float32,
                               -bound, bound)
        params[name] = (w, b)
    for ln in ("norm1", "norm2", "norm3"):
        params[ln] = (jnp.ones((d_model,), jnp.float32),
                      jnp.zeros((d_model,), jnp.float32))
    return params


def prepare_params(params, nhead, compute_dtype=jnp.bfloat16):
    """Pre-transpose weights to (in, out), concatenate related projections,
    fold softmax scales into the Q-side weights/biases, reshape out-projection
    weights to (H, hd, D) (head-merge folded in), cast matmul weights to the
    compute dtype (bf16); biases / LN params stay f32."""
    d_model = params["sa_out_proj"][0].shape[0]
    hd = d_model // nhead
    sa_scale = float(hd) ** -0.5
    ca_scale = float(2 * hd) ** -0.5

    def wt(name, scale=1.0):                      # f32 (in, out), optional scale
        return params[name][0].T.astype(jnp.float32) * scale

    def bs(name, scale=1.0):                      # f32 (1, out), optional scale
        return params[name][1].astype(jnp.float32).reshape(1, -1) * scale

    def lnp(name):
        g, b = params[name]
        return (g.astype(jnp.float32).reshape(1, -1),
                b.astype(jnp.float32).reshape(1, -1))

    def c(w):
        return w.astype(compute_dtype)

    fused = {}
    # self-attention
    fused["w_sa_t"] = c(jnp.concatenate(
        [wt("sa_qcontent_proj", sa_scale), wt("sa_kcontent_proj"),
         wt("sa_v_proj")], 1))
    fused["b_sa_t"] = jnp.concatenate(
        [bs("sa_qcontent_proj", sa_scale), bs("sa_kcontent_proj"),
         bs("sa_v_proj")], 1)
    fused["w_sa_p"] = c(jnp.concatenate(
        [wt("sa_qpos_proj", sa_scale), wt("sa_kpos_proj")], 1))
    fused["b_sa_p"] = jnp.concatenate(
        [bs("sa_qpos_proj", sa_scale), bs("sa_kpos_proj")], 1)
    fused["w_sa_o"] = c(wt("sa_out_proj").reshape(nhead, hd, d_model))
    fused["b_sa_o"] = bs("sa_out_proj")
    fused["g1"], fused["be1"] = lnp("norm1")

    # cross-attention
    fused["w_ca_q"] = c(wt("ca_qcontent_proj", ca_scale))
    fused["b_ca_q"] = bs("ca_qcontent_proj", ca_scale)
    fused["w_ca_s"] = c(wt("ca_qpos_sine_proj", ca_scale))
    fused["b_ca_s"] = bs("ca_qpos_sine_proj", ca_scale)
    fused["w_ca_m"] = c(jnp.concatenate(
        [wt("ca_kcontent_proj"), wt("ca_v_proj")], 1))
    fused["b_ca_m"] = jnp.concatenate(
        [bs("ca_kcontent_proj"), bs("ca_v_proj")], 1)
    fused["w_ca_p"] = c(wt("ca_kpos_proj"))
    fused["b_ca_p"] = bs("ca_kpos_proj")
    fused["w_ca_o"] = c(wt("ca_out_proj").reshape(nhead, hd, d_model))
    fused["b_ca_o"] = bs("ca_out_proj")
    fused["g2"], fused["be2"] = lnp("norm2")

    # feed-forward
    fused["w1"], fused["b1"] = c(wt("linear1")), bs("linear1")
    fused["w2"], fused["b2"] = c(wt("linear2")), bs("linear2")
    fused["g3"], fused["be3"] = lnp("norm3")
    return fused


# --------------------------------------------------------------------------
# Pure-JAX f32 reference (mirrors the PyTorch forward) for a sanity check
# --------------------------------------------------------------------------
def reference_decoder_layer(params, tgt, memory, pos, query_pos,
                            query_sine_embed, nhead):
    def lin(name, x):
        w, b = params[name]
        return x @ w.T + b

    def ln(name, x):
        g, b = params[name]
        mu = x.mean(-1, keepdims=True)
        var = ((x - mu) ** 2).mean(-1, keepdims=True)
        return (x - mu) / jnp.sqrt(var + 1e-5) * g + b

    def mha(q, k, v, out_name):
        L, B, Eq = q.shape
        S, _, Ev = v.shape
        hd_q = Eq // nhead
        hd_v = Ev // nhead
        scale = float(hd_q) ** -0.5
        qh = q.reshape(L, B * nhead, hd_q).transpose(1, 0, 2) * scale
        kh = k.reshape(S, B * nhead, hd_q).transpose(1, 0, 2)
        vh = v.reshape(S, B * nhead, hd_v).transpose(1, 0, 2)
        s = jnp.einsum('bld,bsd->bls', qh, kh)
        p = jax.nn.softmax(s, axis=-1)
        o = jnp.einsum('bls,bsd->bld', p, vh)
        o = o.transpose(1, 0, 2).reshape(L, B, Ev)
        return lin(out_name, o)

    L, B, D = tgt.shape
    S = memory.shape[0]
    hd = D // nhead

    q = lin("sa_qcontent_proj", tgt) + lin("sa_qpos_proj", query_pos)
    k = lin("sa_kcontent_proj", tgt) + lin("sa_kpos_proj", query_pos)
    v = lin("sa_v_proj", tgt)
    x = ln("norm1", tgt + mha(q, k, v, "sa_out_proj"))

    qc = lin("ca_qcontent_proj", x)
    kc = lin("ca_kcontent_proj", memory)
    v = lin("ca_v_proj", memory)
    kp = lin("ca_kpos_proj", pos)
    qs = lin("ca_qpos_sine_proj", query_sine_embed)
    q = jnp.concatenate([qc.reshape(L, B, nhead, hd),
                         qs.reshape(L, B, nhead, hd)], 3).reshape(L, B, 2 * D)
    k = jnp.concatenate([kc.reshape(S, B, nhead, hd),
                         kp.reshape(S, B, nhead, hd)], 3).reshape(S, B, 2 * D)
    x = ln("norm2", x + mha(q, k, v, "ca_out_proj"))

    h = jnp.maximum(lin("linear1", x), 0.0)
    x = ln("norm3", x + lin("linear2", h))
    return x


# --------------------------------------------------------------------------
if __name__ == "__main__":
    d_model = 32
    nhead = 4
    dim_feedforward = 64
    L, B, S = 8, 2, 16

    key = jax.random.PRNGKey(0)
    kp, k1, k2, k3, k4, k5 = jax.random.split(key, 6)

    params = init_params(kp, d_model, dim_feedforward)
    fused = prepare_params(params, nhead, compute_dtype=jnp.bfloat16)

    tgt = jax.random.normal(k1, (L, B, d_model), jnp.float32)
    memory = jax.random.normal(k2, (S, B, d_model), jnp.float32)
    pos = jax.random.normal(k3, (S, B, d_model), jnp.float32)
    query_pos = jax.random.normal(k4, (L, B, d_model), jnp.float32)
    query_sine_embed = jax.random.normal(k5, (L, B, d_model), jnp.float32)

    layer_fn = jax.jit(functools.partial(transformer_decoder_layer, nhead=nhead))
    out = layer_fn(fused, tgt, memory, pos, query_pos, query_sine_embed)
    out = jax.block_until_ready(out)

    assert out.shape == (L, B, d_model)
    assert bool(jnp.all(jnp.isfinite(out)))

    ref = reference_decoder_layer(params, tgt, memory, pos, query_pos,
                                  query_sine_embed, nhead)
    max_err = float(jnp.max(jnp.abs(out - ref)))
    # bf16 matmuls vs f32 reference (softmax divide is now exact)
    assert max_err < 1e-1, f"kernel/reference mismatch: max abs err {max_err}"

    print("KERNEL_OK")
</pallas_src>

<mosaic_0001>
module attributes {stable_mosaic.version = 11 : i64} {
  func.func @_decoder_layer_kernel(%arg0: i32, %arg1: memref<1x8x32xf32, #tpu.memory_space<vmem>>, %arg2: memref<1x8x32xf32, #tpu.memory_space<vmem>>, %arg3: memref<1x8x32xf32, #tpu.memory_space<vmem>>, %arg4: memref<1x16x32xf32, #tpu.memory_space<vmem>>, %arg5: memref<1x16x32xf32, #tpu.memory_space<vmem>>, %arg6: memref<32x96xbf16, #tpu.memory_space<vmem>>, %arg7: memref<1x96xf32, #tpu.memory_space<vmem>>, %arg8: memref<32x64xbf16, #tpu.memory_space<vmem>>, %arg9: memref<1x64xf32, #tpu.memory_space<vmem>>, %arg10: memref<4x8x32xbf16, #tpu.memory_space<vmem>>, %arg11: memref<1x32xf32, #tpu.memory_space<vmem>>, %arg12: memref<1x32xf32, #tpu.memory_space<vmem>>, %arg13: memref<1x32xf32, #tpu.memory_space<vmem>>, %arg14: memref<32x32xbf16, #tpu.memory_space<vmem>>, %arg15: memref<1x32xf32, #tpu.memory_space<vmem>>, %arg16: memref<32x32xbf16, #tpu.memory_space<vmem>>, %arg17: memref<1x32xf32, #tpu.memory_space<vmem>>, %arg18: memref<32x64xbf16, #tpu.memory_space<vmem>>, %arg19: memref<1x64xf32, #tpu.memory_space<vmem>>, %arg20: memref<32x32xbf16, #tpu.memory_space<vmem>>, %arg21: memref<1x32xf32, #tpu.memory_space<vmem>>, %arg22: memref<4x8x32xbf16, #tpu.memory_space<vmem>>, %arg23: memref<1x32xf32, #tpu.memory_space<vmem>>, %arg24: memref<1x32xf32, #tpu.memory_space<vmem>>, %arg25: memref<1x32xf32, #tpu.memory_space<vmem>>, %arg26: memref<32x64xbf16, #tpu.memory_space<vmem>>, %arg27: memref<1x64xf32, #tpu.memory_space<vmem>>, %arg28: memref<64x32xbf16, #tpu.memory_space<vmem>>, %arg29: memref<1x32xf32, #tpu.memory_space<vmem>>, %arg30: memref<1x32xf32, #tpu.memory_space<vmem>>, %arg31: memref<1x32xf32, #tpu.memory_space<vmem>>, %arg32: memref<1x8x32xf32, #tpu.memory_space<vmem>>) attributes {dimension_semantics = [#tpu.dimension_semantics<parallel>], iteration_bounds = array<i64: 2>, scalar_prefetch = 0 : i64, scratch_operands = 0 : i64, tpu.core_type = #tpu.core_type<tc>, window_params = [{transform_indices = @transform_0, window_bounds = array<i64: 1, 8, 32>}, {transform_indices = @transform_1, window_bounds = array<i64: 1, 8, 32>}, {transform_indices = @transform_2, window_bounds = array<i64: 1, 8, 32>}, {transform_indices = @transform_3, window_bounds = array<i64: 1, 16, 32>}, {transform_indices = @transform_4, window_bounds = array<i64: 1, 16, 32>}, {pipeline_mode = #tpu.pipeline_mode<synchronous>, transform_indices = @transform_5, window_bounds = array<i64: 32, 96>}, {pipeline_mode = #tpu.pipeline_mode<synchronous>, transform_indices = @transform_6, window_bounds = array<i64: 1, 96>}, {pipeline_mode = #tpu.pipeline_mode<synchronous>, transform_indices = @transform_7, window_bounds = array<i64: 32, 64>}, {pipeline_mode = #tpu.pipeline_mode<synchronous>, transform_indices = @transform_8, window_bounds = array<i64: 1, 64>}, {pipeline_mode = #tpu.pipeline_mode<synchronous>, transform_indices = @transform_9, window_bounds = array<i64: 4, 8, 32>}, {pipeline_mode = #tpu.pipeline_mode<synchronous>, transform_indices = @transform_10, window_bounds = array<i64: 1, 32>}, {pipeline_mode = #tpu.pipeline_mode<synchronous>, transform_indices = @transform_11, window_bounds = array<i64: 1, 32>}, {pipeline_mode = #tpu.pipeline_mode<synchronous>, transform_indices = @transform_12, window_bounds = array<i64: 1, 32>}, {pipeline_mode = #tpu.pipeline_mode<synchronous>, transform_indices = @transform_13, window_bounds = array<i64: 32, 32>}, {pipeline_mode = #tpu.pipeline_mode<synchronous>, transform_indices = @transform_14, window_bounds = array<i64: 1, 32>}, {pipeline_mode = #tpu.pipeline_mode<synchronous>, transform_indices = @transform_15, window_bounds = array<i64: 32, 32>}, {pipeline_mode = #tpu.pipeline_mode<synchronous>, transform_indices = @transform_16, window_bounds = array<i64: 1, 32>}, {pipeline_mode = #tpu.pipeline_mode<synchronous>, transform_indices = @transform_17, window_bounds = array<i64: 32, 64>}, {pipeline_mode = #tpu.pipeline_mode<synchronous>, transform_indices = @transform_18, window_bounds = array<i64: 1, 64>}, {pipeline_mode = #tpu.pipeline_mode<synchronous>, transform_indices = @transform_19, window_bounds = array<i64: 32, 32>}, {pipeline_mode = #tpu.pipeline_mode<synchronous>, transform_indices = @transform_20, window_bounds = array<i64: 1, 32>}, {pipeline_mode = #tpu.pipeline_mode<synchronous>, transform_indices = @transform_21, window_bounds = array<i64: 4, 8, 32>}, {pipeline_mode = #tpu.pipeline_mode<synchronous>, transform_indices = @transform_22, window_bounds = array<i64: 1, 32>}, {pipeline_mode = #tpu.pipeline_mode<synchronous>, transform_indices = @transform_23, window_bounds = array<i64: 1, 32>}, {pipeline_mode = #tpu.pipeline_mode<synchronous>, transform_indices = @transform_24, window_bounds = array<i64: 1, 32>}, {pipeline_mode = #tpu.pipeline_mode<synchronous>, transform_indices = @transform_25, window_bounds = array<i64: 32, 64>}, {pipeline_mode = #tpu.pipeline_mode<synchronous>, transform_indices = @transform_26, window_bounds = array<i64: 1, 64>}, {pipeline_mode = #tpu.pipeline_mode<synchronous>, transform_indices = @transform_27, window_bounds = array<i64: 64, 32>}, {pipeline_mode = #tpu.pipeline_mode<synchronous>, transform_indices = @transform_28, window_bounds = array<i64: 1, 32>}, {pipeline_mode = #tpu.pipeline_mode<synchronous>, transform_indices = @transform_29, window_bounds = array<i64: 1, 32>}, {pipeline_mode = #tpu.pipeline_mode<synchronous>, transform_indices = @transform_30, window_bounds = array<i64: 1, 32>}, {transform_indices = @transform_31, window_bounds = array<i64: 1, 8, 32>}]} {
    %c0 = arith.constant 0 : index
    %c0_0 = arith.constant 0 : index
    %c0_1 = arith.constant 0 : index
    %0 = vector.load %arg1[%c0, %c0_0, %c0_1] : memref<1x8x32xf32, #tpu.memory_space<vmem>>, vector<1x8x32xf32>
    %1 = vector.shape_cast %0 : vector<1x8x32xf32> to vector<8x32xf32>
    %c0_2 = arith.constant 0 : index
    %c0_3 = arith.constant 0 : index
    %c0_4 = arith.constant 0 : index
    %2 = vector.load %arg2[%c0_2, %c0_3, %c0_4] : memref<1x8x32xf32, #tpu.memory_space<vmem>>, vector<1x8x32xf32>
    %3 = vector.shape_cast %2 : vector<1x8x32xf32> to vector<8x32xf32>
    %c0_5 = arith.constant 0 : index
    %c0_6 = arith.constant 0 : index
    %c0_7 = arith.constant 0 : index
    %4 = vector.load %arg3[%c0_5, %c0_6, %c0_7] : memref<1x8x32xf32, #tpu.memory_space<vmem>>, vector<1x8x32xf32>
    %5 = vector.shape_cast %4 : vector<1x8x32xf32> to vector<8x32xf32>
    %c0_8 = arith.constant 0 : index
    %c0_9 = arith.constant 0 : index
    %c0_10 = arith.constant 0 : index
    %6 = vector.load %arg4[%c0_8, %c0_9, %c0_10] : memref<1x16x32xf32, #tpu.memory_space<vmem>>, vector<1x16x32xf32>
    %7 = vector.shape_cast %6 : vector<1x16x32xf32> to vector<16x32xf32>
    %c0_11 = arith.constant 0 : index
    %c0_12 = arith.constant 0 : index
    %c0_13 = arith.constant 0 : index
    %8 = vector.load %arg5[%c0_11, %c0_12, %c0_13] : memref<1x16x32xf32, #tpu.memory_space<vmem>>, vector<1x16x32xf32>
    %9 = vector.shape_cast %8 : vector<1x16x32xf32> to vector<16x32xf32>
    %10 = arith.truncf %1 : vector<8x32xf32> to vector<8x32xbf16>
    %c0_14 = arith.constant 0 : index
    %c0_15 = arith.constant 0 : index
    %11 = vector.load %arg6[%c0_14, %c0_15] : memref<32x96xbf16, #tpu.memory_space<vmem>>, vector<32x96xbf16>
    %cst = arith.constant dense<0.000000e+00> : vector<8x96xf32>
    %12 = tpu.matmul %10, %11, %cst {dimension_numbers = #tpu.dot_dimension_numbers<[1], [0], [0], [1], [0, 0, 1, 1], [], []>} : vector<8x32xbf16>, vector<32x96xbf16>, vector<8x96xf32> -> vector<8x96xf32>
    %c0_16 = arith.constant 0 : index
    %c0_17 = arith.constant 0 : index
    %13 = vector.load %arg7[%c0_16, %c0_17] : memref<1x96xf32, #tpu.memory_space<vmem>>, vector<1x96xf32>
    %14 = vector.broadcast %13 : vector<1x96xf32> to vector<8x96xf32>
    %15 = arith.addf %12, %14 : vector<8x96xf32>
    %16 = arith.truncf %3 : vector<8x32xf32> to vector<8x32xbf16>
    %c0_18 = arith.constant 0 : index
    %c0_19 = arith.constant 0 : index
    %17 = vector.load %arg8[%c0_18, %c0_19] : memref<32x64xbf16, #tpu.memory_space<vmem>>, vector<32x64xbf16>
    %cst_20 = arith.constant dense<0.000000e+00> : vector<8x64xf32>
    %18 = tpu.matmul %16, %17, %cst_20 {dimension_numbers = #tpu.dot_dimension_numbers<[1], [0], [0], [1], [0, 0, 1, 1], [], []>} : vector<8x32xbf16>, vector<32x64xbf16>, vector<8x64xf32> -> vector<8x64xf32>
    %c0_21 = arith.constant 0 : index
    %c0_22 = arith.constant 0 : index
    %19 = vector.load %arg9[%c0_21, %c0_22] : memref<1x64xf32, #tpu.memory_space<vmem>>, vector<1x64xf32>
    %20 = vector.broadcast %19 : vector<1x64xf32> to vector<8x64xf32>
    %21 = arith.addf %18, %20 : vector<8x64xf32>
    %22 = vector.extract_strided_slice %15 {offsets = [0, 0], sizes = [8, 32], strides = [1, 1]} : vector<8x96xf32> to vector<8x32xf32>
    %23 = vector.extract_strided_slice %21 {offsets = [0, 0], sizes = [8, 32], strides = [1, 1]} : vector<8x64xf32> to vector<8x32xf32>
    %24 = arith.addf %22, %23 : vector<8x32xf32>
    %25 = vector.extract_strided_slice %24 {offsets = [0, 0], sizes = [8, 8], strides = [1, 1]} : vector<8x32xf32> to vector<8x8xf32>
    %26 = vector.extract_strided_slice %24 {offsets = [0, 8], sizes = [8, 8], strides = [1, 1]} : vector<8x32xf32> to vector<8x8xf32>
    %27 = vector.extract_strided_slice %24 {offsets = [0, 16], sizes = [8, 8], strides = [1, 1]} : vector<8x32xf32> to vector<8x8xf32>
    %28 = vector.extract_strided_slice %24 {offsets = [0, 24], sizes = [8, 8], strides = [1, 1]} : vector<8x32xf32> to vector<8x8xf32>
    %29 = vector.shape_cast %25 : vector<8x8xf32> to vector<1x8x8xf32>
    %30 = vector.shape_cast %26 : vector<8x8xf32> to vector<1x8x8xf32>
    %31 = vector.shape_cast %27 : vector<8x8xf32> to vector<1x8x8xf32>
    %32 = vector.shape_cast %28 : vector<8x8xf32> to vector<1x8x8xf32>
    %33 = tpu.concatenate %29, %30, %31, %32 in 0 : vector<1x8x8xf32>, vector<1x8x8xf32>, vector<1x8x8xf32>, vector<1x8x8xf32> -> vector<4x8x8xf32>
    %34 = vector.extract_strided_slice %15 {offsets = [0, 32], sizes = [8, 32], strides = [1, 1]} : vector<8x96xf32> to vector<8x32xf32>
    %35 = vector.extract_strided_slice %21 {offsets = [0, 32], sizes = [8, 32], strides = [1, 1]} : vector<8x64xf32> to vector<8x32xf32>
    %36 = arith.addf %34, %35 : vector<8x32xf32>
    %37 = vector.extract_strided_slice %36 {offsets = [0, 0], sizes = [8, 8], strides = [1, 1]} : vector<8x32xf32> to vector<8x8xf32>
    %38 = vector.extract_strided_slice %36 {offsets = [0, 8], sizes = [8, 8], strides = [1, 1]} : vector<8x32xf32> to vector<8x8xf32>
    %39 = vector.extract_strided_slice %36 {offsets = [0, 16], sizes = [8, 8], strides = [1, 1]} : vector<8x32xf32> to vector<8x8xf32>
    %40 = vector.extract_strided_slice %36 {offsets = [0, 24], sizes = [8, 8], strides = [1, 1]} : vector<8x32xf32> to vector<8x8xf32>
    %41 = vector.shape_cast %37 : vector<8x8xf32> to vector<1x8x8xf32>
    %42 = vector.shape_cast %38 : vector<8x8xf32> to vector<1x8x8xf32>
    %43 = vector.shape_cast %39 : vector<8x8xf32> to vector<1x8x8xf32>
    %44 = vector.shape_cast %40 : vector<8x8xf32> to vector<1x8x8xf32>
    %45 = tpu.concatenate %41, %42, %43, %44 in 0 : vector<1x8x8xf32>, vector<1x8x8xf32>, vector<1x8x8xf32>, vector<1x8x8xf32> -> vector<4x8x8xf32>
    %46 = vector.extract_strided_slice %15 {offsets = [0, 64], sizes = [8, 32], strides = [1, 1]} : vector<8x96xf32> to vector<8x32xf32>
    %47 = vector.extract_strided_slice %46 {offsets = [0, 0], sizes = [8, 8], strides = [1, 1]} : vector<8x32xf32> to vector<8x8xf32>
    %48 = vector.extract_strided_slice %46 {offsets = [0, 8], sizes = [8, 8], strides = [1, 1]} : vector<8x32xf32> to vector<8x8xf32>
    %49 = vector.extract_strided_slice %46 {offsets = [0, 16], sizes = [8, 8], strides = [1, 1]} : vector<8x32xf32> to vector<8x8xf32>
    %50 = vector.extract_strided_slice %46 {offsets = [0, 24], sizes = [8, 8], strides = [1, 1]} : vector<8x32xf32> to vector<8x8xf32>
    %51 = vector.shape_cast %47 : vector<8x8xf32> to vector<1x8x8xf32>
    %52 = vector.shape_cast %48 : vector<8x8xf32> to vector<1x8x8xf32>
    %53 = vector.shape_cast %49 : vector<8x8xf32> to vector<1x8x8xf32>
    %54 = vector.shape_cast %50 : vector<8x8xf32> to vector<1x8x8xf32>
    %55 = tpu.concatenate %51, %52, %53, %54 in 0 : vector<1x8x8xf32>, vector<1x8x8xf32>, vector<1x8x8xf32>, vector<1x8x8xf32> -> vector<4x8x8xf32>
    %56 = arith.truncf %33 : vector<4x8x8xf32> to vector<4x8x8xbf16>
    %57 = arith.truncf %45 : vector<4x8x8xf32> to vector<4x8x8xbf16>
    "tpu.trace_start"() <{level = 10 : i32, message = "hld,hsd->hls"}> : () -> ()
    %cst_23 = arith.constant dense<0.000000e+00> : vector<4x8x8xf32>
    %58 = tpu.matmul %56, %57, %cst_23 {dimension_numbers = #tpu.dot_dimension_numbers<[2], [2], [1], [1], [0, 0, 0, 1, 1, 1], [0], [0]>} : vector<4x8x8xbf16>, vector<4x8x8xbf16>, vector<4x8x8xf32> -> vector<4x8x8xf32>
    "tpu.trace_stop"() : () -> ()
    %cst_24 = arith.constant dense<0xFF800000> : vector<4x8xf32>
    %59 = vector.multi_reduction <maximumf>, %58, %cst_24 [2] : vector<4x8x8xf32> to vector<4x8xf32>
    %60 = vector.shape_cast %59 : vector<4x8xf32> to vector<4x8x1xf32>
    %61 = vector.broadcast %60 : vector<4x8x1xf32> to vector<4x8x8xf32>
    %62 = arith.subf %58, %61 : vector<4x8x8xf32>
    %63 = math.exp %62 : vector<4x8x8xf32>
    %cst_25 = arith.constant dense<0.000000e+00> : vector<4x8xf32>
    %64 = vector.multi_reduction <add>, %63, %cst_25 [2] : vector<4x8x8xf32> to vector<4x8xf32>
    %65 = vector.shape_cast %64 : vector<4x8xf32> to vector<4x8x1xf32>
    %cst_26 = arith.constant 1.000000e+00 : f32
    %66 = vector.broadcast %cst_26 : f32 to vector<4x8x1xf32>
    %67 = arith.divf %66, %65 : vector<4x8x1xf32>
    %68 = vector.broadcast %67 : vector<4x8x1xf32> to vector<4x8x8xf32>
    %69 = arith.mulf %63, %68 : vector<4x8x8xf32>
    %70 = arith.truncf %69 : vector<4x8x8xf32> to vector<4x8x8xbf16>
    %71 = arith.truncf %55 : vector<4x8x8xf32> to vector<4x8x8xbf16>
    "tpu.trace_start"() <{level = 10 : i32, message = "hls,hsd->hld"}> : () -> ()
    %cst_27 = arith.constant dense<0.000000e+00> : vector<4x8x8xf32>
    %72 = tpu.matmul %70, %71, %cst_27 {dimension_numbers = #tpu.dot_dimension_numbers<[2], [1], [1], [2], [0, 0, 0, 1, 1, 2], [0], [0]>} : vector<4x8x8xbf16>, vector<4x8x8xbf16>, vector<4x8x8xf32> -> vector<4x8x8xf32>
    "tpu.trace_stop"() : () -> ()
    %73 = arith.truncf %72 : vector<4x8x8xf32> to vector<4x8x8xbf16>
    %c0_28 = arith.constant 0 : index
    %c0_29 = arith.constant 0 : index
    %c0_30 = arith.constant 0 : index
    %74 = vector.load %arg10[%c0_28, %c0_29, %c0_30] : memref<4x8x32xbf16, #tpu.memory_space<vmem>>, vector<4x8x32xbf16>
    "tpu.trace_start"() <{level = 10 : i32, message = "hld,hdo->hlo"}> : () -> ()
    %cst_31 = arith.constant dense<0.000000e+00> : vector<4x8x32xf32>
    %75 = tpu.matmul %73, %74, %cst_31 {dimension_numbers = #tpu.dot_dimension_numbers<[2], [1], [1], [2], [0, 0, 0, 1, 1, 2], [0], [0]>} : vector<4x8x8xbf16>, vector<4x8x32xbf16>, vector<4x8x32xf32> -> vector<4x8x32xf32>
    "tpu.trace_stop"() : () -> ()
    %cst_32 = arith.constant dense<0.000000e+00> : vector<8x32xf32>
    %76 = vector.multi_reduction <add>, %75, %cst_32 [0] : vector<4x8x32xf32> to vector<8x32xf32>
    %c0_33 = arith.constant 0 : index
    %c0_34 = arith.constant 0 : index
    %77 = vector.load %arg11[%c0_33, %c0_34] : memref<1x32xf32, #tpu.memory_space<vmem>>, vector<1x32xf32>
    %78 = vector.broadcast %77 : vector<1x32xf32> to vector<8x32xf32>
    %79 = arith.addf %76, %78 : vector<8x32xf32>
    %80 = arith.addf %1, %79 : vector<8x32xf32>
    %cst_35 = arith.constant dense<0.000000e+00> : vector<8xf32>
    %81 = vector.multi_reduction <add>, %80, %cst_35 [1] : vector<8x32xf32> to vector<8xf32>
    %82 = vector.shape_cast %81 : vector<8xf32> to vector<8x1xf32>
    %cst_36 = arith.constant 3.200000e+01 : f32
    %83 = vector.broadcast %cst_36 : f32 to vector<8x1xf32>
    %84 = arith.divf %82, %83 : vector<8x1xf32>
    %85 = vector.broadcast %84 : vector<8x1xf32> to vector<8x32xf32>
    %86 = arith.subf %80, %85 : vector<8x32xf32>
    %87 = arith.mulf %86, %86 : vector<8x32xf32>
    %cst_37 = arith.constant dense<0.000000e+00> : vector<8xf32>
    %88 = vector.multi_reduction <add>, %87, %cst_37 [1] : vector<8x32xf32> to vector<8xf32>
    %89 = vector.shape_cast %88 : vector<8xf32> to vector<8x1xf32>
    %cst_38 = arith.constant 3.200000e+01 : f32
    %90 = vector.broadcast %cst_38 : f32 to vector<8x1xf32>
    %91 = arith.divf %89, %90 : vector<8x1xf32>
    %92 = vector.broadcast %84 : vector<8x1xf32> to vector<8x32xf32>
    %93 = arith.subf %80, %92 : vector<8x32xf32>
    %cst_39 = arith.constant 9.99999974E-6 : f32
    %94 = vector.broadcast %cst_39 : f32 to vector<8x1xf32>
    %95 = arith.addf %91, %94 : vector<8x1xf32>
    %96 = math.rsqrt %95 : vector<8x1xf32>
    %97 = vector.broadcast %96 : vector<8x1xf32> to vector<8x32xf32>
    %98 = arith.mulf %93, %97 : vector<8x32xf32>
    %c0_40 = arith.constant 0 : index
    %c0_41 = arith.constant 0 : index
    %99 = vector.load %arg12[%c0_40, %c0_41] : memref<1x32xf32, #tpu.memory_space<vmem>>, vector<1x32xf32>
    %100 = vector.broadcast %99 : vector<1x32xf32> to vector<8x32xf32>
    %101 = arith.mulf %98, %100 : vector<8x32xf32>
    %c0_42 = arith.constant 0 : index
    %c0_43 = arith.constant 0 : index
    %102 = vector.load %arg13[%c0_42, %c0_43] : memref<1x32xf32, #tpu.memory_space<vmem>>, vector<1x32xf32>
    %103 = vector.broadcast %102 : vector<1x32xf32> to vector<8x32xf32>
    %104 = arith.addf %101, %103 : vector<8x32xf32>
    %105 = arith.truncf %104 : vector<8x32xf32> to vector<8x32xbf16>
    %c0_44 = arith.constant 0 : index
    %c0_45 = arith.constant 0 : index
    %106 = vector.load %arg14[%c0_44, %c0_45] : memref<32x32xbf16, #tpu.memory_space<vmem>>, vector<32x32xbf16>
    %cst_46 = arith.constant dense<0.000000e+00> : vector<8x32xf32>
    %107 = tpu.matmul %105, %106, %cst_46 {dimension_numbers = #tpu.dot_dimension_numbers<[1], [0], [0], [1], [0, 0, 1, 1], [], []>} : vector<8x32xbf16>, vector<32x32xbf16>, vector<8x32xf32> -> vector<8x32xf32>
    %c0_47 = arith.constant 0 : index
    %c0_48 = arith.constant 0 : index
    %108 = vector.load %arg15[%c0_47, %c0_48] : memref<1x32xf32, #tpu.memory_space<vmem>>, vector<1x32xf32>
    %109 = vector.broadcast %108 : vector<1x32xf32> to vector<8x32xf32>
    %110 = arith.addf %107, %109 : vector<8x32xf32>
    %111 = vector.extract_strided_slice %110 {offsets = [0, 0], sizes = [8, 8], strides = [1, 1]} : vector<8x32xf32> to vector<8x8xf32>
    %112 = vector.extract_strided_slice %110 {offsets = [0, 8], sizes = [8, 8], strides = [1, 1]} : vector<8x32xf32> to vector<8x8xf32>
    %113 = vector.extract_strided_slice %110 {offsets = [0, 16], sizes = [8, 8], strides = [1, 1]} : vector<8x32xf32> to vector<8x8xf32>
    %114 = vector.extract_strided_slice %110 {offsets = [0, 24], sizes = [8, 8], strides = [1, 1]} : vector<8x32xf32> to vector<8x8xf32>
    %115 = vector.shape_cast %111 : vector<8x8xf32> to vector<1x8x8xf32>
    %116 = vector.shape_cast %112 : vector<8x8xf32> to vector<1x8x8xf32>
    %117 = vector.shape_cast %113 : vector<8x8xf32> to vector<1x8x8xf32>
    %118 = vector.shape_cast %114 : vector<8x8xf32> to vector<1x8x8xf32>
    %119 = tpu.concatenate %115, %116, %117, %118 in 0 : vector<1x8x8xf32>, vector<1x8x8xf32>, vector<1x8x8xf32>, vector<1x8x8xf32> -> vector<4x8x8xf32>
    %120 = arith.truncf %5 : vector<8x32xf32> to vector<8x32xbf16>
    %c0_49 = arith.constant 0 : index
    %c0_50 = arith.constant 0 : index
    %121 = vector.load %arg16[%c0_49, %c0_50] : memref<32x32xbf16, #tpu.memory_space<vmem>>, vector<32x32xbf16>
    %cst_51 = arith.constant dense<0.000000e+00> : vector<8x32xf32>
    %122 = tpu.matmul %120, %121, %cst_51 {dimension_numbers = #tpu.dot_dimension_numbers<[1], [0], [0], [1], [0, 0, 1, 1], [], []>} : vector<8x32xbf16>, vector<32x32xbf16>, vector<8x32xf32> -> vector<8x32xf32>
    %c0_52 = arith.constant 0 : index
    %c0_53 = arith.constant 0 : index
    %123 = vector.load %arg17[%c0_52, %c0_53] : memref<1x32xf32, #tpu.memory_space<vmem>>, vector<1x32xf32>
    %124 = vector.broadcast %123 : vector<1x32xf32> to vector<8x32xf32>
    %125 = arith.addf %122, %124 : vector<8x32xf32>
    %126 = vector.extract_strided_slice %125 {offsets = [0, 0], sizes = [8, 8], strides = [1, 1]} : vector<8x32xf32> to vector<8x8xf32>
    %127 = vector.extract_strided_slice %125 {offsets = [0, 8], sizes = [8, 8], strides = [1, 1]} : vector<8x32xf32> to vector<8x8xf32>
    %128 = vector.extract_strided_slice %125 {offsets = [0, 16], sizes = [8, 8], strides = [1, 1]} : vector<8x32xf32> to vector<8x8xf32>
    %129 = vector.extract_strided_slice %125 {offsets = [0, 24], sizes = [8, 8], strides = [1, 1]} : vector<8x32xf32> to vector<8x8xf32>
    %130 = vector.shape_cast %126 : vector<8x8xf32> to vector<1x8x8xf32>
    %131 = vector.shape_cast %127 : vector<8x8xf32> to vector<1x8x8xf32>
    %132 = vector.shape_cast %128 : vector<8x8xf32> to vector<1x8x8xf32>
    %133 = vector.shape_cast %129 : vector<8x8xf32> to vector<1x8x8xf32>
    %134 = tpu.concatenate %130, %131, %132, %133 in 0 : vector<1x8x8xf32>, vector<1x8x8xf32>, vector<1x8x8xf32>, vector<1x8x8xf32> -> vector<4x8x8xf32>
    %135 = arith.truncf %7 : vector<16x32xf32> to vector<16x32xbf16>
    %c0_54 = arith.constant 0 : index
    %c0_55 = arith.constant 0 : index
    %136 = vector.load %arg18[%c0_54, %c0_55] : memref<32x64xbf16, #tpu.memory_space<vmem>>, vector<32x64xbf16>
    %cst_56 = arith.constant dense<0.000000e+00> : vector<16x64xf32>
    %137 = tpu.matmul %135, %136, %cst_56 {dimension_numbers = #tpu.dot_dimension_numbers<[1], [0], [0], [1], [0, 0, 1, 1], [], []>} : vector<16x32xbf16>, vector<32x64xbf16>, vector<16x64xf32> -> vector<16x64xf32>
    %c0_57 = arith.constant 0 : index
    %c0_58 = arith.constant 0 : index
    %138 = vector.load %arg19[%c0_57, %c0_58] : memref<1x64xf32, #tpu.memory_space<vmem>>, vector<1x64xf32>
    %139 = vector.broadcast %138 : vector<1x64xf32> to vector<16x64xf32>
    %140 = arith.addf %137, %139 : vector<16x64xf32>
    %141 = vector.extract_strided_slice %140 {offsets = [0, 0], sizes = [16, 32], strides = [1, 1]} : vector<16x64xf32> to vector<16x32xf32>
    %142 = vector.extract_strided_slice %141 {offsets = [0, 0], sizes = [16, 8], strides = [1, 1]} : vector<16x32xf32> to vector<16x8xf32>
    %143 = vector.extract_strided_slice %141 {offsets = [0, 8], sizes = [16, 8], strides = [1, 1]} : vector<16x32xf32> to vector<16x8xf32>
    %144 = vector.extract_strided_slice %141 {offsets = [0, 16], sizes = [16, 8], strides = [1, 1]} : vector<16x32xf32> to vector<16x8xf32>
    %145 = vector.extract_strided_slice %141 {offsets = [0, 24], sizes = [16, 8], strides = [1, 1]} : vector<16x32xf32> to vector<16x8xf32>
    %146 = vector.shape_cast %142 : vector<16x8xf32> to vector<1x16x8xf32>
    %147 = vector.shape_cast %143 : vector<16x8xf32> to vector<1x16x8xf32>
    %148 = vector.shape_cast %144 : vector<16x8xf32> to vector<1x16x8xf32>
    %149 = vector.shape_cast %145 : vector<16x8xf32> to vector<1x16x8xf32>
    %150 = tpu.concatenate %146, %147, %148, %149 in 0 : vector<1x16x8xf32>, vector<1x16x8xf32>, vector<1x16x8xf32>, vector<1x16x8xf32> -> vector<4x16x8xf32>
    %151 = vector.extract_strided_slice %140 {offsets = [0, 32], sizes = [16, 32], strides = [1, 1]} : vector<16x64xf32> to vector<16x32xf32>
    %152 = vector.extract_strided_slice %151 {offsets = [0, 0], sizes = [16, 8], strides = [1, 1]} : vector<16x32xf32> to vector<16x8xf32>
    %153 = vector.extract_strided_slice %151 {offsets = [0, 8], sizes = [16, 8], strides = [1, 1]} : vector<16x32xf32> to vector<16x8xf32>
    %154 = vector.extract_strided_slice %151 {offsets = [0, 16], sizes = [16, 8], strides = [1, 1]} : vector<16x32xf32> to vector<16x8xf32>
    %155 = vector.extract_strided_slice %151 {offsets = [0, 24], sizes = [16, 8], strides = [1, 1]} : vector<16x32xf32> to vector<16x8xf32>
    %156 = vector.shape_cast %152 : vector<16x8xf32> to vector<1x16x8xf32>
    %157 = vector.shape_cast %153 : vector<16x8xf32> to vector<1x16x8xf32>
    %158 = vector.shape_cast %154 : vector<16x8xf32> to vector<1x16x8xf32>
    %159 = vector.shape_cast %155 : vector<16x8xf32> to vector<1x16x8xf32>
    %160 = tpu.concatenate %156, %157, %158, %159 in 0 : vector<1x16x8xf32>, vector<1x16x8xf32>, vector<1x16x8xf32>, vector<1x16x8xf32> -> vector<4x16x8xf32>
    %161 = arith.truncf %9 : vector<16x32xf32> to vector<16x32xbf16>
    %c0_59 = arith.constant 0 : index
    %c0_60 = arith.constant 0 : index
    %162 = vector.load %arg20[%c0_59, %c0_60] : memref<32x32xbf16, #tpu.memory_space<vmem>>, vector<32x32xbf16>
    %cst_61 = arith.constant dense<0.000000e+00> : vector<16x32xf32>
    %163 = tpu.matmul %161, %162, %cst_61 {dimension_numbers = #tpu.dot_dimension_numbers<[1], [0], [0], [1], [0, 0, 1, 1], [], []>} : vector<16x32xbf16>, vector<32x32xbf16>, vector<16x32xf32> -> vector<16x32xf32>
    %c0_62 = arith.constant 0 : index
    %c0_63 = arith.constant 0 : index
    %164 = vector.load %arg21[%c0_62, %c0_63] : memref<1x32xf32, #tpu.memory_space<vmem>>, vector<1x32xf32>
    %165 = vector.broadcast %164 : vector<1x32xf32> to vector<16x32xf32>
    %166 = arith.addf %163, %165 : vector<16x32xf32>
    %167 = vector.extract_strided_slice %166 {offsets = [0, 0], sizes = [16, 8], strides = [1, 1]} : vector<16x32xf32> to vector<16x8xf32>
    %168 = vector.extract_strided_slice %166 {offsets = [0, 8], sizes = [16, 8], strides = [1, 1]} : vector<16x32xf32> to vector<16x8xf32>
    %169 = vector.extract_strided_slice %166 {offsets = [0, 16], sizes = [16, 8], strides = [1, 1]} : vector<16x32xf32> to vector<16x8xf32>
    %170 = vector.extract_strided_slice %166 {offsets = [0, 24], sizes = [16, 8], strides = [1, 1]} : vector<16x32xf32> to vector<16x8xf32>
    %171 = vector.shape_cast %167 : vector<16x8xf32> to vector<1x16x8xf32>
    %172 = vector.shape_cast %168 : vector<16x8xf32> to vector<1x16x8xf32>
    %173 = vector.shape_cast %169 : vector<16x8xf32> to vector<1x16x8xf32>
    %174 = vector.shape_cast %170 : vector<16x8xf32> to vector<1x16x8xf32>
    %175 = tpu.concatenate %171, %172, %173, %174 in 0 : vector<1x16x8xf32>, vector<1x16x8xf32>, vector<1x16x8xf32>, vector<1x16x8xf32> -> vector<4x16x8xf32>
    %176 = arith.truncf %119 : vector<4x8x8xf32> to vector<4x8x8xbf16>
    %177 = arith.truncf %150 : vector<4x16x8xf32> to vector<4x16x8xbf16>
    "tpu.trace_start"() <{level = 10 : i32, message = "hld,hsd->hls"}> : () -> ()
    %cst_64 = arith.constant dense<0.000000e+00> : vector<4x8x16xf32>
    %178 = tpu.matmul %176, %177, %cst_64 {dimension_numbers = #tpu.dot_dimension_numbers<[2], [2], [1], [1], [0, 0, 0, 1, 1, 1], [0], [0]>} : vector<4x8x8xbf16>, vector<4x16x8xbf16>, vector<4x8x16xf32> -> vector<4x8x16xf32>
    "tpu.trace_stop"() : () -> ()
    %179 = arith.truncf %134 : vector<4x8x8xf32> to vector<4x8x8xbf16>
    %180 = arith.truncf %175 : vector<4x16x8xf32> to vector<4x16x8xbf16>
    "tpu.trace_start"() <{level = 10 : i32, message = "hld,hsd->hls"}> : () -> ()
    %cst_65 = arith.constant dense<0.000000e+00> : vector<4x8x16xf32>
    %181 = tpu.matmul %179, %180, %cst_65 {dimension_numbers = #tpu.dot_dimension_numbers<[2], [2], [1], [1], [0, 0, 0, 1, 1, 1], [0], [0]>} : vector<4x8x8xbf16>, vector<4x16x8xbf16>, vector<4x8x16xf32> -> vector<4x8x16xf32>
    "tpu.trace_stop"() : () -> ()
    %182 = arith.addf %178, %181 : vector<4x8x16xf32>
    %cst_66 = arith.constant dense<0xFF800000> : vector<4x8xf32>
    %183 = vector.multi_reduction <maximumf>, %182, %cst_66 [2] : vector<4x8x16xf32> to vector<4x8xf32>
    %184 = vector.shape_cast %183 : vector<4x8xf32> to vector<4x8x1xf32>
    %185 = vector.broadcast %184 : vector<4x8x1xf32> to vector<4x8x16xf32>
    %186 = arith.subf %182, %185 : vector<4x8x16xf32>
    %187 = math.exp %186 : vector<4x8x16xf32>
    %cst_67 = arith.constant dense<0.000000e+00> : vector<4x8xf32>
    %188 = vector.multi_reduction <add>, %187, %cst_67 [2] : vector<4x8x16xf32> to vector<4x8xf32>
    %189 = vector.shape_cast %188 : vector<4x8xf32> to vector<4x8x1xf32>
    %cst_68 = arith.constant 1.000000e+00 : f32
    %190 = vector.broadcast %cst_68 : f32 to vector<4x8x1xf32>
    %191 = arith.divf %190, %189 : vector<4x8x1xf32>
    %192 = vector.broadcast %191 : vector<4x8x1xf32> to vector<4x8x16xf32>
    %193 = arith.mulf %187, %192 : vector<4x8x16xf32>
    %194 = arith.truncf %193 : vector<4x8x16xf32> to vector<4x8x16xbf16>
    %195 = arith.truncf %160 : vector<4x16x8xf32> to vector<4x16x8xbf16>
    "tpu.trace_start"() <{level = 10 : i32, message = "hls,hsd->hld"}> : () -> ()
    %cst_69 = arith.constant dense<0.000000e+00> : vector<4x8x8xf32>
    %196 = tpu.matmul %194, %195, %cst_69 {dimension_numbers = #tpu.dot_dimension_numbers<[2], [1], [1], [2], [0, 0, 0, 1, 1, 2], [0], [0]>} : vector<4x8x16xbf16>, vector<4x16x8xbf16>, vector<4x8x8xf32> -> vector<4x8x8xf32>
    "tpu.trace_stop"() : () -> ()
    %197 = arith.truncf %196 : vector<4x8x8xf32> to vector<4x8x8xbf16>
    %c0_70 = arith.constant 0 : index
    %c0_71 = arith.constant 0 : index
    %c0_72 = arith.constant 0 : index
    %198 = vector.load %arg22[%c0_70, %c0_71, %c0_72] : memref<4x8x32xbf16, #tpu.memory_space<vmem>>, vector<4x8x32xbf16>
    "tpu.trace_start"() <{level = 10 : i32, message = "hld,hdo->hlo"}> : () -> ()
    %cst_73 = arith.constant dense<0.000000e+00> : vector<4x8x32xf32>
    %199 = tpu.matmul %197, %198, %cst_73 {dimension_numbers = #tpu.dot_dimension_numbers<[2], [1], [1], [2], [0, 0, 0, 1, 1, 2], [0], [0]>} : vector<4x8x8xbf16>, vector<4x8x32xbf16>, vector<4x8x32xf32> -> vector<4x8x32xf32>
    "tpu.trace_stop"() : () -> ()
    %cst_74 = arith.constant dense<0.000000e+00> : vector<8x32xf32>
    %200 = vector.multi_reduction <add>, %199, %cst_74 [0] : vector<4x8x32xf32> to vector<8x32xf32>
    %c0_75 = arith.constant 0 : index
    %c0_76 = arith.constant 0 : index
    %201 = vector.load %arg23[%c0_75, %c0_76] : memref<1x32xf32, #tpu.memory_space<vmem>>, vector<1x32xf32>
    %202 = vector.broadcast %201 : vector<1x32xf32> to vector<8x32xf32>
    %203 = arith.addf %200, %202 : vector<8x32xf32>
    %204 = arith.addf %104, %203 : vector<8x32xf32>
    %cst_77 = arith.constant dense<0.000000e+00> : vector<8xf32>
    %205 = vector.multi_reduction <add>, %204, %cst_77 [1] : vector<8x32xf32> to vector<8xf32>
    %206 = vector.shape_cast %205 : vector<8xf32> to vector<8x1xf32>
    %cst_78 = arith.constant 3.200000e+01 : f32
    %207 = vector.broadcast %cst_78 : f32 to vector<8x1xf32>
    %208 = arith.divf %206, %207 : vector<8x1xf32>
    %209 = vector.broadcast %208 : vector<8x1xf32> to vector<8x32xf32>
    %210 = arith.subf %204, %209 : vector<8x32xf32>
    %211 = arith.mulf %210, %210 : vector<8x32xf32>
    %cst_79 = arith.constant dense<0.000000e+00> : vector<8xf32>
    %212 = vector.multi_reduction <add>, %211, %cst_79 [1] : vector<8x32xf32> to vector<8xf32>
    %213 = vector.shape_cast %212 : vector<8xf32> to vector<8x1xf32>
    %cst_80 = arith.constant 3.200000e+01 : f32
    %214 = vector.broadcast %cst_80 : f32 to vector<8x1xf32>
    %215 = arith.divf %213, %214 : vector<8x1xf32>
    %216 = vector.broadcast %208 : vector<8x1xf32> to vector<8x32xf32>
    %217 = arith.subf %204, %216 : vector<8x32xf32>
    %cst_81 = arith.constant 9.99999974E-6 : f32
    %218 = vector.broadcast %cst_81 : f32 to vector<8x1xf32>
    %219 = arith.addf %215, %218 : vector<8x1xf32>
    %220 = math.rsqrt %219 : vector<8x1xf32>
    %221 = vector.broadcast %220 : vector<8x1xf32> to vector<8x32xf32>
    %222 = arith.mulf %217, %221 : vector<8x32xf32>
    %c0_82 = arith.constant 0 : index
    %c0_83 = arith.constant 0 : index
    %223 = vector.load %arg24[%c0_82, %c0_83] : memref<1x32xf32, #tpu.memory_space<vmem>>, vector<1x32xf32>
    %224 = vector.broadcast %223 : vector<1x32xf32> to vector<8x32xf32>
    %225 = arith.mulf %222, %224 : vector<8x32xf32>
    %c0_84 = arith.constant 0 : index
    %c0_85 = arith.constant 0 : index
    %226 = vector.load %arg25[%c0_84, %c0_85] : memref<1x32xf32, #tpu.memory_space<vmem>>, vector<1x32xf32>
    %227 = vector.broadcast %226 : vector<1x32xf32> to vector<8x32xf32>
    %228 = arith.addf %225, %227 : vector<8x32xf32>
    %229 = arith.truncf %228 : vector<8x32xf32> to vector<8x32xbf16>
    %c0_86 = arith.constant 0 : index
    %c0_87 = arith.constant 0 : index
    %230 = vector.load %arg26[%c0_86, %c0_87] : memref<32x64xbf16, #tpu.memory_space<vmem>>, vector<32x64xbf16>
    %cst_88 = arith.constant dense<0.000000e+00> : vector<8x64xf32>
    %231 = tpu.matmul %229, %230, %cst_88 {dimension_numbers = #tpu.dot_dimension_numbers<[1], [0], [0], [1], [0, 0, 1, 1], [], []>} : vector<8x32xbf16>, vector<32x64xbf16>, vector<8x64xf32> -> vector<8x64xf32>
    %c0_89 = arith.constant 0 : index
    %c0_90 = arith.constant 0 : index
    %232 = vector.load %arg27[%c0_89, %c0_90] : memref<1x64xf32, #tpu.memory_space<vmem>>, vector<1x64xf32>
    %233 = vector.broadcast %232 : vector<1x64xf32> to vector<8x64xf32>
    %234 = arith.addf %231, %233 : vector<8x64xf32>
    %cst_91 = arith.constant 0.000000e+00 : f32
    %235 = vector.broadcast %cst_91 : f32 to vector<8x64xf32>
    %236 = arith.maximumf %234, %235 : vector<8x64xf32>
    %237 = arith.truncf %236 : vector<8x64xf32> to vector<8x64xbf16>
    %c0_92 = arith.constant 0 : index
    %c0_93 = arith.constant 0 : index
    %238 = vector.load %arg28[%c0_92, %c0_93] : memref<64x32xbf16, #tpu.memory_space<vmem>>, vector<64x32xbf16>
    %cst_94 = arith.constant dense<0.000000e+00> : vector<8x32xf32>
    %239 = tpu.matmul %237, %238, %cst_94 {dimension_numbers = #tpu.dot_dimension_numbers<[1], [0], [0], [1], [0, 0, 1, 1], [], []>} : vector<8x64xbf16>, vector<64x32xbf16>, vector<8x32xf32> -> vector<8x32xf32>
    %c0_95 = arith.constant 0 : index
    %c0_96 = arith.constant 0 : index
    %240 = vector.load %arg29[%c0_95, %c0_96] : memref<1x32xf32, #tpu.memory_space<vmem>>, vector<1x32xf32>
    %241 = vector.broadcast %240 : vector<1x32xf32> to vector<8x32xf32>
    %242 = arith.addf %239, %241 : vector<8x32xf32>
    %243 = arith.addf %228, %242 : vector<8x32xf32>
    %cst_97 = arith.constant dense<0.000000e+00> : vector<8xf32>
    %244 = vector.multi_reduction <add>, %243, %cst_97 [1] : vector<8x32xf32> to vector<8xf32>
    %245 = vector.shape_cast %244 : vector<8xf32> to vector<8x1xf32>
    %cst_98 = arith.constant 3.200000e+01 : f32
    %246 = vector.broadcast %cst_98 : f32 to vector<8x1xf32>
    %247 = arith.divf %245, %246 : vector<8x1xf32>
    %248 = vector.broadcast %247 : vector<8x1xf32> to vector<8x32xf32>
    %249 = arith.subf %243, %248 : vector<8x32xf32>
    %250 = arith.mulf %249, %249 : vector<8x32xf32>
    %cst_99 = arith.constant dense<0.000000e+00> : vector<8xf32>
    %251 = vector.multi_reduction <add>, %250, %cst_99 [1] : vector<8x32xf32> to vector<8xf32>
    %252 = vector.shape_cast %251 : vector<8xf32> to vector<8x1xf32>
    %cst_100 = arith.constant 3.200000e+01 : f32
    %253 = vector.broadcast %cst_100 : f32 to vector<8x1xf32>
    %254 = arith.divf %252, %253 : vector<8x1xf32>
    %255 = vector.broadcast %247 : vector<8x1xf32> to vector<8x32xf32>
    %256 = arith.subf %243, %255 : vector<8x32xf32>
    %cst_101 = arith.constant 9.99999974E-6 : f32
    %257 = vector.broadcast %cst_101 : f32 to vector<8x1xf32>
    %258 = arith.addf %254, %257 : vector<8x1xf32>
    %259 = math.rsqrt %258 : vector<8x1xf32>
    %260 = vector.broadcast %259 : vector<8x1xf32> to vector<8x32xf32>
    %261 = arith.mulf %256, %260 : vector<8x32xf32>
    %c0_102 = arith.constant 0 : index
    %c0_103 = arith.constant 0 : index
    %262 = vector.load %arg30[%c0_102, %c0_103] : memref<1x32xf32, #tpu.memory_space<vmem>>, vector<1x32xf32>
    %263 = vector.broadcast %262 : vector<1x32xf32> to vector<8x32xf32>
    %264 = arith.mulf %261, %263 : vector<8x32xf32>
    %c0_104 = arith.constant 0 : index
    %c0_105 = arith.constant 0 : index
    %265 = vector.load %arg31[%c0_104, %c0_105] : memref<1x32xf32, #tpu.memory_space<vmem>>, vector<1x32xf32>
    %266 = vector.broadcast %265 : vector<1x32xf32> to vector<8x32xf32>
    %267 = arith.addf %264, %266 : vector<8x32xf32>
    %c0_106 = arith.constant 0 : index
    %c0_107 = arith.constant 0 : index
    %c0_108 = arith.constant 0 : index
    %268 = vector.load %arg32[%c0_106, %c0_107, %c0_108] : memref<1x8x32xf32, #tpu.memory_space<vmem>>, vector<1x8x32xf32>
    %269 = vector.shape_cast %268 : vector<1x8x32xf32> to vector<8x32xf32>
    %270 = vector.shape_cast %267 : vector<8x32xf32> to vector<1x8x32xf32>
    tpu.vector_store %arg32[%c0_106, %c0_107, %c0_108], %270 {strides = array<i32>} : memref<1x8x32xf32, #tpu.memory_space<vmem>>, vector<1x8x32xf32>,
    return
  }
  func.func @transform_0(%arg0: i32) -> (i32, i32, i32) {
    %c0_i32 = arith.constant 0 : i32
    %c0_i32_0 = arith.constant 0 : i32
    %c0_i32_1 = arith.constant 0 : i32
    return %arg0, %c0_i32, %c0_i32_0 : i32, i32, i32
  }
  func.func @transform_1(%arg0: i32) -> (i32, i32, i32) {
    %c0_i32 = arith.constant 0 : i32
    %c0_i32_0 = arith.constant 0 : i32
    %c0_i32_1 = arith.constant 0 : i32
    return %arg0, %c0_i32, %c0_i32_0 : i32, i32, i32
  }
  func.func @transform_2(%arg0: i32) -> (i32, i32, i32) {
    %c0_i32 = arith.constant 0 : i32
    %c0_i32_0 = arith.constant 0 : i32
    %c0_i32_1 = arith.constant 0 : i32
    return %arg0, %c0_i32, %c0_i32_0 : i32, i32, i32
  }
  func.func @transform_3(%arg0: i32) -> (i32, i32, i32) {
    %c0_i32 = arith.constant 0 : i32
    %c0_i32_0 = arith.constant 0 : i32
    %c0_i32_1 = arith.constant 0 : i32
    return %arg0, %c0_i32, %c0_i32_0 : i32, i32, i32
  }
  func.func @transform_4(%arg0: i32) -> (i32, i32, i32) {
    %c0_i32 = arith.constant 0 : i32
    %c0_i32_0 = arith.constant 0 : i32
    %c0_i32_1 = arith.constant 0 : i32
    return %arg0, %c0_i32, %c0_i32_0 : i32, i32, i32
  }
  func.func @transform_5(%arg0: i32) -> (i32, i32) {
    %c0_i32 = arith.constant 0 : i32
    %c0_i32_0 = arith.constant 0 : i32
    %c0_i32_1 = arith.constant 0 : i32
    return %c0_i32, %c0_i32_0 : i32, i32
  }
  func.func @transform_6(%arg0: i32) -> (i32, i32) {
    %c0_i32 = arith.constant 0 : i32
    %c0_i32_0 = arith.constant 0 : i32
    %c0_i32_1 = arith.constant 0 : i32
    return %c0_i32, %c0_i32_0 : i32, i32
  }
  func.func @transform_7(%arg0: i32) -> (i32, i32) {
    %c0_i32 = arith.constant 0 : i32
    %c0_i32_0 = arith.constant 0 : i32
    %c0_i32_1 = arith.constant 0 : i32
    return %c0_i32, %c0_i32_0 : i32, i32
  }
  func.func @transform_8(%arg0: i32) -> (i32, i32) {
    %c0_i32 = arith.constant 0 : i32
    %c0_i32_0 = arith.constant 0 : i32
    %c0_i32_1 = arith.constant 0 : i32
    return %c0_i32, %c0_i32_0 : i32, i32
  }
  func.func @transform_9(%arg0: i32) -> (i32, i32, i32) {
    %c0_i32 = arith.constant 0 : i32
    %c0_i32_0 = arith.constant 0 : i32
    %c0_i32_1 = arith.constant 0 : i32
    %c0_i32_2 = arith.constant 0 : i32
    return %c0_i32, %c0_i32_0, %c0_i32_1 : i32, i32, i32
  }
  func.func @transform_10(%arg0: i32) -> (i32, i32) {
    %c0_i32 = arith.constant 0 : i32
    %c0_i32_0 = arith.constant 0 : i32
    %c0_i32_1 = arith.constant 0 : i32
    return %c0_i32, %c0_i32_0 : i32, i32
  }
  func.func @transform_11(%arg0: i32) -> (i32, i32) {
    %c0_i32 = arith.constant 0 : i32
    %c0_i32_0 = arith.constant 0 : i32
    %c0_i32_1 = arith.constant 0 : i32
    return %c0_i32, %c0_i32_0 : i32, i32
  }
  func.func @transform_12(%arg0: i32) -> (i32, i32) {
    %c0_i32 = arith.constant 0 : i32
    %c0_i32_0 = arith.constant 0 : i32
    %c0_i32_1 = arith.constant 0 : i32
    return %c0_i32, %c0_i32_0 : i32, i32
  }
  func.func @transform_13(%arg0: i32) -> (i32, i32) {
    %c0_i32 = arith.constant 0 : i32
    %c0_i32_0 = arith.constant 0 : i32
    %c0_i32_1 = arith.constant 0 : i32
    return %c0_i32, %c0_i32_0 : i32, i32
  }
  func.func @transform_14(%arg0: i32) -> (i32, i32) {
    %c0_i32 = arith.constant 0 : i32
    %c0_i32_0 = arith.constant 0 : i32
    %c0_i32_1 = arith.constant 0 : i32
    return %c0_i32, %c0_i32_0 : i32, i32
  }
  func.func @transform_15(%arg0: i32) -> (i32, i32) {
    %c0_i32 = arith.constant 0 : i32
    %c0_i32_0 = arith.constant 0 : i32
    %c0_i32_1 = arith.constant 0 : i32
    return %c0_i32, %c0_i32_0 : i32, i32
  }
  func.func @transform_16(%arg0: i32) -> (i32, i32) {
    %c0_i32 = arith.constant 0 : i32
    %c0_i32_0 = arith.constant 0 : i32
    %c0_i32_1 = arith.constant 0 : i32
    return %c0_i32, %c0_i32_0 : i32, i32
  }
  func.func @transform_17(%arg0: i32) -> (i32, i32) {
    %c0_i32 = arith.constant 0 : i32
    %c0_i32_0 = arith.constant 0 : i32
    %c0_i32_1 = arith.constant 0 : i32
    return %c0_i32, %c0_i32_0 : i32, i32
  }
  func.func @transform_18(%arg0: i32) -> (i32, i32) {
    %c0_i32 = arith.constant 0 : i32
    %c0_i32_0 = arith.constant 0 : i32
    %c0_i32_1 = arith.constant 0 : i32
    return %c0_i32, %c0_i32_0 : i32, i32
  }
  func.func @transform_19(%arg0: i32) -> (i32, i32) {
    %c0_i32 = arith.constant 0 : i32
    %c0_i32_0 = arith.constant 0 : i32
    %c0_i32_1 = arith.constant 0 : i32
    return %c0_i32, %c0_i32_0 : i32, i32
  }
  func.func @transform_20(%arg0: i32) -> (i32, i32) {
    %c0_i32 = arith.constant 0 : i32
    %c0_i32_0 = arith.constant 0 : i32
    %c0_i32_1 = arith.constant 0 : i32
    return %c0_i32, %c0_i32_0 : i32, i32
  }
  func.func @transform_21(%arg0: i32) -> (i32, i32, i32) {
    %c0_i32 = arith.constant 0 : i32
    %c0_i32_0 = arith.constant 0 : i32
    %c0_i32_1 = arith.constant 0 : i32
    %c0_i32_2 = arith.constant 0 : i32
    return %c0_i32, %c0_i32_0, %c0_i32_1 : i32, i32, i32
  }
  func.func @transform_22(%arg0: i32) -> (i32, i32) {
    %c0_i32 = arith.constant 0 : i32
    %c0_i32_0 = arith.constant 0 : i32
    %c0_i32_1 = arith.constant 0 : i32
    return %c0_i32, %c0_i32_0 : i32, i32
  }
  func.func @transform_23(%arg0: i32) -> (i32, i32) {
    %c0_i32 = arith.constant 0 : i32
    %c0_i32_0 = arith.constant 0 : i32
    %c0_i32_1 = arith.constant 0 : i32
    return %c0_i32, %c0_i32_0 : i32, i32
  }
  func.func @transform_24(%arg0: i32) -> (i32, i32) {
    %c0_i32 = arith.constant 0 : i32
    %c0_i32_0 = arith.constant 0 : i32
    %c0_i32_1 = arith.constant 0 : i32
    return %c0_i32, %c0_i32_0 : i32, i32
  }
  func.func @transform_25(%arg0: i32) -> (i32, i32) {
    %c0_i32 = arith.constant 0 : i32
    %c0_i32_0 = arith.constant 0 : i32
    %c0_i32_1 = arith.constant 0 : i32
    return %c0_i32, %c0_i32_0 : i32, i32
  }
  func.func @transform_26(%arg0: i32) -> (i32, i32) {
    %c0_i32 = arith.constant 0 : i32
    %c0_i32_0 = arith.constant 0 : i32
    %c0_i32_1 = arith.constant 0 : i32
    return %c0_i32, %c0_i32_0 : i32, i32
  }
  func.func @transform_27(%arg0: i32) -> (i32, i32) {
    %c0_i32 = arith.constant 0 : i32
    %c0_i32_0 = arith.constant 0 : i32
    %c0_i32_1 = arith.constant 0 : i32
    return %c0_i32, %c0_i32_0 : i32, i32
  }
  func.func @transform_28(%arg0: i32) -> (i32, i32) {
    %c0_i32 = arith.constant 0 : i32
    %c0_i32_0 = arith.constant 0 : i32
    %c0_i32_1 = arith.constant 0 : i32
    return %c0_i32, %c0_i32_0 : i32, i32
  }
  func.func @transform_29(%arg0: i32) -> (i32, i32) {
    %c0_i32 = arith.constant 0 : i32
    %c0_i32_0 = arith.constant 0 : i32
    %c0_i32_1 = arith.constant 0 : i32
    return %c0_i32, %c0_i32_0 : i32, i32
  }
  func.func @transform_30(%arg0: i32) -> (i32, i32) {
    %c0_i32 = arith.constant 0 : i32
    %c0_i32_0 = arith.constant 0 : i32
    %c0_i32_1 = arith.constant 0 : i32
    return %c0_i32, %c0_i32_0 : i32, i32
  }
  func.func @transform_31(%arg0: i32) -> (i32, i32, i32) {
    %c0_i32 = arith.constant 0 : i32
    %c0_i32_0 = arith.constant 0 : i32
    %c0_i32_1 = arith.constant 0 : i32
    return %arg0, %c0_i32, %c0_i32_0 : i32, i32, i32
  }
}

</mosaic_0001>

<llo_original>
// kernel: transformer_decoder_layer.1
$region0: #{transformer_decoder_layer.1}
  #allocation0 [shape = 'u32[]', space=smem, size = 0x4, offset = 0x4, fixed_abs, tag = 'smem constant byte address 0x4 - core index']
  #allocation1 [shape = 'u32[144,128]{1,0:T(1,128)}', space=vmem, size = 0x12000, scoped, tag = 'internal scratch']
  %s0 = inlined_call_operand.smem [shape: u32[32], index: -1, kind: input, shape index: {}]
  %s1 = sld [smem:[%s0]]
  %s2 = scalar_lea.smem %s0, 1
  %s3 = sld [smem:[%s2]]
  %s4 = scalar_lea.smem %s0, 2
  %s5 = sld [smem:[%s4]]
  %s6 = scalar_lea.smem %s0, 3
  %s7 = sld [smem:[%s6]]
  %s8 = scalar_lea.smem %s0, 4
  %s9 = sld [smem:[%s8]]
  %s10 = scalar_lea.smem %s0, 5
  %s11 = sld [smem:[%s10]]
  %s12 = scalar_lea.smem %s0, 6
  %s13 = sld [smem:[%s12]]
  %s14 = scalar_lea.smem %s0, 7
  %s15 = sld [smem:[%s14]]
  %s16 = scalar_lea.smem %s0, 8
  %s17 = sld [smem:[%s16]]
  %s18 = scalar_lea.smem %s0, 9
  %s19 = sld [smem:[%s18]]
  %s20 = scalar_lea.smem %s0, 10
  %s21 = sld [smem:[%s20]]
  %s22 = scalar_lea.smem %s0, 11
  %s23 = sld [smem:[%s22]]
  %s24 = scalar_lea.smem %s0, 12
  %s25 = sld [smem:[%s24]]
  %s26 = scalar_lea.smem %s0, 13
  %s27 = sld [smem:[%s26]]
  %s28 = scalar_lea.smem %s0, 14
  %s29 = sld [smem:[%s28]]
  %s30 = scalar_lea.smem %s0, 15
  %s31 = sld [smem:[%s30]]
  %s32 = scalar_lea.smem %s0, 16
  %s33 = sld [smem:[%s32]]
  %s34 = scalar_lea.smem %s0, 17
  %s35 = sld [smem:[%s34]]
  %s36 = scalar_lea.smem %s0, 18
  %s37 = sld [smem:[%s36]]
  %s38 = scalar_lea.smem %s0, 19
  %s39 = sld [smem:[%s38]]
  %s40 = scalar_lea.smem %s0, 20
  %s41 = sld [smem:[%s40]]
  %s42 = scalar_lea.smem %s0, 21
  %s43 = sld [smem:[%s42]]
  %s44 = scalar_lea.smem %s0, 22
  %s45 = sld [smem:[%s44]]
  %s46 = scalar_lea.smem %s0, 23
  %s47 = sld [smem:[%s46]]
  %s48 = scalar_lea.smem %s0, 24
  %s49 = sld [smem:[%s48]]
  %s50 = scalar_lea.smem %s0, 25
  %s51 = sld [smem:[%s50]]
  %s52 = scalar_lea.smem %s0, 26
  %s53 = sld [smem:[%s52]]
  %s54 = scalar_lea.smem %s0, 27
  %s55 = sld [smem:[%s54]]
  %s56 = scalar_lea.smem %s0, 28
  %s57 = sld [smem:[%s56]]
  %s58 = scalar_lea.smem %s0, 29
  %s59 = sld [smem:[%s58]]
  %s60 = scalar_lea.smem %s0, 30
  %s61 = sld [smem:[%s60]]
  %s62 = scalar_lea.smem %s0, 31
  %s63 = sld [smem:[%s62]]
  %s64 = sld [smem:[#allocation0]]
  $region281: #{transformer_decoder_layer.1} parent=0
    _
  %s66 = ssub.s32 1, %s64
  %s67 = scalar_select 0, %s66, %s64
  $region1: #{transformer_decoder_layer.1} parent=0
    #allocation2 [shape = 'u8[8192]{0}', space=vmem, size = 0x2000, scoped, tag = 'input window, operand 0']
    #allocation3 [shape = 's32[2]{0}', space=sflag, size = 0x8, scoped, tag = 'scoped memory for transformer_decoder_layer.1']
    #allocation4 [shape = 's32[2]{0}', space=sflag, size = 0x8, scoped, tag = 'scoped memory for transformer_decoder_layer.1']
    #allocation5 [shape = 'u8[8192]{0}', space=vmem, size = 0x2000, scoped, tag = 'input window, operand 1']
    #allocation6 [shape = 's32[2]{0}', space=sflag, size = 0x8, scoped, tag = 'scoped memory for transformer_decoder_layer.1']
    #allocation7 [shape = 'u8[8192]{0}', space=vmem, size = 0x2000, scoped, tag = 'input window, operand 2']
    #allocation8 [shape = 'u8[16384]{0}', space=vmem, size = 0x4000, scoped, tag = 'input window, operand 3']
    #allocation9 [shape = 's32[2]{0}', space=sflag, size = 0x8, scoped, tag = 'scoped memory for transformer_decoder_layer.1']
    #allocation10 [shape = 'u8[16384]{0}', space=vmem, size = 0x4000, scoped, tag = 'input window, operand 4']
    #allocation11 [shape = 'u8[8192]{0}', space=vmem, size = 0x2000, scoped, tag = 'input window, operand 5, single buffered']
    #allocation12 [shape = 's32[1]{0}', space=sflag, size = 0x4, scoped, tag = 'scoped memory for transformer_decoder_layer.1']
    #allocation13 [shape = 'u8[512]{0}', space=vmem, size = 0x400, scoped, tag = 'input window, operand 6, single buffered']
    #allocation14 [shape = 'u8[8192]{0}', space=vmem, size = 0x2000, scoped, tag = 'input window, operand 7, single buffered']
    #allocation15 [shape = 's32[1]{0}', space=sflag, size = 0x4, scoped, tag = 'scoped memory for transformer_decoder_layer.1']
    #allocation16 [shape = 'u8[512]{0}', space=vmem, size = 0x400, scoped, tag = 'input window, operand 8, single buffered']
    #allocation17 [shape = 'u8[8192]{0}', space=vmem, size = 0x2000, scoped, tag = 'input window, operand 9, single buffered']
    #allocation18 [shape = 's32[1]{0}', space=sflag, size = 0x4, scoped, tag = 'scoped memory for transformer_decoder_layer.1']
    #allocation19 [shape = 'u8[512]{0}', space=vmem, size = 0x400, scoped, tag = 'input window, operand 10, single buffered']
    #allocation20 [shape = 'u8[512]{0}', space=vmem, size = 0x400, scoped, tag = 'input window, operand 11, single buffered']
    #allocation21 [shape = 's32[1]{0}', space=sflag, size = 0x4, scoped, tag = 'scoped memory for transformer_decoder_layer.1']
    #allocation22 [shape = 'u8[512]{0}', space=vmem, size = 0x400, scoped, tag = 'input window, operand 12, single buffered']
    #allocation23 [shape = 'u8[8192]{0}', space=vmem, size = 0x2000, scoped, tag = 'input window, operand 13, single buffered']
    #allocation24 [shape = 's32[1]{0}', space=sflag, size = 0x4, scoped, tag = 'scoped memory for transformer_decoder_layer.1']
    #allocation25 [shape = 'u8[512]{0}', space=vmem, size = 0x400, scoped, tag = 'input window, operand 14, single buffered']
    #allocation26 [shape = 'u8[8192]{0}', space=vmem, size = 0x2000, scoped, tag = 'input window, operand 15, single buffered']
    #allocation27 [shape = 's32[1]{0}', space=sflag, size = 0x4, scoped, tag = 'scoped memory for transformer_decoder_layer.1']
    #allocation28 [shape = 'u8[512]{0}', space=vmem, size = 0x400, scoped, tag = 'input window, operand 16, single buffered']
    #allocation29 [shape = 'u8[8192]{0}', space=vmem, size = 0x2000, scoped, tag = 'input window, operand 17, single buffered']
    #allocation30 [shape = 's32[1]{0}', space=sflag, size = 0x4, scoped, tag = 'scoped memory for transformer_decoder_layer.1']
    #allocation31 [shape = 'u8[512]{0}', space=vmem, size = 0x400, scoped, tag = 'input window, operand 18, single buffered']
    #allocation32 [shape = 'u8[8192]{0}', space=vmem, size = 0x2000, scoped, tag = 'input window, operand 19, single buffered']
    #allocation33 [shape = 's32[1]{0}', space=sflag, size = 0x4, scoped, tag = 'scoped memory for transformer_decoder_layer.1']
    #allocation34 [shape = 'u8[512]{0}', space=vmem, size = 0x400, scoped, tag = 'input window, operand 20, single buffered']
    #allocation35 [shape = 'u8[8192]{0}', space=vmem, size = 0x2000, scoped, tag = 'input window, operand 21, single buffered']
    #allocation36 [shape = 's32[1]{0}', space=sflag, size = 0x4, scoped, tag = 'scoped memory for transformer_decoder_layer.1']
    #allocation37 [shape = 'u8[512]{0}', space=vmem, size = 0x400, scoped, tag = 'input window, operand 22, single buffered']
    #allocation38 [shape = 'u8[512]{0}', space=vmem, size = 0x400, scoped, tag = 'input window, operand 23, single buffered']
    #allocation39 [shape = 's32[1]{0}', space=sflag, size = 0x4, scoped, tag = 'scoped memory for transformer_decoder_layer.1']
    #allocation40 [shape = 'u8[512]{0}', space=vmem, size = 0x400, scoped, tag = 'input window, operand 24, single buffered']
    #allocation41 [shape = 'u8[8192]{0}', space=vmem, size = 0x2000, scoped, tag = 'input window, operand 25, single buffered']
    #allocation42 [shape = 's32[1]{0}', space=sflag, size = 0x4, scoped, tag = 'scoped memory for transformer_decoder_layer.1']
    #allocation43 [shape = 'u8[512]{0}', space=vmem, size = 0x400, scoped, tag = 'input window, operand 26, single buffered']
    #allocation44 [shape = 'u8[16384]{0}', space=vmem, size = 0x4000, scoped, tag = 'input window, operand 27, single buffered']
    #allocation45 [shape = 's32[1]{0}', space=sflag, size = 0x4, scoped, tag = 'scoped memory for transformer_decoder_layer.1']
    #allocation46 [shape = 'u8[512]{0}', space=vmem, size = 0x400, scoped, tag = 'input window, operand 28, single buffered']
    #allocation47 [shape = 'u8[512]{0}', space=vmem, size = 0x400, scoped, tag = 'input window, operand 29, single buffered']
    #allocation48 [shape = 's32[1]{0}', space=sflag, size = 0x4, scoped, tag = 'scoped memory for transformer_decoder_layer.1']
    #allocation49 [shape = 'u8[512]{0}', space=vmem, size = 0x400, scoped, tag = 'input window, operand 30, single buffered']
    #allocation50 [shape = 'u8[8192]{0}', space=vmem, size = 0x2000, scoped, tag = 'output window, operand 0']
    %68 = vsyncpa [#allocation3], 0
    %s69 = scalar_lea.sflag [#allocation3], 1
    %70 = vsyncpa %s69, 0
    %71 = vsyncpa [#allocation6], 0
    %s72 = scalar_lea.sflag [#allocation6], 1
    %73 = vsyncpa %s72, 0
    %74 = vsyncpa [#allocation9], 0
    %s75 = scalar_lea.sflag [#allocation9], 1
    %76 = vsyncpa %s75, 0
    %77 = vsyncpa [#allocation12], 0
    %78 = vsyncpa [#allocation15], 0
    %79 = vsyncpa [#allocation18], 0
    %80 = vsyncpa [#allocation21], 0
    %81 = vsyncpa [#allocation24], 0
    %82 = vsyncpa [#allocation27], 0
    %83 = vsyncpa [#allocation30], 0
    %84 = vsyncpa [#allocation33], 0
    %85 = vsyncpa [#allocation36], 0
    %86 = vsyncpa [#allocation39], 0
    %87 = vsyncpa [#allocation42], 0
    %88 = vsyncpa [#allocation45], 0
    %89 = vsyncpa [#allocation48], 0
    %90 = vsyncpa [#allocation4], 0
    %s91 = scalar_lea.sflag [#allocation4], 1
    %92 = vsyncpa %s91, 0
    loop: start=0, step=1, limit=4
    $region2: #{transformer_decoder_layer.1} parent=1 // loop_pre_header
      _
    $region3: #{transformer_decoder_layer.1} parent=1 // loop_header
      %s94 = sphi 0, %s98
      %p95 = scmp.ge.s32.totalorder %s94, 4
      %s104 = sphi 0, %s106
      %s107 = sphi 0, %s104
      %s108 = sphi 0, %s107
      %s124 = sphi 0, %s108
      %s130 = sphi 0, %s132
      %s133 = sphi 0, %s130
      %s134 = sphi 0, %s133
      %s150 = sphi 0, %s134
      %s156 = sphi 0, %s158
      %s159 = sphi 0, %s156
      %s160 = sphi 0, %s159
      %s176 = sphi 0, %s160
      %s182 = sphi 0, %s184
      %s185 = sphi 0, %s182
      %s186 = sphi 0, %s185
      %s202 = sphi 0, %s186
      %s208 = sphi 0, %s210
      %s211 = sphi 0, %s208
      %s212 = sphi 0, %s211
      %s228 = sphi 0, %s212
      %s232 = sphi 0, %s232
      %s234 = sphi 0, %s232
      %s235 = sphi 0, %s234
      %s249 = sphi 0, %s235
      %s253 = sphi 0, %s253
      %s255 = sphi 0, %s253
      %s256 = sphi 0, %s255
      %s270 = sphi 0, %s256
      %s274 = sphi 0, %s274
      %s276 = sphi 0, %s274
      %s277 = sphi 0, %s276
      %s291 = sphi 0, %s277
      %s295 = sphi 0, %s295
      %s297 = sphi 0, %s295
      %s298 = sphi 0, %s297
      %s312 = sphi 0, %s298
      %s316 = sphi 0, %s316
      %s318 = sphi 0, %s316
      %s319 = sphi 0, %s318
      %s333 = sphi 0, %s319
      %s337 = sphi 0, %s337
      %s339 = sphi 0, %s337
      %s340 = sphi 0, %s339
      %s354 = sphi 0, %s340
      %s358 = sphi 0, %s358
      %s360 = sphi 0, %s358
      %s361 = sphi 0, %s360
      %s375 = sphi 0, %s361
      %s379 = sphi 0, %s379
      %s381 = sphi 0, %s379
      %s382 = sphi 0, %s381
      %s396 = sphi 0, %s382
      %s400 = sphi 0, %s400
      %s402 = sphi 0, %s400
      %s403 = sphi 0, %s402
      %s417 = sphi 0, %s403
      %s421 = sphi 0, %s421
      %s423 = sphi 0, %s421
      %s424 = sphi 0, %s423
      %s438 = sphi 0, %s424
      %s442 = sphi 0, %s442
      %s444 = sphi 0, %s442
      %s445 = sphi 0, %s444
      %s459 = sphi 0, %s445
      %s463 = sphi 0, %s463
      %s465 = sphi 0, %s463
      %s466 = sphi 0, %s465
      %s480 = sphi 0, %s466
      %s484 = sphi 0, %s484
      %s486 = sphi 0, %s484
      %s487 = sphi 0, %s486
      %s501 = sphi 0, %s487
      %s505 = sphi 0, %s505
      %s507 = sphi 0, %s505
      %s508 = sphi 0, %s507
      %s522 = sphi 0, %s508
      %s526 = sphi 0, %s526
      %s528 = sphi 0, %s526
      %s529 = sphi 0, %s528
      %s543 = sphi 0, %s529
      %s547 = sphi 0, %s547
      %s549 = sphi 0, %s547
      %s550 = sphi 0, %s549
      %s564 = sphi 0, %s550
      %s568 = sphi 0, %s568
      %s570 = sphi 0, %s568
      %s571 = sphi 0, %s570
      %s585 = sphi 0, %s571
      %s589 = sphi 0, %s589
      %s591 = sphi 0, %s589
      %s592 = sphi 0, %s591
      %s606 = sphi 0, %s592
      %s610 = sphi 0, %s610
      %s612 = sphi 0, %s610
      %s613 = sphi 0, %s612
      %s627 = sphi 0, %s613
      %s631 = sphi 0, %s631
      %s633 = sphi 0, %s631
      %s634 = sphi 0, %s633
      %s648 = sphi 0, %s634
      %s652 = sphi 0, %s652
      %s654 = sphi 0, %s652
      %s655 = sphi 0, %s654
      %s669 = sphi 0, %s655
      %s673 = sphi 0, %s673
      %s675 = sphi 0, %s673
      %s676 = sphi 0, %s675
      %s690 = sphi 0, %s676
      %s694 = sphi 0, %s694
      %s696 = sphi 0, %s694
      %s697 = sphi 0, %s696
      %s711 = sphi 0, %s697
      %s715 = sphi 0, %s715
      %s717 = sphi 0, %s715
      %s718 = sphi 0, %s717
      %s732 = sphi 0, %s718
      %s736 = sphi 0, %s736
      %s738 = sphi 0, %s736
      %s739 = sphi 0, %s738
      %s753 = sphi 0, %s739
      %s757 = sphi 0, %s757
      %s759 = sphi 0, %s757
      %s760 = sphi 0, %s759
      %s774 = sphi 0, %s760
      %s780 = sphi 0, %s782
      %s783 = sphi 0, %s780
      %s784 = sphi 0, %s783
      %s800 = sphi 0, %s784
    $region4: #{transformer_decoder_layer.1} parent=1 // loop_header_branch
      %97 = sbr.rel (%p95) target = $region8
    $region5: #{transformer_decoder_layer.1} parent=1 // loop_body
      %s99 = ssub.s32 %s94, 1
      %s100 = ssub.s32 %s94, 2
      %s101 = sadd.s32 %s94, 1
      %s102 = ssub.s32 %s94, %s101
      %p103 = scmp.eq.s32.totalorder %s102, 0
      %s105 = sadd.s32 %s104, 1
      %s106 = scalar_select %p103, %s104, %s105
      %p109 = pneg %p103
      %p110 = scmp.eq.s32.totalorder %s94, 1
      %p111 = por %p109, %p110
      %p112 = scmp.ne.s32.totalorder %s104, %s107
      %p113 = scmp.eq.s32.totalorder %s94, 0
      %p114 = por %p112, %p113
      %p115 = scmp.ne.s32.totalorder %s104, %s107
      %p116 = scmp.eq.s32.totalorder %s99, 1
      %p117 = por %p115, %p116
      %p118 = scmp.ne.s32.totalorder %s107, %s108
      %p119 = scmp.eq.s32.totalorder %s99, 0
      %p120 = por %p118, %p119
      %p121 = scmp.ne.s32.totalorder %s107, %s108
      %p122 = scmp.eq.s32.totalorder %s100, 1
      %p123 = por %p121, %p122
      %p125 = scmp.ne.s32.totalorder %s108, %s124
      %p126 = scmp.eq.s32.totalorder %s100, 0
      %p127 = por %p125, %p126
      %s128 = ssub.s32 %s94, %s101
      %p129 = scmp.eq.s32.totalorder %s128, 0
      %s131 = sadd.s32 %s130, 1
      %s132 = scalar_select %p129, %s130, %s131
      %p135 = pneg %p129
      %p136 = scmp.eq.s32.totalorder %s94, 1
      %p137 = por %p135, %p136
      %p138 = scmp.ne.s32.totalorder %s130, %s133
      %p139 = scmp.eq.s32.totalorder %s94, 0
      %p140 = por %p138, %p139
      %p141 = scmp.ne.s32.totalorder %s130, %s133
      %p142 = scmp.eq.s32.totalorder %s99, 1
      %p143 = por %p141, %p142
      %p144 = scmp.ne.s32.totalorder %s133, %s134
      %p145 = scmp.eq.s32.totalorder %s99, 0
      %p146 = por %p144, %p145
      %p147 = scmp.ne.s32.totalorder %s133, %s134
      %p148 = scmp.eq.s32.totalorder %s100, 1
      %p149 = por %p147, %p148
      %p151 = scmp.ne.s32.totalorder %s134, %s150
      %p152 = scmp.eq.s32.totalorder %s100, 0
      %p153 = por %p151, %p152
      %s154 = ssub.s32 %s94, %s101
      %p155 = scmp.eq.s32.totalorder %s154, 0
      %s157 = sadd.s32 %s156, 1
      %s158 = scalar_select %p155, %s156, %s157
      %p161 = pneg %p155
      %p162 = scmp.eq.s32.totalorder %s94, 1
      %p163 = por %p161, %p162
      %p164 = scmp.ne.s32.totalorder %s156, %s159
      %p165 = scmp.eq.s32.totalorder %s94, 0
      %p166 = por %p164, %p165
      %p167 = scmp.ne.s32.totalorder %s156, %s159
      %p168 = scmp.eq.s32.totalorder %s99, 1
      %p169 = por %p167, %p168
      %p170 = scmp.ne.s32.totalorder %s159, %s160
      %p171 = scmp.eq.s32.totalorder %s99, 0
      %p172 = por %p170, %p171
      %p173 = scmp.ne.s32.totalorder %s159, %s160
      %p174 = scmp.eq.s32.totalorder %s100, 1
      %p175 = por %p173, %p174
      %p177 = scmp.ne.s32.totalorder %s160, %s176
      %p178 = scmp.eq.s32.totalorder %s100, 0
      %p179 = por %p177, %p178
      %s180 = ssub.s32 %s94, %s101
      %p181 = scmp.eq.s32.totalorder %s180, 0
      %s183 = sadd.s32 %s182, 1
      %s184 = scalar_select %p181, %s182, %s183
      %p187 = pneg %p181
      %p188 = scmp.eq.s32.totalorder %s94, 1
      %p189 = por %p187, %p188
      %p190 = scmp.ne.s32.totalorder %s182, %s185
      %p191 = scmp.eq.s32.totalorder %s94, 0
      %p192 = por %p190, %p191
      %p193 = scmp.ne.s32.totalorder %s182, %s185
      %p194 = scmp.eq.s32.totalorder %s99, 1
      %p195 = por %p193, %p194
      %p196 = scmp.ne.s32.totalorder %s185, %s186
      %p197 = scmp.eq.s32.totalorder %s99, 0
      %p198 = por %p196, %p197
      %p199 = scmp.ne.s32.totalorder %s185, %s186
      %p200 = scmp.eq.s32.totalorder %s100, 1
      %p201 = por %p199, %p200
      %p203 = scmp.ne.s32.totalorder %s186, %s202
      %p204 = scmp.eq.s32.totalorder %s100, 0
      %p205 = por %p203, %p204
      %s206 = ssub.s32 %s94, %s101
      %p207 = scmp.eq.s32.totalorder %s206, 0
      %s209 = sadd.s32 %s208, 1
      %s210 = scalar_select %p207, %s208, %s209
      %p213 = pneg %p207
      %p214 = scmp.eq.s32.totalorder %s94, 1
      %p215 = por %p213, %p214
      %p216 = scmp.ne.s32.totalorder %s208, %s211
      %p217 = scmp.eq.s32.totalorder %s94, 0
      %p218 = por %p216, %p217
      %p219 = scmp.ne.s32.totalorder %s208, %s211
      %p220 = scmp.eq.s32.totalorder %s99, 1
      %p221 = por %p219, %p220
      %p222 = scmp.ne.s32.totalorder %s211, %s212
      %p223 = scmp.eq.s32.totalorder %s99, 0
      %p224 = por %p222, %p223
      %p225 = scmp.ne.s32.totalorder %s211, %s212
      %p226 = scmp.eq.s32.totalorder %s100, 1
      %p227 = por %p225, %p226
      %p229 = scmp.ne.s32.totalorder %s212, %s228
      %p230 = scmp.eq.s32.totalorder %s100, 0
      %p231 = por %p229, %p230
      %s233 = sadd.s32 %s232, 1
      %p236 = scmp.eq.s32.totalorder %s94, 1
      %p237 = scmp.ne.s32.totalorder %s232, %s234
      %p238 = scmp.eq.s32.totalorder %s94, 0
      %p239 = por %p237, %p238
      %p240 = scmp.ne.s32.totalorder %s232, %s234
      %p241 = scmp.eq.s32.totalorder %s99, 1
      %p242 = por %p240, %p241
      %p243 = scmp.ne.s32.totalorder %s234, %s235
      %p244 = scmp.eq.s32.totalorder %s99, 0
      %p245 = por %p243, %p244
      %p246 = scmp.ne.s32.totalorder %s234, %s235
      %p247 = scmp.eq.s32.totalorder %s100, 1
      %p248 = por %p246, %p247
      %p250 = scmp.ne.s32.totalorder %s235, %s249
      %p251 = scmp.eq.s32.totalorder %s100, 0
      %p252 = por %p250, %p251
      %s254 = sadd.s32 %s253, 1
      %p257 = scmp.eq.s32.totalorder %s94, 1
      %p258 = scmp.ne.s32.totalorder %s253, %s255
      %p259 = scmp.eq.s32.totalorder %s94, 0
      %p260 = por %p258, %p259
      %p261 = scmp.ne.s32.totalorder %s253, %s255
      %p262 = scmp.eq.s32.totalorder %s99, 1
      %p263 = por %p261, %p262
      %p264 = scmp.ne.s32.totalorder %s255, %s256
      %p265 = scmp.eq.s32.totalorder %s99, 0
      %p266 = por %p264, %p265
      %p267 = scmp.ne.s32.totalorder %s255, %s256
      %p268 = scmp.eq.s32.totalorder %s100, 1
      %p269 = por %p267, %p268
      %p271 = scmp.ne.s32.totalorder %s256, %s270
      %p272 = scmp.eq.s32.totalorder %s100, 0
      %p273 = por %p271, %p272
      %s275 = sadd.s32 %s274, 1
      %p278 = scmp.eq.s32.totalorder %s94, 1
      %p279 = scmp.ne.s32.totalorder %s274, %s276
      %p280 = scmp.eq.s32.totalorder %s94, 0
      %p281 = por %p279, %p280
      %p282 = scmp.ne.s32.totalorder %s274, %s276
      %p283 = scmp.eq.s32.totalorder %s99, 1
      %p284 = por %p282, %p283
      %p285 = scmp.ne.s32.totalorder %s276, %s277
      %p286 = scmp.eq.s32.totalorder %s99, 0
      %p287 = por %p285, %p286
      %p288 = scmp.ne.s32.totalorder %s276, %s277
      %p289 = scmp.eq.s32.totalorder %s100, 1
      %p290 = por %p288, %p289
      %p292 = scmp.ne.s32.totalorder %s277, %s291
      %p293 = scmp.eq.s32.totalorder %s100, 0
      %p294 = por %p292, %p293
      %s296 = sadd.s32 %s295, 1
      %p299 = scmp.eq.s32.totalorder %s94, 1
      %p300 = scmp.ne.s32.totalorder %s295, %s297
      %p301 = scmp.eq.s32.totalorder %s94, 0
      %p302 = por %p300, %p301
      %p303 = scmp.ne.s32.totalorder %s295, %s297
      %p304 = scmp.eq.s32.totalorder %s99, 1
      %p305 = por %p303, %p304
      %p306 = scmp.ne.s32.totalorder %s297, %s298
      %p307 = scmp.eq.s32.totalorder %s99, 0
      %p308 = por %p306, %p307
      %p309 = scmp.ne.s32.totalorder %s297, %s298
      %p310 = scmp.eq.s32.totalorder %s100, 1
      %p311 = por %p309, %p310
      %p313 = scmp.ne.s32.totalorder %s298, %s312
      %p314 = scmp.eq.s32.totalorder %s100, 0
      %p315 = por %p313, %p314
      %s317 = sadd.s32 %s316, 1
      %p320 = scmp.eq.s32.totalorder %s94, 1
      %p321 = scmp.ne.s32.totalorder %s316, %s318
      %p322 = scmp.eq.s32.totalorder %s94, 0
      %p323 = por %p321, %p322
      %p324 = scmp.ne.s32.totalorder %s316, %s318
      %p325 = scmp.eq.s32.totalorder %s99, 1
      %p326 = por %p324, %p325
      %p327 = scmp.ne.s32.totalorder %s318, %s319
      %p328 = scmp.eq.s32.totalorder %s99, 0
      %p329 = por %p327, %p328
      %p330 = scmp.ne.s32.totalorder %s318, %s319
      %p331 = scmp.eq.s32.totalorder %s100, 1
      %p332 = por %p330, %p331
      %p334 = scmp.ne.s32.totalorder %s319, %s333
      %p335 = scmp.eq.s32.totalorder %s100, 0
      %p336 = por %p334, %p335
      %s338 = sadd.s32 %s337, 1
      %p341 = scmp.eq.s32.totalorder %s94, 1
      %p342 = scmp.ne.s32.totalorder %s337, %s339
      %p343 = scmp.eq.s32.totalorder %s94, 0
      %p344 = por %p342, %p343
      %p345 = scmp.ne.s32.totalorder %s337, %s339
      %p346 = scmp.eq.s32.totalorder %s99, 1
      %p347 = por %p345, %p346
      %p348 = scmp.ne.s32.totalorder %s339, %s340
      %p349 = scmp.eq.s32.totalorder %s99, 0
      %p350 = por %p348, %p349
      %p351 = scmp.ne.s32.totalorder %s339, %s340
      %p352 = scmp.eq.s32.totalorder %s100, 1
      %p353 = por %p351, %p352
      %p355 = scmp.ne.s32.totalorder %s340, %s354
      %p356 = scmp.eq.s32.totalorder %s100, 0
      %p357 = por %p355, %p356
      %s359 = sadd.s32 %s358, 1
      %p362 = scmp.eq.s32.totalorder %s94, 1
      %p363 = scmp.ne.s32.totalorder %s358, %s360
      %p364 = scmp.eq.s32.totalorder %s94, 0
      %p365 = por %p363, %p364
      %p366 = scmp.ne.s32.totalorder %s358, %s360
      %p367 = scmp.eq.s32.totalorder %s99, 1
      %p368 = por %p366, %p367
      %p369 = scmp.ne.s32.totalorder %s360, %s361
      %p370 = scmp.eq.s32.totalorder %s99, 0
      %p371 = por %p369, %p370
      %p372 = scmp.ne.s32.totalorder %s360, %s361
      %p373 = scmp.eq.s32.totalorder %s100, 1
      %p374 = por %p372, %p373
      %p376 = scmp.ne.s32.totalorder %s361, %s375
      %p377 = scmp.eq.s32.totalorder %s100, 0
      %p378 = por %p376, %p377
      %s380 = sadd.s32 %s379, 1
      %p383 = scmp.eq.s32.totalorder %s94, 1
      %p384 = scmp.ne.s32.totalorder %s379, %s381
      %p385 = scmp.eq.s32.totalorder %s94, 0
      %p386 = por %p384, %p385
      %p387 = scmp.ne.s32.totalorder %s379, %s381
      %p388 = scmp.eq.s32.totalorder %s99, 1
      %p389 = por %p387, %p388
      %p390 = scmp.ne.s32.totalorder %s381, %s382
      %p391 = scmp.eq.s32.totalorder %s99, 0
      %p392 = por %p390, %p391
      %p393 = scmp.ne.s32.totalorder %s381, %s382
      %p394 = scmp.eq.s32.totalorder %s100, 1
      %p395 = por %p393, %p394
      %p397 = scmp.ne.s32.totalorder %s382, %s396
      %p398 = scmp.eq.s32.totalorder %s100, 0
      %p399 = por %p397, %p398
      %s401 = sadd.s32 %s400, 1
      %p404 = scmp.eq.s32.totalorder %s94, 1
      %p405 = scmp.ne.s32.totalorder %s400, %s402
      %p406 = scmp.eq.s32.totalorder %s94, 0
      %p407 = por %p405, %p406
      %p408 = scmp.ne.s32.totalorder %s400, %s402
      %p409 = scmp.eq.s32.totalorder %s99, 1
      %p410 = por %p408, %p409
      %p411 = scmp.ne.s32.totalorder %s402, %s403
      %p412 = scmp.eq.s32.totalorder %s99, 0
      %p413 = por %p411, %p412
      %p414 = scmp.ne.s32.totalorder %s402, %s403
      %p415 = scmp.eq.s32.totalorder %s100, 1
      %p416 = por %p414, %p415
      %p418 = scmp.ne.s32.totalorder %s403, %s417
      %p419 = scmp.eq.s32.totalorder %s100, 0
      %p420 = por %p418, %p419
      %s422 = sadd.s32 %s421, 1
      %p425 = scmp.eq.s32.totalorder %s94, 1
      %p426 = scmp.ne.s32.totalorder %s421, %s423
      %p427 = scmp.eq.s32.totalorder %s94, 0
      %p428 = por %p426, %p427
      %p429 = scmp.ne.s32.totalorder %s421, %s423
      %p430 = scmp.eq.s32.totalorder %s99, 1
      %p431 = por %p429, %p430
      %p432 = scmp.ne.s32.totalorder %s423, %s424
      %p433 = scmp.eq.s32.totalorder %s99, 0
      %p434 = por %p432, %p433
      %p435 = scmp.ne.s32.totalorder %s423, %s424
      %p436 = scmp.eq.s32.totalorder %s100, 1
      %p437 = por %p435, %p436
      %p439 = scmp.ne.s32.totalorder %s424, %s438
      %p440 = scmp.eq.s32.totalorder %s100, 0
      %p441 = por %p439, %p440
      %s443 = sadd.s32 %s442, 1
      %p446 = scmp.eq.s32.totalorder %s94, 1
      %p447 = scmp.ne.s32.totalorder %s442, %s444
      %p448 = scmp.eq.s32.totalorder %s94, 0
      %p449 = por %p447, %p448
      %p450 = scmp.ne.s32.totalorder %s442, %s444
      %p451 = scmp.eq.s32.totalorder %s99, 1
      %p452 = por %p450, %p451
      %p453 = scmp.ne.s32.totalorder %s444, %s445
      %p454 = scmp.eq.s32.totalorder %s99, 0
      %p455 = por %p453, %p454
      %p456 = scmp.ne.s32.totalorder %s444, %s445
      %p457 = scmp.eq.s32.totalorder %s100, 1
      %p458 = por %p456, %p457
      %p460 = scmp.ne.s32.totalorder %s445, %s459
      %p461 = scmp.eq.s32.totalorder %s100, 0
      %p462 = por %p460, %p461
      %s464 = sadd.s32 %s463, 1
      %p467 = scmp.eq.s32.totalorder %s94, 1
      %p468 = scmp.ne.s32.totalorder %s463, %s465
      %p469 = scmp.eq.s32.totalorder %s94, 0
      %p470 = por %p468, %p469
      %p471 = scmp.ne.s32.totalorder %s463, %s465
      %p472 = scmp.eq.s32.totalorder %s99, 1
      %p473 = por %p471, %p472
      %p474 = scmp.ne.s32.totalorder %s465, %s466
      %p475 = scmp.eq.s32.totalorder %s99, 0
      %p476 = por %p474, %p475
      %p477 = scmp.ne.s32.totalorder %s465, %s466
      %p478 = scmp.eq.s32.totalorder %s100, 1
      %p479 = por %p477, %p478
      %p481 = scmp.ne.s32.totalorder %s466, %s480
      %p482 = scmp.eq.s32.totalorder %s100, 0
      %p483 = por %p481, %p482
      %s485 = sadd.s32 %s484, 1
      %p488 = scmp.eq.s32.totalorder %s94, 1
      %p489 = scmp.ne.s32.totalorder %s484, %s486
      %p490 = scmp.eq.s32.totalorder %s94, 0
      %p491 = por %p489, %p490
      %p492 = scmp.ne.s32.totalorder %s484, %s486
      %p493 = scmp.eq.s32.totalorder %s99, 1
      %p494 = por %p492, %p493
      %p495 = scmp.ne.s32.totalorder %s486, %s487
      %p496 = scmp.eq.s32.totalorder %s99, 0
      %p497 = por %p495, %p496
      %p498 = scmp.ne.s32.totalorder %s486, %s487
      %p499 = scmp.eq.s32.totalorder %s100, 1
      %p500 = por %p498, %p499
      %p502 = scmp.ne.s32.totalorder %s487, %s501
      %p503 = scmp.eq.s32.totalorder %s100, 0
      %p504 = por %p502, %p503
      %s506 = sadd.s32 %s505, 1
      %p509 = scmp.eq.s32.totalorder %s94, 1
      %p510 = scmp.ne.s32.totalorder %s505, %s507
      %p511 = scmp.eq.s32.totalorder %s94, 0
      %p512 = por %p510, %p511
      %p513 = scmp.ne.s32.totalorder %s505, %s507
      %p514 = scmp.eq.s32.totalorder %s99, 1
      %p515 = por %p513, %p514
      %p516 = scmp.ne.s32.totalorder %s507, %s508
      %p517 = scmp.eq.s32.totalorder %s99, 0
      %p518 = por %p516, %p517
      %p519 = scmp.ne.s32.totalorder %s507, %s508
      %p520 = scmp.eq.s32.totalorder %s100, 1
      %p521 = por %p519, %p520
      %p523 = scmp.ne.s32.totalorder %s508, %s522
      %p524 = scmp.eq.s32.totalorder %s100, 0
      %p525 = por %p523, %p524
      %s527 = sadd.s32 %s526, 1
      %p530 = scmp.eq.s32.totalorder %s94, 1
      %p531 = scmp.ne.s32.totalorder %s526, %s528
      %p532 = scmp.eq.s32.totalorder %s94, 0
      %p533 = por %p531, %p532
      %p534 = scmp.ne.s32.totalorder %s526, %s528
      %p535 = scmp.eq.s32.totalorder %s99, 1
      %p536 = por %p534, %p535
      %p537 = scmp.ne.s32.totalorder %s528, %s529
      %p538 = scmp.eq.s32.totalorder %s99, 0
      %p539 = por %p537, %p538
      %p540 = scmp.ne.s32.totalorder %s528, %s529
      %p541 = scmp.eq.s32.totalorder %s100, 1
      %p542 = por %p540, %p541
      %p544 = scmp.ne.s32.totalorder %s529, %s543
      %p545 = scmp.eq.s32.totalorder %s100, 0
      %p546 = por %p544, %p545
      %s548 = sadd.s32 %s547, 1
      %p551 = scmp.eq.s32.totalorder %s94, 1
      %p552 = scmp.ne.s32.totalorder %s547, %s549
      %p553 = scmp.eq.s32.totalorder %s94, 0
      %p554 = por %p552, %p553
      %p555 = scmp.ne.s32.totalorder %s547, %s549
      %p556 = scmp.eq.s32.totalorder %s99, 1
      %p557 = por %p555, %p556
      %p558 = scmp.ne.s32.totalorder %s549, %s550
      %p559 = scmp.eq.s32.totalorder %s99, 0
      %p560 = por %p558, %p559
      %p561 = scmp.ne.s32.totalorder %s549, %s550
      %p562 = scmp.eq.s32.totalorder %s100, 1
      %p563 = por %p561, %p562
      %p565 = scmp.ne.s32.totalorder %s550, %s564
      %p566 = scmp.eq.s32.totalorder %s100, 0
      %p567 = por %p565, %p566
      %s569 = sadd.s32 %s568, 1
      %p572 = scmp.eq.s32.totalorder %s94, 1
      %p573 = scmp.ne.s32.totalorder %s568, %s570
      %p574 = scmp.eq.s32.totalorder %s94, 0
      %p575 = por %p573, %p574
      %p576 = scmp.ne.s32.totalorder %s568, %s570
      %p577 = scmp.eq.s32.totalorder %s99, 1
      %p578 = por %p576, %p577
      %p579 = scmp.ne.s32.totalorder %s570, %s571
      %p580 = scmp.eq.s32.totalorder %s99, 0
      %p581 = por %p579, %p580
      %p582 = scmp.ne.s32.totalorder %s570, %s571
      %p583 = scmp.eq.s32.totalorder %s100, 1
      %p584 = por %p582, %p583
      %p586 = scmp.ne.s32.totalorder %s571, %s585
      %p587 = scmp.eq.s32.totalorder %s100, 0
      %p588 = por %p586, %p587
      %s590 = sadd.s32 %s589, 1
      %p593 = scmp.eq.s32.totalorder %s94, 1
      %p594 = scmp.ne.s32.totalorder %s589, %s591
      %p595 = scmp.eq.s32.totalorder %s94, 0
      %p596 = por %p594, %p595
      %p597 = scmp.ne.s32.totalorder %s589, %s591
      %p598 = scmp.eq.s32.totalorder %s99, 1
      %p599 = por %p597, %p598
      %p600 = scmp.ne.s32.totalorder %s591, %s592
      %p601 = scmp.eq.s32.totalorder %s99, 0
      %p602 = por %p600, %p601
      %p603 = scmp.ne.s32.totalorder %s591, %s592
      %p604 = scmp.eq.s32.totalorder %s100, 1
      %p605 = por %p603, %p604
      %p607 = scmp.ne.s32.totalorder %s592, %s606
      %p608 = scmp.eq.s32.totalorder %s100, 0
      %p609 = por %p607, %p608
      %s611 = sadd.s32 %s610, 1
      %p614 = scmp.eq.s32.totalorder %s94, 1
      %p615 = scmp.ne.s32.totalorder %s610, %s612
      %p616 = scmp.eq.s32.totalorder %s94, 0
      %p617 = por %p615, %p616
      %p618 = scmp.ne.s32.totalorder %s610, %s612
      %p619 = scmp.eq.s32.totalorder %s99, 1
      %p620 = por %p618, %p619
      %p621 = scmp.ne.s32.totalorder %s612, %s613
      %p622 = scmp.eq.s32.totalorder %s99, 0
      %p623 = por %p621, %p622
      %p624 = scmp.ne.s32.totalorder %s612, %s613
      %p625 = scmp.eq.s32.totalorder %s100, 1
      %p626 = por %p624, %p625
      %p628 = scmp.ne.s32.totalorder %s613, %s627
      %p629 = scmp.eq.s32.totalorder %s100, 0
      %p630 = por %p628, %p629
      %s632 = sadd.s32 %s631, 1
      %p635 = scmp.eq.s32.totalorder %s94, 1
      %p636 = scmp.ne.s32.totalorder %s631, %s633
      %p637 = scmp.eq.s32.totalorder %s94, 0
      %p638 = por %p636, %p637
      %p639 = scmp.ne.s32.totalorder %s631, %s633
      %p640 = scmp.eq.s32.totalorder %s99, 1
      %p641 = por %p639, %p640
      %p642 = scmp.ne.s32.totalorder %s633, %s634
      %p643 = scmp.eq.s32.totalorder %s99, 0
      %p644 = por %p642, %p643
      %p645 = scmp.ne.s32.totalorder %s633, %s634
      %p646 = scmp.eq.s32.totalorder %s100, 1
      %p647 = por %p645, %p646
      %p649 = scmp.ne.s32.totalorder %s634, %s648
      %p650 = scmp.eq.s32.totalorder %s100, 0
      %p651 = por %p649, %p650
      %s653 = sadd.s32 %s652, 1
      %p656 = scmp.eq.s32.totalorder %s94, 1
      %p657 = scmp.ne.s32.totalorder %s652, %s654
      %p658 = scmp.eq.s32.totalorder %s94, 0
      %p659 = por %p657, %p658
      %p660 = scmp.ne.s32.totalorder %s652, %s654
      %p661 = scmp.eq.s32.totalorder %s99, 1
      %p662 = por %p660, %p661
      %p663 = scmp.ne.s32.totalorder %s654, %s655
      %p664 = scmp.eq.s32.totalorder %s99, 0
      %p665 = por %p663, %p664
      %p666 = scmp.ne.s32.totalorder %s654, %s655
      %p667 = scmp.eq.s32.totalorder %s100, 1
      %p668 = por %p666, %p667
      %p670 = scmp.ne.s32.totalorder %s655, %s669
      %p671 = scmp.eq.s32.totalorder %s100, 0
      %p672 = por %p670, %p671
      %s674 = sadd.s32 %s673, 1
      %p677 = scmp.eq.s32.totalorder %s94, 1
      %p678 = scmp.ne.s32.totalorder %s673, %s675
      %p679 = scmp.eq.s32.totalorder %s94, 0
      %p680 = por %p678, %p679
      %p681 = scmp.ne.s32.totalorder %s673, %s675
      %p682 = scmp.eq.s32.totalorder %s99, 1
      %p683 = por %p681, %p682
      %p684 = scmp.ne.s32.totalorder %s675, %s676
      %p685 = scmp.eq.s32.totalorder %s99, 0
      %p686 = por %p684, %p685
      %p687 = scmp.ne.s32.totalorder %s675, %s676
      %p688 = scmp.eq.s32.totalorder %s100, 1
      %p689 = por %p687, %p688
      %p691 = scmp.ne.s32.totalorder %s676, %s690
      %p692 = scmp.eq.s32.totalorder %s100, 0
      %p693 = por %p691, %p692
      %s695 = sadd.s32 %s694, 1
      %p698 = scmp.eq.s32.totalorder %s94, 1
      %p699 = scmp.ne.s32.totalorder %s694, %s696
      %p700 = scmp.eq.s32.totalorder %s94, 0
      %p701 = por %p699, %p700
      %p702 = scmp.ne.s32.totalorder %s694, %s696
      %p703 = scmp.eq.s32.totalorder %s99, 1
      %p704 = por %p702, %p703
      %p705 = scmp.ne.s32.totalorder %s696, %s697
      %p706 = scmp.eq.s32.totalorder %s99, 0
      %p707 = por %p705, %p706
      %p708 = scmp.ne.s32.totalorder %s696, %s697
      %p709 = scmp.eq.s32.totalorder %s100, 1
      %p710 = por %p708, %p709
      %p712 = scmp.ne.s32.totalorder %s697, %s711
      %p713 = scmp.eq.s32.totalorder %s100, 0
      %p714 = por %p712, %p713
      %s716 = sadd.s32 %s715, 1
      %p719 = scmp.eq.s32.totalorder %s94, 1
      %p720 = scmp.ne.s32.totalorder %s715, %s717
      %p721 = scmp.eq.s32.totalorder %s94, 0
      %p722 = por %p720, %p721
      %p723 = scmp.ne.s32.totalorder %s715, %s717
      %p724 = scmp.eq.s32.totalorder %s99, 1
      %p725 = por %p723, %p724
      %p726 = scmp.ne.s32.totalorder %s717, %s718
      %p727 = scmp.eq.s32.totalorder %s99, 0
      %p728 = por %p726, %p727
      %p729 = scmp.ne.s32.totalorder %s717, %s718
      %p730 = scmp.eq.s32.totalorder %s100, 1
      %p731 = por %p729, %p730
      %p733 = scmp.ne.s32.totalorder %s718, %s732
      %p734 = scmp.eq.s32.totalorder %s100, 0
      %p735 = por %p733, %p734
      %s737 = sadd.s32 %s736, 1
      %p740 = scmp.eq.s32.totalorder %s94, 1
      %p741 = scmp.ne.s32.totalorder %s736, %s738
      %p742 = scmp.eq.s32.totalorder %s94, 0
      %p743 = por %p741, %p742
      %p744 = scmp.ne.s32.totalorder %s736, %s738
      %p745 = scmp.eq.s32.totalorder %s99, 1
      %p746 = por %p744, %p745
      %p747 = scmp.ne.s32.totalorder %s738, %s739
      %p748 = scmp.eq.s32.totalorder %s99, 0
      %p749 = por %p747, %p748
      %p750 = scmp.ne.s32.totalorder %s738, %s739
      %p751 = scmp.eq.s32.totalorder %s100, 1
      %p752 = por %p750, %p751
      %p754 = scmp.ne.s32.totalorder %s739, %s753
      %p755 = scmp.eq.s32.totalorder %s100, 0
      %p756 = por %p754, %p755
      %s758 = sadd.s32 %s757, 1
      %p761 = scmp.eq.s32.totalorder %s94, 1
      %p762 = scmp.ne.s32.totalorder %s757, %s759
      %p763 = scmp.eq.s32.totalorder %s94, 0
      %p764 = por %p762, %p763
      %p765 = scmp.ne.s32.totalorder %s757, %s759
      %p766 = scmp.eq.s32.totalorder %s99, 1
      %p767 = por %p765, %p766
      %p768 = scmp.ne.s32.totalorder %s759, %s760
      %p769 = scmp.eq.s32.totalorder %s99, 0
      %p770 = por %p768, %p769
      %p771 = scmp.ne.s32.totalorder %s759, %s760
      %p772 = scmp.eq.s32.totalorder %s100, 1
      %p773 = por %p771, %p772
      %p775 = scmp.ne.s32.totalorder %s760, %s774
      %p776 = scmp.eq.s32.totalorder %s100, 0
      %p777 = por %p775, %p776
      %s778 = ssub.s32 %s94, %s101
      %p779 = scmp.eq.s32.totalorder %s778, 0
      %s781 = sadd.s32 %s780, 1
      %s782 = scalar_select %p779, %s780, %s781
      %p785 = pneg %p779
      %p786 = scmp.eq.s32.totalorder %s94, 1
      %p787 = por %p785, %p786
      %p788 = scmp.ne.s32.totalorder %s780, %s783
      %p789 = scmp.eq.s32.totalorder %s94, 0
      %p790 = por %p788, %p789
      %p791 = scmp.ne.s32.totalorder %s780, %s783
      %p792 = scmp.eq.s32.totalorder %s99, 1
      %p793 = por %p791, %p792
      %p794 = scmp.ne.s32.totalorder %s783, %s784
      %p795 = scmp.eq.s32.totalorder %s99, 0
      %p796 = por %p794, %p795
      %p797 = scmp.ne.s32.totalorder %s783, %s784
      %p798 = scmp.eq.s32.totalorder %s100, 1
      %p799 = por %p797, %p798
      %p801 = scmp.ne.s32.totalorder %s784, %s800
      %p802 = scmp.eq.s32.totalorder %s100, 0
      %p803 = por %p801, %p802
      %p804 = scmp.le.s32.totalorder 1, %s94
      %p805 = scmp.lt.s32.totalorder %s94, 3
      %p806 = pnand %p804, %p805
      %p807 = pneg %p806
      // Predicated region
      $region9: #{transformer_decoder_layer.1} parent=5 // pred_check
        _
      $region10: #{transformer_decoder_layer.1} parent=5 // pred_check_branch
        %809 = sbr.rel (%p806) target = $region12
      $region11: #{transformer_decoder_layer.1} parent=5 // pred_region
        %s810 = ssub.s32 %s94, 1
        // Predicated region
        $region13: #{transformer_decoder_layer.1} parent=11 // pred_check
          %p811 = pneg %p245
        $region14: #{transformer_decoder_layer.1} parent=11 // pred_check_branch
          %813 = sbr.rel (%p811) target = $region16
        $region15: #{transformer_decoder_layer.1} parent=11 // pred_region
          %s815 = ssub.s32 256, 256
          %816 = vsyncadd [#allocation12], %s815
          %s817 = sshll.u32 [#allocation11], 4
          %s818 = int_to_ptr.vmem [resolvable:$true] %s817
          %823 = dma.hbm_to_vmem [thread:$0]  %s11, 256, %s818, [#allocation12], 64, 64, 4
        $region16: #{transformer_decoder_layer.1} parent=11 // pred_fallthru
          _
        // Predicated region
        $region17: #{transformer_decoder_layer.1} parent=11 // pred_check
          %p824 = pneg %p266
        $region18: #{transformer_decoder_layer.1} parent=11 // pred_check_branch
          %826 = sbr.rel (%p824) target = $region20
        $region19: #{transformer_decoder_layer.1} parent=11 // pred_region
          %s828 = ssub.s32 16, 16
          %829 = vsyncadd [#allocation12], %s828
          %s831 = sshll.u32 [#allocation13], 4
          %s832 = int_to_ptr.vmem [resolvable:$true] %s831
          %834 = dma.hbm_to_vmem [thread:$0]  %s13, 16, %s832, [#allocation12]
        $region20: #{transformer_decoder_layer.1} parent=11 // pred_fallthru
          _
        // Predicated region
        $region21: #{transformer_decoder_layer.1} parent=11 // pred_check
          %p835 = pneg %p287
        $region22: #{transformer_decoder_layer.1} parent=11 // pred_check_branch
          %837 = sbr.rel (%p835) target = $region24
        $region23: #{transformer_decoder_layer.1} parent=11 // pred_region
          %s839 = ssub.s32 256, 256
          %840 = vsyncadd [#allocation15], %s839
          %s841 = sshll.u32 [#allocation14], 4
          %s842 = int_to_ptr.vmem [resolvable:$true] %s841
          %847 = dma.hbm_to_vmem [thread:$0]  %s15, 256, %s842, [#allocation15], 64, 64, 4
        $region24: #{transformer_decoder_layer.1} parent=11 // pred_fallthru
          _
        // Predicated region
        $region25: #{transformer_decoder_layer.1} parent=11 // pred_check
          %p848 = pneg %p308
        $region26: #{transformer_decoder_layer.1} parent=11 // pred_check_branch
          %850 = sbr.rel (%p848) target = $region28
        $region27: #{transformer_decoder_layer.1} parent=11 // pred_region
          %s852 = ssub.s32 16, 16
          %853 = vsyncadd [#allocation15], %s852
          %s855 = sshll.u32 [#allocation16], 4
          %s856 = int_to_ptr.vmem [resolvable:$true] %s855
          %858 = dma.hbm_to_vmem [thread:$0]  %s17, 16, %s856, [#allocation15]
        $region28: #{transformer_decoder_layer.1} parent=11 // pred_fallthru
          _
        // Predicated region
        $region29: #{transformer_decoder_layer.1} parent=11 // pred_check
          %p859 = pneg %p329
        $region30: #{transformer_decoder_layer.1} parent=11 // pred_check_branch
          %861 = sbr.rel (%p859) target = $region32
        $region31: #{transformer_decoder_layer.1} parent=11 // pred_region
          %s863 = ssub.s32 256, 256
          %864 = vsyncadd [#allocation18], %s863
          %s865 = sshll.u32 [#allocation17], 4
          %s866 = int_to_ptr.vmem [resolvable:$true] %s865
          %871 = dma.hbm_to_vmem [thread:$0]  %s19, 256, %s866, [#allocation18], 64, 64, 4
        $region32: #{transformer_decoder_layer.1} parent=11 // pred_fallthru
          _
        // Predicated region
        $region33: #{transformer_decoder_layer.1} parent=11 // pred_check
          %p872 = pneg %p350
        $region34: #{transformer_decoder_layer.1} parent=11 // pred_check_branch
          %874 = sbr.rel (%p872) target = $region36
        $region35: #{transformer_decoder_layer.1} parent=11 // pred_region
          %s876 = ssub.s32 16, 16
          %877 = vsyncadd [#allocation18], %s876
          %s879 = sshll.u32 [#allocation19], 4
          %s880 = int_to_ptr.vmem [resolvable:$true] %s879
          %882 = dma.hbm_to_vmem [thread:$0]  %s21, 16, %s880, [#allocation18]
        $region36: #{transformer_decoder_layer.1} parent=11 // pred_fallthru
          _
        // Predicated region
        $region37: #{transformer_decoder_layer.1} parent=11 // pred_check
          %p883 = pneg %p371
        $region38: #{transformer_decoder_layer.1} parent=11 // pred_check_branch
          %885 = sbr.rel (%p883) target = $region40
        $region39: #{transformer_decoder_layer.1} parent=11 // pred_region
          %s887 = ssub.s32 16, 16
          %888 = vsyncadd [#allocation21], %s887
          %s890 = sshll.u32 [#allocation20], 4
          %s891 = int_to_ptr.vmem [resolvable:$true] %s890
          %893 = dma.hbm_to_vmem [thread:$0]  %s23, 16, %s891, [#allocation21]
        $region40: #{transformer_decoder_layer.1} parent=11 // pred_fallthru
          _
        // Predicated region
        $region41: #{transformer_decoder_layer.1} parent=11 // pred_check
          %p894 = pneg %p392
        $region42: #{transformer_decoder_layer.1} parent=11 // pred_check_branch
          %896 = sbr.rel (%p894) target = $region44
        $region43: #{transformer_decoder_layer.1} parent=11 // pred_region
          %s898 = ssub.s32 16, 16
          %899 = vsyncadd [#allocation21], %s898
          %s901 = sshll.u32 [#allocation22], 4
          %s902 = int_to_ptr.vmem [resolvable:$true] %s901
          %904 = dma.hbm_to_vmem [thread:$0]  %s25, 16, %s902, [#allocation21]
        $region44: #{transformer_decoder_layer.1} parent=11 // pred_fallthru
          _
        // Predicated region
        $region45: #{transformer_decoder_layer.1} parent=11 // pred_check
          %p905 = pneg %p413
        $region46: #{transformer_decoder_layer.1} parent=11 // pred_check_branch
          %907 = sbr.rel (%p905) target = $region48
        $region47: #{transformer_decoder_layer.1} parent=11 // pred_region
          %s909 = ssub.s32 256, 256
          %910 = vsyncadd [#allocation24], %s909
          %s911 = sshll.u32 [#allocation23], 4
          %s912 = int_to_ptr.vmem [resolvable:$true] %s911
          %917 = dma.hbm_to_vmem [thread:$0]  %s27, 256, %s912, [#allocation24], 64, 64, 4
        $region48: #{transformer_decoder_layer.1} parent=11 // pred_fallthru
          _
        // Predicated region
        $region49: #{transformer_decoder_layer.1} parent=11 // pred_check
          %p918 = pneg %p434
        $region50: #{transformer_decoder_layer.1} parent=11 // pred_check_branch
          %920 = sbr.rel (%p918) target = $region52
        $region51: #{transformer_decoder_layer.1} parent=11 // pred_region
          %s922 = ssub.s32 16, 16
          %923 = vsyncadd [#allocation24], %s922
          %s925 = sshll.u32 [#allocation25], 4
          %s926 = int_to_ptr.vmem [resolvable:$true] %s925
          %928 = dma.hbm_to_vmem [thread:$0]  %s29, 16, %s926, [#allocation24]
        $region52: #{transformer_decoder_layer.1} parent=11 // pred_fallthru
          _
        // Predicated region
        $region53: #{transformer_decoder_layer.1} parent=11 // pred_check
          %p929 = pneg %p455
        $region54: #{transformer_decoder_layer.1} parent=11 // pred_check_branch
          %931 = sbr.rel (%p929) target = $region56
        $region55: #{transformer_decoder_layer.1} parent=11 // pred_region
          %s933 = ssub.s32 256, 256
          %934 = vsyncadd [#allocation27], %s933
          %s935 = sshll.u32 [#allocation26], 4
          %s936 = int_to_ptr.vmem [resolvable:$true] %s935
          %941 = dma.hbm_to_vmem [thread:$0]  %s31, 256, %s936, [#allocation27], 64, 64, 4
        $region56: #{transformer_decoder_layer.1} parent=11 // pred_fallthru
          _
        // Predicated region
        $region57: #{transformer_decoder_layer.1} parent=11 // pred_check
          %p942 = pneg %p476
        $region58: #{transformer_decoder_layer.1} parent=11 // pred_check_branch
          %944 = sbr.rel (%p942) target = $region60
        $region59: #{transformer_decoder_layer.1} parent=11 // pred_region
          %s946 = ssub.s32 16, 16
          %947 = vsyncadd [#allocation27], %s946
          %s949 = sshll.u32 [#allocation28], 4
          %s950 = int_to_ptr.vmem [resolvable:$true] %s949
          %952 = dma.hbm_to_vmem [thread:$0]  %s33, 16, %s950, [#allocation27]
        $region60: #{transformer_decoder_layer.1} parent=11 // pred_fallthru
          _
        // Predicated region
        $region61: #{transformer_decoder_layer.1} parent=11 // pred_check
          %p953 = pneg %p497
        $region62: #{transformer_decoder_layer.1} parent=11 // pred_check_branch
          %955 = sbr.rel (%p953) target = $region64
        $region63: #{transformer_decoder_layer.1} parent=11 // pred_region
          %s957 = ssub.s32 256, 256
          %958 = vsyncadd [#allocation30], %s957
          %s959 = sshll.u32 [#allocation29], 4
          %s960 = int_to_ptr.vmem [resolvable:$true] %s959
          %965 = dma.hbm_to_vmem [thread:$0]  %s35, 256, %s960, [#allocation30], 64, 64, 4
        $region64: #{transformer_decoder_layer.1} parent=11 // pred_fallthru
          _
        // Predicated region
        $region65: #{transformer_decoder_layer.1} parent=11 // pred_check
          %p966 = pneg %p518
        $region66: #{transformer_decoder_layer.1} parent=11 // pred_check_branch
          %968 = sbr.rel (%p966) target = $region68
        $region67: #{transformer_decoder_layer.1} parent=11 // pred_region
          %s970 = ssub.s32 16, 16
          %971 = vsyncadd [#allocation30], %s970
          %s973 = sshll.u32 [#allocation31], 4
          %s974 = int_to_ptr.vmem [resolvable:$true] %s973
          %976 = dma.hbm_to_vmem [thread:$0]  %s37, 16, %s974, [#allocation30]
        $region68: #{transformer_decoder_layer.1} parent=11 // pred_fallthru
          _
        // Predicated region
        $region69: #{transformer_decoder_layer.1} parent=11 // pred_check
          %p977 = pneg %p539
        $region70: #{transformer_decoder_layer.1} parent=11 // pred_check_branch
          %979 = sbr.rel (%p977) target = $region72
        $region71: #{transformer_decoder_layer.1} parent=11 // pred_region
          %s981 = ssub.s32 256, 256
          %982 = vsyncadd [#allocation33], %s981
          %s983 = sshll.u32 [#allocation32], 4
          %s984 = int_to_ptr.vmem [resolvable:$true] %s983
          %989 = dma.hbm_to_vmem [thread:$0]  %s39, 256, %s984, [#allocation33], 64, 64, 4
        $region72: #{transformer_decoder_layer.1} parent=11 // pred_fallthru
          _
        // Predicated region
        $region73: #{transformer_decoder_layer.1} parent=11 // pred_check
          %p990 = pneg %p560
        $region74: #{transformer_decoder_layer.1} parent=11 // pred_check_branch
          %992 = sbr.rel (%p990) target = $region76
        $region75: #{transformer_decoder_layer.1} parent=11 // pred_region
          %s994 = ssub.s32 16, 16
          %995 = vsyncadd [#allocation33], %s994
          %s997 = sshll.u32 [#allocation34], 4
          %s998 = int_to_ptr.vmem [resolvable:$true] %s997
          %1000 = dma.hbm_to_vmem [thread:$0]  %s41, 16, %s998, [#allocation33]
        $region76: #{transformer_decoder_layer.1} parent=11 // pred_fallthru
          _
        // Predicated region
        $region77: #{transformer_decoder_layer.1} parent=11 // pred_check
          %p1001 = pneg %p581
        $region78: #{transformer_decoder_layer.1} parent=11 // pred_check_branch
          %1003 = sbr.rel (%p1001) target = $region80
        $region79: #{transformer_decoder_layer.1} parent=11 // pred_region
          %s1005 = ssub.s32 256, 256
          %1006 = vsyncadd [#allocation36], %s1005
          %s1007 = sshll.u32 [#allocation35], 4
          %s1008 = int_to_ptr.vmem [resolvable:$true] %s1007
          %1013 = dma.hbm_to_vmem [thread:$0]  %s43, 256, %s1008, [#allocation36], 64, 64, 4
        $region80: #{transformer_decoder_layer.1} parent=11 // pred_fallthru
          _
        // Predicated region
        $region81: #{transformer_decoder_layer.1} parent=11 // pred_check
          %p1014 = pneg %p602
        $region82: #{transformer_decoder_layer.1} parent=11 // pred_check_branch
          %1016 = sbr.rel (%p1014) target = $region84
        $region83: #{transformer_decoder_layer.1} parent=11 // pred_region
          %s1018 = ssub.s32 16, 16
          %1019 = vsyncadd [#allocation36], %s1018
          %s1021 = sshll.u32 [#allocation37], 4
          %s1022 = int_to_ptr.vmem [resolvable:$true] %s1021
          %1024 = dma.hbm_to_vmem [thread:$0]  %s45, 16, %s1022, [#allocation36]
        $region84: #{transformer_decoder_layer.1} parent=11 // pred_fallthru
          _
        // Predicated region
        $region85: #{transformer_decoder_layer.1} parent=11 // pred_check
          %p1025 = pneg %p623
        $region86: #{transformer_decoder_layer.1} parent=11 // pred_check_branch
          %1027 = sbr.rel (%p1025) target = $region88
        $region87: #{transformer_decoder_layer.1} parent=11 // pred_region
          %s1029 = ssub.s32 16, 16
          %1030 = vsyncadd [#allocation39], %s1029
          %s1032 = sshll.u32 [#allocation38], 4
          %s1033 = int_to_ptr.vmem [resolvable:$true] %s1032
          %1035 = dma.hbm_to_vmem [thread:$0]  %s47, 16, %s1033, [#allocation39]
        $region88: #{transformer_decoder_layer.1} parent=11 // pred_fallthru
          _
        // Predicated region
        $region89: #{transformer_decoder_layer.1} parent=11 // pred_check
          %p1036 = pneg %p644
        $region90: #{transformer_decoder_layer.1} parent=11 // pred_check_branch
          %1038 = sbr.rel (%p1036) target = $region92
        $region91: #{transformer_decoder_layer.1} parent=11 // pred_region
          %s1040 = ssub.s32 16, 16
          %1041 = vsyncadd [#allocation39], %s1040
          %s1043 = sshll.u32 [#allocation40], 4
          %s1044 = int_to_ptr.vmem [resolvable:$true] %s1043
          %1046 = dma.hbm_to_vmem [thread:$0]  %s49, 16, %s1044, [#allocation39]
        $region92: #{transformer_decoder_layer.1} parent=11 // pred_fallthru
          _
        // Predicated region
        $region93: #{transformer_decoder_layer.1} parent=11 // pred_check
          %p1047 = pneg %p665
        $region94: #{transformer_decoder_layer.1} parent=11 // pred_check_branch
          %1049 = sbr.rel (%p1047) target = $region96
        $region95: #{transformer_decoder_layer.1} parent=11 // pred_region
          %s1051 = ssub.s32 256, 256
          %1052 = vsyncadd [#allocation42], %s1051
          %s1053 = sshll.u32 [#allocation41], 4
          %s1054 = int_to_ptr.vmem [resolvable:$true] %s1053
          %1059 = dma.hbm_to_vmem [thread:$0]  %s51, 256, %s1054, [#allocation42], 64, 64, 4
        $region96: #{transformer_decoder_layer.1} parent=11 // pred_fallthru
          _
        // Predicated region
        $region97: #{transformer_decoder_layer.1} parent=11 // pred_check
          %p1060 = pneg %p686
        $region98: #{transformer_decoder_layer.1} parent=11 // pred_check_branch
          %1062 = sbr.rel (%p1060) target = $region100
        $region99: #{transformer_decoder_layer.1} parent=11 // pred_region
          %s1064 = ssub.s32 16, 16
          %1065 = vsyncadd [#allocation42], %s1064
          %s1067 = sshll.u32 [#allocation43], 4
          %s1068 = int_to_ptr.vmem [resolvable:$true] %s1067
          %1070 = dma.hbm_to_vmem [thread:$0]  %s53, 16, %s1068, [#allocation42]
        $region100: #{transformer_decoder_layer.1} parent=11 // pred_fallthru
          _
        // Predicated region
        $region101: #{transformer_decoder_layer.1} parent=11 // pred_check
          %p1071 = pneg %p707
        $region102: #{transformer_decoder_layer.1} parent=11 // pred_check_branch
          %1073 = sbr.rel (%p1071) target = $region104
        $region103: #{transformer_decoder_layer.1} parent=11 // pred_region
          %s1075 = ssub.s32 512, 512
          %1076 = vsyncadd [#allocation45], %s1075
          %s1077 = sshll.u32 [#allocation44], 4
          %s1078 = int_to_ptr.vmem [resolvable:$true] %s1077
          %1083 = dma.hbm_to_vmem [thread:$0]  %s55, 512, %s1078, [#allocation45], 64, 64, 4
        $region104: #{transformer_decoder_layer.1} parent=11 // pred_fallthru
          _
        // Predicated region
        $region105: #{transformer_decoder_layer.1} parent=11 // pred_check
          %p1084 = pneg %p728
        $region106: #{transformer_decoder_layer.1} parent=11 // pred_check_branch
          %1086 = sbr.rel (%p1084) target = $region108
        $region107: #{transformer_decoder_layer.1} parent=11 // pred_region
          %s1088 = ssub.s32 16, 16
          %1089 = vsyncadd [#allocation45], %s1088
          %s1091 = sshll.u32 [#allocation46], 4
          %s1092 = int_to_ptr.vmem [resolvable:$true] %s1091
          %1094 = dma.hbm_to_vmem [thread:$0]  %s57, 16, %s1092, [#allocation45]
        $region108: #{transformer_decoder_layer.1} parent=11 // pred_fallthru
          _
        // Predicated region
        $region109: #{transformer_decoder_layer.1} parent=11 // pred_check
          %p1095 = pneg %p749
        $region110: #{transformer_decoder_layer.1} parent=11 // pred_check_branch
          %1097 = sbr.rel (%p1095) target = $region112
        $region111: #{transformer_decoder_layer.1} parent=11 // pred_region
          %s1099 = ssub.s32 16, 16
          %1100 = vsyncadd [#allocation48], %s1099
          %s1102 = sshll.u32 [#allocation47], 4
          %s1103 = int_to_ptr.vmem [resolvable:$true] %s1102
          %1105 = dma.hbm_to_vmem [thread:$0]  %s59, 16, %s1103, [#allocation48]
        $region112: #{transformer_decoder_layer.1} parent=11 // pred_fallthru
          _
        // Predicated region
        $region113: #{transformer_decoder_layer.1} parent=11 // pred_check
          %p1106 = pneg %p770
        $region114: #{transformer_decoder_layer.1} parent=11 // pred_check_branch
          %1108 = sbr.rel (%p1106) target = $region116
        $region115: #{transformer_decoder_layer.1} parent=11 // pred_region
          %s1110 = ssub.s32 16, 16
          %1111 = vsyncadd [#allocation48], %s1110
          %s1113 = sshll.u32 [#allocation49], 4
          %s1114 = int_to_ptr.vmem [resolvable:$true] %s1113
          %1116 = dma.hbm_to_vmem [thread:$0]  %s61, 16, %s1114, [#allocation48]
        $region116: #{transformer_decoder_layer.1} parent=11 // pred_fallthru
          _
      $region12: #{transformer_decoder_layer.1} parent=5 // pred_fallthru
        _
      %p1117 = scmp.lt.s32.totalorder %s94, 2
      // Predicated region
      $region117: #{transformer_decoder_layer.1} parent=5 // pred_check
        %p1118 = pneg %p1117
      $region118: #{transformer_decoder_layer.1} parent=5 // pred_check_branch
        %1120 = sbr.rel (%p1118) target = $region120
      $region119: #{transformer_decoder_layer.1} parent=5 // pred_region
        // Predicated region
        $region121: #{transformer_decoder_layer.1} parent=119 // pred_check
          %p1121 = pneg %p114
        $region122: #{transformer_decoder_layer.1} parent=119 // pred_check_branch
          %1123 = sbr.rel (%p1121) target = $region124
        $region123: #{transformer_decoder_layer.1} parent=119 // pred_region
          %s1124 = sand.u32 %s104, 1
          %s1125 = scalar_lea.sflag [#allocation3], %s1124
          %s1126 = sand.u32 %s104, 1
          %s1127 = smul.addr %s1126, 8
          %s1128 = scalar_lea.vmem [#allocation2], %s1127
          %s1130 = ssub.s32 128, 128
          %1131 = vsyncadd %s1125, %s1130
          %s1132 = smul.addr %s94, 128
          %s1133 = scalar_lea.hbm %s1, %s1132
          %s1135 = sshll.u32 %s1128, 4
          %s1136 = int_to_ptr.vmem [resolvable:$true] %s1135
          %1138 = dma.hbm_to_vmem [thread:$0]  %s1133, 128, %s1136, %s1125
        $region124: #{transformer_decoder_layer.1} parent=119 // pred_fallthru
          _
        // Predicated region
        $region125: #{transformer_decoder_layer.1} parent=119 // pred_check
          %p1139 = pneg %p140
        $region126: #{transformer_decoder_layer.1} parent=119 // pred_check_branch
          %1141 = sbr.rel (%p1139) target = $region128
        $region127: #{transformer_decoder_layer.1} parent=119 // pred_region
          %s1142 = sand.u32 %s94, 1
          %s1143 = scalar_lea.sflag [#allocation6], %s1142
          %s1144 = sand.u32 %s130, 1
          %s1145 = smul.addr %s1144, 8
          %s1146 = scalar_lea.vmem [#allocation5], %s1145
          %s1148 = ssub.s32 128, 128
          %1149 = vsyncadd %s1143, %s1148
          %s1150 = smul.addr %s94, 128
          %s1151 = scalar_lea.hbm %s3, %s1150
          %s1153 = sshll.u32 %s1146, 4
          %s1154 = int_to_ptr.vmem [resolvable:$true] %s1153
          %1156 = dma.hbm_to_vmem [thread:$0]  %s1151, 128, %s1154, %s1143
        $region128: #{transformer_decoder_layer.1} parent=119 // pred_fallthru
          _
        // Predicated region
        $region129: #{transformer_decoder_layer.1} parent=119 // pred_check
          %p1157 = pneg %p166
        $region130: #{transformer_decoder_layer.1} parent=119 // pred_check_branch
          %1159 = sbr.rel (%p1157) target = $region132
        $region131: #{transformer_decoder_layer.1} parent=119 // pred_region
          %s1160 = sand.u32 %s94, 1
          %s1161 = scalar_lea.sflag [#allocation6], %s1160
          %s1162 = sand.u32 %s156, 1
          %s1163 = smul.addr %s1162, 8
          %s1164 = scalar_lea.vmem [#allocation7], %s1163
          %s1166 = ssub.s32 128, 128
          %1167 = vsyncadd %s1161, %s1166
          %s1168 = smul.addr %s94, 128
          %s1169 = scalar_lea.hbm %s5, %s1168
          %s1171 = sshll.u32 %s1164, 4
          %s1172 = int_to_ptr.vmem [resolvable:$true] %s1171
          %1174 = dma.hbm_to_vmem [thread:$0]  %s1169, 128, %s1172, %s1161
        $region132: #{transformer_decoder_layer.1} parent=119 // pred_fallthru
          _
        // Predicated region
        $region133: #{transformer_decoder_layer.1} parent=119 // pred_check
          %p1175 = pneg %p192
        $region134: #{transformer_decoder_layer.1} parent=119 // pred_check_branch
          %1177 = sbr.rel (%p1175) target = $region136
        $region135: #{transformer_decoder_layer.1} parent=119 // pred_region
          %s1178 = sand.u32 %s94, 1
          %s1179 = scalar_lea.sflag [#allocation9], %s1178
          %s1180 = sand.u32 %s182, 1
          %s1181 = smul.addr %s1180, 16
          %s1182 = scalar_lea.vmem [#allocation8], %s1181
          %s1184 = ssub.s32 256, 256
          %1185 = vsyncadd %s1179, %s1184
          %s1186 = smul.addr %s94, 2
          %s1187 = smul.addr %s1186, 128
          %s1188 = scalar_lea.hbm %s7, %s1187
          %s1189 = sshll.u32 %s1182, 4
          %s1190 = int_to_ptr.vmem [resolvable:$true] %s1189
          %1195 = dma.hbm_to_vmem [thread:$0]  %s1188, 256, %s1190, %s1179, 128, 128, 8
        $region136: #{transformer_decoder_layer.1} parent=119 // pred_fallthru
          _
        // Predicated region
        $region137: #{transformer_decoder_layer.1} parent=119 // pred_check
          %p1196 = pneg %p218
        $region138: #{transformer_decoder_layer.1} parent=119 // pred_check_branch
          %1198 = sbr.rel (%p1196) target = $region140
        $region139: #{transformer_decoder_layer.1} parent=119 // pred_region
          %s1199 = sand.u32 %s94, 1
          %s1200 = scalar_lea.sflag [#allocation9], %s1199
          %s1201 = sand.u32 %s208, 1
          %s1202 = smul.addr %s1201, 16
          %s1203 = scalar_lea.vmem [#allocation10], %s1202
          %s1205 = ssub.s32 256, 256
          %1206 = vsyncadd %s1200, %s1205
          %s1207 = smul.addr %s94, 2
          %s1208 = smul.addr %s1207, 128
          %s1209 = scalar_lea.hbm %s9, %s1208
          %s1210 = sshll.u32 %s1203, 4
          %s1211 = int_to_ptr.vmem [resolvable:$true] %s1210
          %1216 = dma.hbm_to_vmem [thread:$0]  %s1209, 256, %s1211, %s1200, 128, 128, 8
        $region140: #{transformer_decoder_layer.1} parent=119 // pred_fallthru
          _
      $region120: #{transformer_decoder_layer.1} parent=5 // pred_fallthru
        _
      %p1217 = scmp.le.s32.totalorder 1, %s94
      %p1218 = scmp.lt.s32.totalorder %s94, 3
      %p1219 = pnand %p1217, %p1218
      %p1220 = pneg %p1219
      // Predicated region
      $region141: #{transformer_decoder_layer.1} parent=5 // pred_check
        _
      $region142: #{transformer_decoder_layer.1} parent=5 // pred_check_branch
        %1222 = sbr.rel (%p1219) target = $region144
      $region143: #{transformer_decoder_layer.1} parent=5 // pred_region
        %s1223 = ssub.s32 %s94, 1
        %s1224 = sand.u32 %s107, 1
        %s1225 = scalar_lea.sflag [#allocation3], %s1224
        %s1226 = sand.u32 %s107, 1
        %s1227 = smul.addr %s1226, 8
        %s1228 = scalar_lea.vmem [#allocation2], %s1227
        // Predicated region
        $region145: #{transformer_decoder_layer.1} parent=143 // pred_check
          %p1229 = pneg %p120
        $region146: #{transformer_decoder_layer.1} parent=143 // pred_check_branch
          %1231 = sbr.rel (%p1229) target = $region148
        $region147: #{transformer_decoder_layer.1} parent=143 // pred_region
          %1232 = dma.done %s1225, 128
        $region148: #{transformer_decoder_layer.1} parent=143 // pred_fallthru
          _
        %s1233 = sand.u32 %s99, 1
        %s1234 = scalar_lea.sflag [#allocation6], %s1233
        %s1235 = sand.u32 %s133, 1
        %s1236 = smul.addr %s1235, 8
        %s1237 = scalar_lea.vmem [#allocation5], %s1236
        // Predicated region
        $region149: #{transformer_decoder_layer.1} parent=143 // pred_check
          %p1238 = pneg %p146
        $region150: #{transformer_decoder_layer.1} parent=143 // pred_check_branch
          %1240 = sbr.rel (%p1238) target = $region152
        $region151: #{transformer_decoder_layer.1} parent=143 // pred_region
          %1241 = dma.done %s1234, 128
        $region152: #{transformer_decoder_layer.1} parent=143 // pred_fallthru
          _
        %s1242 = sand.u32 %s99, 1
        %s1243 = scalar_lea.sflag [#allocation6], %s1242
        %s1244 = sand.u32 %s159, 1
        %s1245 = smul.addr %s1244, 8
        %s1246 = scalar_lea.vmem [#allocation7], %s1245
        // Predicated region
        $region153: #{transformer_decoder_layer.1} parent=143 // pred_check
          %p1247 = pneg %p172
        $region154: #{transformer_decoder_layer.1} parent=143 // pred_check_branch
          %1249 = sbr.rel (%p1247) target = $region156
        $region155: #{transformer_decoder_layer.1} parent=143 // pred_region
          %1250 = dma.done %s1243, 128
        $region156: #{transformer_decoder_layer.1} parent=143 // pred_fallthru
          _
        %s1251 = sand.u32 %s99, 1
        %s1252 = scalar_lea.sflag [#allocation9], %s1251
        %s1253 = sand.u32 %s185, 1
        %s1254 = smul.addr %s1253, 16
        %s1255 = scalar_lea.vmem [#allocation8], %s1254
        // Predicated region
        $region157: #{transformer_decoder_layer.1} parent=143 // pred_check
          %p1256 = pneg %p198
        $region158: #{transformer_decoder_layer.1} parent=143 // pred_check_branch
          %1258 = sbr.rel (%p1256) target = $region160
        $region159: #{transformer_decoder_layer.1} parent=143 // pred_region
          %1259 = dma.done %s1252, 256
        $region160: #{transformer_decoder_layer.1} parent=143 // pred_fallthru
          _
        %s1260 = sand.u32 %s99, 1
        %s1261 = scalar_lea.sflag [#allocation9], %s1260
        %s1262 = sand.u32 %s211, 1
        %s1263 = smul.addr %s1262, 16
        %s1264 = scalar_lea.vmem [#allocation10], %s1263
        // Predicated region
        $region161: #{transformer_decoder_layer.1} parent=143 // pred_check
          %p1265 = pneg %p224
        $region162: #{transformer_decoder_layer.1} parent=143 // pred_check_branch
          %1267 = sbr.rel (%p1265) target = $region164
        $region163: #{transformer_decoder_layer.1} parent=143 // pred_region
          %1268 = dma.done %s1261, 256
        $region164: #{transformer_decoder_layer.1} parent=143 // pred_fallthru
          _
        // Predicated region
        $region165: #{transformer_decoder_layer.1} parent=143 // pred_check
          %p1269 = pneg %p245
        $region166: #{transformer_decoder_layer.1} parent=143 // pred_check_branch
          %1271 = sbr.rel (%p1269) target = $region168
        $region167: #{transformer_decoder_layer.1} parent=143 // pred_region
          %1272 = dma.done [#allocation12], 256
        $region168: #{transformer_decoder_layer.1} parent=143 // pred_fallthru
          _
        // Predicated region
        $region169: #{transformer_decoder_layer.1} parent=143 // pred_check
          %p1273 = pneg %p266
        $region170: #{transformer_decoder_layer.1} parent=143 // pred_check_branch
          %1275 = sbr.rel (%p1273) target = $region172
        $region171: #{transformer_decoder_layer.1} parent=143 // pred_region
          %1276 = dma.done [#allocation12], 16
        $region172: #{transformer_decoder_layer.1} parent=143 // pred_fallthru
          _
        // Predicated region
        $region173: #{transformer_decoder_layer.1} parent=143 // pred_check
          %p1277 = pneg %p287
        $region174: #{transformer_decoder_layer.1} parent=143 // pred_check_branch
          %1279 = sbr.rel (%p1277) target = $region176
        $region175: #{transformer_decoder_layer.1} parent=143 // pred_region
          %1280 = dma.done [#allocation15], 256
        $region176: #{transformer_decoder_layer.1} parent=143 // pred_fallthru
          _
        // Predicated region
        $region177: #{transformer_decoder_layer.1} parent=143 // pred_check
          %p1281 = pneg %p308
        $region178: #{transformer_decoder_layer.1} parent=143 // pred_check_branch
          %1283 = sbr.rel (%p1281) target = $region180
        $region179: #{transformer_decoder_layer.1} parent=143 // pred_region
          %1284 = dma.done [#allocation15], 16
        $region180: #{transformer_decoder_layer.1} parent=143 // pred_fallthru
          _
        // Predicated region
        $region181: #{transformer_decoder_layer.1} parent=143 // pred_check
          %p1285 = pneg %p329
        $region182: #{transformer_decoder_layer.1} parent=143 // pred_check_branch
          %1287 = sbr.rel (%p1285) target = $region184
        $region183: #{transformer_decoder_layer.1} parent=143 // pred_region
          %1288 = dma.done [#allocation18], 256
        $region184: #{transformer_decoder_layer.1} parent=143 // pred_fallthru
          _
        // Predicated region
        $region185: #{transformer_decoder_layer.1} parent=143 // pred_check
          %p1289 = pneg %p350
        $region186: #{transformer_decoder_layer.1} parent=143 // pred_check_branch
          %1291 = sbr.rel (%p1289) target = $region188
        $region187: #{transformer_decoder_layer.1} parent=143 // pred_region
          %1292 = dma.done [#allocation18], 16
        $region188: #{transformer_decoder_layer.1} parent=143 // pred_fallthru
          _
        // Predicated region
        $region189: #{transformer_decoder_layer.1} parent=143 // pred_check
          %p1293 = pneg %p371
        $region190: #{transformer_decoder_layer.1} parent=143 // pred_check_branch
          %1295 = sbr.rel (%p1293) target = $region192
        $region191: #{transformer_decoder_layer.1} parent=143 // pred_region
          %1296 = dma.done [#allocation21], 16
        $region192: #{transformer_decoder_layer.1} parent=143 // pred_fallthru
          _
        // Predicated region
        $region193: #{transformer_decoder_layer.1} parent=143 // pred_check
          %p1297 = pneg %p392
        $region194: #{transformer_decoder_layer.1} parent=143 // pred_check_branch
          %1299 = sbr.rel (%p1297) target = $region196
        $region195: #{transformer_decoder_layer.1} parent=143 // pred_region
          %1300 = dma.done [#allocation21], 16
        $region196: #{transformer_decoder_layer.1} parent=143 // pred_fallthru
          _
        // Predicated region
        $region197: #{transformer_decoder_layer.1} parent=143 // pred_check
          %p1301 = pneg %p413
        $region198: #{transformer_decoder_layer.1} parent=143 // pred_check_branch
          %1303 = sbr.rel (%p1301) target = $region200
        $region199: #{transformer_decoder_layer.1} parent=143 // pred_region
          %1304 = dma.done [#allocation24], 256
        $region200: #{transformer_decoder_layer.1} parent=143 // pred_fallthru
          _
        // Predicated region
        $region201: #{transformer_decoder_layer.1} parent=143 // pred_check
          %p1305 = pneg %p434
        $region202: #{transformer_decoder_layer.1} parent=143 // pred_check_branch
          %1307 = sbr.rel (%p1305) target = $region204
        $region203: #{transformer_decoder_layer.1} parent=143 // pred_region
          %1308 = dma.done [#allocation24], 16
        $region204: #{transformer_decoder_layer.1} parent=143 // pred_fallthru
          _
        // Predicated region
        $region205: #{transformer_decoder_layer.1} parent=143 // pred_check
          %p1309 = pneg %p455
        $region206: #{transformer_decoder_layer.1} parent=143 // pred_check_branch
          %1311 = sbr.rel (%p1309) target = $region208
        $region207: #{transformer_decoder_layer.1} parent=143 // pred_region
          %1312 = dma.done [#allocation27], 256
        $region208: #{transformer_decoder_layer.1} parent=143 // pred_fallthru
          _
        // Predicated region
        $region209: #{transformer_decoder_layer.1} parent=143 // pred_check
          %p1313 = pneg %p476
        $region210: #{transformer_decoder_layer.1} parent=143 // pred_check_branch
          %1315 = sbr.rel (%p1313) target = $region212
        $region211: #{transformer_decoder_layer.1} parent=143 // pred_region
          %1316 = dma.done [#allocation27], 16
        $region212: #{transformer_decoder_layer.1} parent=143 // pred_fallthru
          _
        // Predicated region
        $region213: #{transformer_decoder_layer.1} parent=143 // pred_check
          %p1317 = pneg %p497
        $region214: #{transformer_decoder_layer.1} parent=143 // pred_check_branch
          %1319 = sbr.rel (%p1317) target = $region216
        $region215: #{transformer_decoder_layer.1} parent=143 // pred_region
          %1320 = dma.done [#allocation30], 256
        $region216: #{transformer_decoder_layer.1} parent=143 // pred_fallthru
          _
        // Predicated region
        $region217: #{transformer_decoder_layer.1} parent=143 // pred_check
          %p1321 = pneg %p518
        $region218: #{transformer_decoder_layer.1} parent=143 // pred_check_branch
          %1323 = sbr.rel (%p1321) target = $region220
        $region219: #{transformer_decoder_layer.1} parent=143 // pred_region
          %1324 = dma.done [#allocation30], 16
        $region220: #{transformer_decoder_layer.1} parent=143 // pred_fallthru
          _
        // Predicated region
        $region221: #{transformer_decoder_layer.1} parent=143 // pred_check
          %p1325 = pneg %p539
        $region222: #{transformer_decoder_layer.1} parent=143 // pred_check_branch
          %1327 = sbr.rel (%p1325) target = $region224
        $region223: #{transformer_decoder_layer.1} parent=143 // pred_region
          %1328 = dma.done [#allocation33], 256
        $region224: #{transformer_decoder_layer.1} parent=143 // pred_fallthru
          _
        // Predicated region
        $region225: #{transformer_decoder_layer.1} parent=143 // pred_check
          %p1329 = pneg %p560
        $region226: #{transformer_decoder_layer.1} parent=143 // pred_check_branch
          %1331 = sbr.rel (%p1329) target = $region228
        $region227: #{transformer_decoder_layer.1} parent=143 // pred_region
          %1332 = dma.done [#allocation33], 16
        $region228: #{transformer_decoder_layer.1} parent=143 // pred_fallthru
          _
        // Predicated region
        $region229: #{transformer_decoder_layer.1} parent=143 // pred_check
          %p1333 = pneg %p581
        $region230: #{transformer_decoder_layer.1} parent=143 // pred_check_branch
          %1335 = sbr.rel (%p1333) target = $region232
        $region231: #{transformer_decoder_layer.1} parent=143 // pred_region
          %1336 = dma.done [#allocation36], 256
        $region232: #{transformer_decoder_layer.1} parent=143 // pred_fallthru
          _
        // Predicated region
        $region233: #{transformer_decoder_layer.1} parent=143 // pred_check
          %p1337 = pneg %p602
        $region234: #{transformer_decoder_layer.1} parent=143 // pred_check_branch
          %1339 = sbr.rel (%p1337) target = $region236
        $region235: #{transformer_decoder_layer.1} parent=143 // pred_region
          %1340 = dma.done [#allocation36], 16
        $region236: #{transformer_decoder_layer.1} parent=143 // pred_fallthru
          _
        // Predicated region
        $region237: #{transformer_decoder_layer.1} parent=143 // pred_check
          %p1341 = pneg %p623
        $region238: #{transformer_decoder_layer.1} parent=143 // pred_check_branch
          %1343 = sbr.rel (%p1341) target = $region240
        $region239: #{transformer_decoder_layer.1} parent=143 // pred_region
          %1344 = dma.done [#allocation39], 16
        $region240: #{transformer_decoder_layer.1} parent=143 // pred_fallthru
          _
        // Predicated region
        $region241: #{transformer_decoder_layer.1} parent=143 // pred_check
          %p1345 = pneg %p644
        $region242: #{transformer_decoder_layer.1} parent=143 // pred_check_branch
          %1347 = sbr.rel (%p1345) target = $region244
        $region243: #{transformer_decoder_layer.1} parent=143 // pred_region
          %1348 = dma.done [#allocation39], 16
        $region244: #{transformer_decoder_layer.1} parent=143 // pred_fallthru
          _
        // Predicated region
        $region245: #{transformer_decoder_layer.1} parent=143 // pred_check
          %p1349 = pneg %p665
        $region246: #{transformer_decoder_layer.1} parent=143 // pred_check_branch
          %1351 = sbr.rel (%p1349) target = $region248
        $region247: #{transformer_decoder_layer.1} parent=143 // pred_region
          %1352 = dma.done [#allocation42], 256
        $region248: #{transformer_decoder_layer.1} parent=143 // pred_fallthru
          _
        // Predicated region
        $region249: #{transformer_decoder_layer.1} parent=143 // pred_check
          %p1353 = pneg %p686
        $region250: #{transformer_decoder_layer.1} parent=143 // pred_check_branch
          %1355 = sbr.rel (%p1353) target = $region252
        $region251: #{transformer_decoder_layer.1} parent=143 // pred_region
          %1356 = dma.done [#allocation42], 16
        $region252: #{transformer_decoder_layer.1} parent=143 // pred_fallthru
          _
        // Predicated region
        $region253: #{transformer_decoder_layer.1} parent=143 // pred_check
          %p1357 = pneg %p707
        $region254: #{transformer_decoder_layer.1} parent=143 // pred_check_branch
          %1359 = sbr.rel (%p1357) target = $region256
        $region255: #{transformer_decoder_layer.1} parent=143 // pred_region
          %1360 = dma.done [#allocation45], 512
        $region256: #{transformer_decoder_layer.1} parent=143 // pred_fallthru
          _
        // Predicated region
        $region257: #{transformer_decoder_layer.1} parent=143 // pred_check
          %p1361 = pneg %p728
        $region258: #{transformer_decoder_layer.1} parent=143 // pred_check_branch
          %1363 = sbr.rel (%p1361) target = $region260
        $region259: #{transformer_decoder_layer.1} parent=143 // pred_region
          %1364 = dma.done [#allocation45], 16
        $region260: #{transformer_decoder_layer.1} parent=143 // pred_fallthru
          _
        // Predicated region
        $region261: #{transformer_decoder_layer.1} parent=143 // pred_check
          %p1365 = pneg %p749
        $region262: #{transformer_decoder_layer.1} parent=143 // pred_check_branch
          %1367 = sbr.rel (%p1365) target = $region264
        $region263: #{transformer_decoder_layer.1} parent=143 // pred_region
          %1368 = dma.done [#allocation48], 16
        $region264: #{transformer_decoder_layer.1} parent=143 // pred_fallthru
          _
        // Predicated region
        $region265: #{transformer_decoder_layer.1} parent=143 // pred_check
          %p1369 = pneg %p770
        $region266: #{transformer_decoder_layer.1} parent=143 // pred_check_branch
          %1371 = sbr.rel (%p1369) target = $region268
        $region267: #{transformer_decoder_layer.1} parent=143 // pred_region
          %1372 = dma.done [#allocation48], 16
        $region268: #{transformer_decoder_layer.1} parent=143 // pred_fallthru
          _
        %s1373 = sand.u32 %s107, 1
        %s1374 = scalar_lea.sflag [#allocation3], %s1373
        %s1375 = sand.u32 %s107, 1
        %s1376 = smul.addr %s1375, 8
        %s1377 = scalar_lea.vmem [#allocation2], %s1376
        %p1378 = pneg %p120
        %p1379 = pneg %p117
        %s1380 = sand.u32 %s99, 1
        %s1381 = scalar_lea.sflag [#allocation6], %s1380
        %s1382 = sand.u32 %s133, 1
        %s1383 = smul.addr %s1382, 8
        %s1384 = scalar_lea.vmem [#allocation5], %s1383
        %p1385 = pneg %p146
        %p1386 = pneg %p143
        %s1387 = sand.u32 %s99, 1
        %s1388 = scalar_lea.sflag [#allocation6], %s1387
        %s1389 = sand.u32 %s159, 1
        %s1390 = smul.addr %s1389, 8
        %s1391 = scalar_lea.vmem [#allocation7], %s1390
        %p1392 = pneg %p172
        %p1393 = pneg %p169
        %s1394 = sand.u32 %s99, 1
        %s1395 = scalar_lea.sflag [#allocation9], %s1394
        %s1396 = sand.u32 %s185, 1
        %s1397 = smul.addr %s1396, 16
        %s1398 = scalar_lea.vmem [#allocation8], %s1397
        %p1399 = pneg %p198
        %p1400 = pneg %p195
        %s1401 = sand.u32 %s99, 1
        %s1402 = scalar_lea.sflag [#allocation9], %s1401
        %s1403 = sand.u32 %s211, 1
        %s1404 = smul.addr %s1403, 16
        %s1405 = scalar_lea.vmem [#allocation10], %s1404
        %p1406 = pneg %p224
        %p1407 = pneg %p221
        %p1408 = pneg %p245
        %p1409 = pneg %p242
        %p1410 = pneg %p266
        %p1411 = pneg %p263
        %p1412 = pneg %p287
        %p1413 = pneg %p284
        %p1414 = pneg %p308
        %p1415 = pneg %p305
        %p1416 = pneg %p329
        %p1417 = pneg %p326
        %p1418 = pneg %p350
        %p1419 = pneg %p347
        %p1420 = pneg %p371
        %p1421 = pneg %p368
        %p1422 = pneg %p392
        %p1423 = pneg %p389
        %p1424 = pneg %p413
        %p1425 = pneg %p410
        %p1426 = pneg %p434
        %p1427 = pneg %p431
        %p1428 = pneg %p455
        %p1429 = pneg %p452
        %p1430 = pneg %p476
        %p1431 = pneg %p473
        %p1432 = pneg %p497
        %p1433 = pneg %p494
        %p1434 = pneg %p518
        %p1435 = pneg %p515
        %p1436 = pneg %p539
        %p1437 = pneg %p536
        %p1438 = pneg %p560
        %p1439 = pneg %p557
        %p1440 = pneg %p581
        %p1441 = pneg %p578
        %p1442 = pneg %p602
        %p1443 = pneg %p599
        %p1444 = pneg %p623
        %p1445 = pneg %p620
        %p1446 = pneg %p644
        %p1447 = pneg %p641
        %p1448 = pneg %p665
        %p1449 = pneg %p662
        %p1450 = pneg %p686
        %p1451 = pneg %p683
        %p1452 = pneg %p707
        %p1453 = pneg %p704
        %p1454 = pneg %p728
        %p1455 = pneg %p725
        %p1456 = pneg %p749
        %p1457 = pneg %p746
        %p1458 = pneg %p770
        %p1459 = pneg %p767
        %p1460 = pneg %p796
        %p1461 = pneg %p793
        %s1462 = sand.u32 %s783, 1
        %s1463 = scalar_lea.sflag [#allocation4], %s1462
        %s1464 = sand.u32 %s783, 1
        %s1465 = smul.addr %s1464, 8
        %s1466 = scalar_lea.vmem [#allocation50], %s1465
        %v1468 = vld [vmem:[%s1228] sm:$0xff]
        %v1469 = vld [vmem:[%s1237] sm:$0xff]
        %v1470 = vld [vmem:[%s1246] sm:$0xff]
        %v1471 = vld [vmem:[%s1255] sm:$0xff]
        %v1472 = vld [vmem:[%s1255 + $0x8] sm:$0xff]
        %v1473 = vld [vmem:[%s1264] sm:$0xff]
        %v1474 = vld [vmem:[%s1264 + $0x8] sm:$0xff]
        %v1475 = vpack.c.bf16 %v1468, %v1468
        %v1476 = vld [vmem:[#allocation11] sm:$0xf]
        %v1477 = vld [vmem:[#allocation11 + $0x4] sm:$0xf]
        %v1478 = vld [vmem:[#allocation11 + $0x8] sm:$0xf]
        %v1479 = vld [vmem:[#allocation11 + $0xc] sm:$0xf]
        %v1480 = vld [vmem:[#allocation13] sm:$0x1]
        %v1482 = vlaneseq
        %v1483 = vshrl.u32 %v1482, 7
        %v1484 = vsub.s32 0, %v1483
        %v1485 = vrot.slane %v1480, %v1484
        %v1491 = vunpack.c.l.b16 %v1476
        %v1492 = vunpack.c.l.b16 %v1477
        %v1493 = vunpack.c.l.b16 %v1478
        %v1494 = vunpack.c.l.b16 %v1479
        %v1495 = vpack.c.b16 %v1492, %v1491
        %v1496 = vpack.c.b16 %v1494, %v1493
        %vm1499 = vcmask 261120
        %v1501 = vsel %vm1499, %v1475, 0
        %1503 = vmatprep.subr.bf16.mxu0 0
        %1504 = vmatpush1.bf16.msra.mxu0 %v1495
        %1505 = vmatprep.subr.bf16.mxu0 0
        %1506 = vmatpush1.bf16.msra.mxu0 %v1496
        %1507 = vmatprep.subr.bf16.mxu0 0
        %1508 = vmatpush1.bf16.msra.mxu0 0
        %1509 = vmatprep.subr.bf16.mxu0 0
        %1510 = vmatpush1.bf16.msra.mxu0 0
        %1511 = vmatprep.subr.bf16.mxu0 0
        %1512 = vmatpush1.bf16.msra.mxu0 0
        %1513 = vmatprep.subr.bf16.mxu0 0
        %1514 = vmatpush1.bf16.msra.mxu0 0
        %1515 = vmatprep.subr.bf16.mxu0 0
        %1516 = vmatpush1.bf16.msra.mxu0 0
        %1517 = vmatprep.subr.bf16.mxu0 0
        %1518 = vmatpush1.bf16.msra.mxu0 0
        %1519 = vmatprep.subr.bf16.mxu0 0
        %1520 = vmatpush1.bf16.msra.mxu0 0
        %1521 = vmatprep.subr.bf16.mxu0 0
        %1522 = vmatpush1.bf16.msra.mxu0 0
        %1523 = vmatprep.subr.bf16.mxu0 0
        %1524 = vmatpush1.bf16.msra.mxu0 0
        %1525 = vmatprep.subr.bf16.mxu0 0
        %1526 = vmatpush1.bf16.msra.mxu0 0
        %1527 = vmatprep.subr.bf16.mxu0 0
        %1528 = vmatpush1.bf16.msra.mxu0 0
        %1529 = vmatprep.subr.bf16.mxu0 0
        %1530 = vmatpush1.bf16.msra.mxu0 0
        %1531 = vmatprep.subr.bf16.mxu0 0
        %1532 = vmatpush1.bf16.msra.mxu0 0
        %1533 = vmatprep.subr.bf16.mxu0 0
        %1534 = vmatpush1.bf16.msra.mxu0 0
        %1535 = vmatprep.mubr.bf16.mxu0 0
        %1536 = vmatmul.mubr.bf16.gmra.mrb[0].mxu0 %v1501
        %v1537 = vpop.f32.mrb[0].mxu0
        %v1538 = vadd.f32 %v1485, %v1537
        %v1539 = vpop.f32.mrb[0].mxu0
        %v1540 = vpop.f32.mrb[0].mxu0
        %v1541 = vpop.f32.mrb[0].mxu0
        %1542 = vdwg.mxu0
        %v1543 = vpack.c.bf16 %v1469, %v1469
        %v1544 = vld [vmem:[#allocation14] sm:$0xf]
        %v1545 = vld [vmem:[#allocation14 + $0x4] sm:$0xf]
        %v1546 = vld [vmem:[#allocation14 + $0x8] sm:$0xf]
        %v1547 = vld [vmem:[#allocation14 + $0xc] sm:$0xf]
        %v1548 = vld [vmem:[#allocation16] sm:$0x1]
        %v1550 = vlaneseq
        %v1551 = vshrl.u32 %v1550, 7
        %v1552 = vsub.s32 0, %v1551
        %v1553 = vrot.slane %v1548, %v1552
        %v1559 = vunpack.c.l.b16 %v1544
        %v1560 = vunpack.c.l.b16 %v1545
        %v1561 = vunpack.c.l.b16 %v1546
        %v1562 = vunpack.c.l.b16 %v1547
        %v1563 = vpack.c.b16 %v1560, %v1559
        %v1564 = vpack.c.b16 %v1562, %v1561
        %v1568 = vsel %vm1499, %v1543, 0
        %1570 = vmatprep.subr.bf16.mxu0 0
        %1571 = vmatpush1.bf16.msra.mxu0 %v1563
        %1572 = vmatprep.subr.bf16.mxu0 0
        %1573 = vmatpush1.bf16.msra.mxu0 %v1564
        %1574 = vmatprep.subr.bf16.mxu0 0
        %1575 = vmatpush1.bf16.msra.mxu0 0
        %1576 = vmatprep.subr.bf16.mxu0 0
        %1577 = vmatpush1.bf16.msra.mxu0 0
        %1578 = vmatprep.subr.bf16.mxu0 0
        %1579 = vmatpush1.bf16.msra.mxu0 0
        %1580 = vmatprep.subr.bf16.mxu0 0
        %1581 = vmatpush1.bf16.msra.mxu0 0
        %1582 = vmatprep.subr.bf16.mxu0 0
        %1583 = vmatpush1.bf16.msra.mxu0 0
        %1584 = vmatprep.subr.bf16.mxu0 0
        %1585 = vmatpush1.bf16.msra.mxu0 0
        %1586 = vmatprep.subr.bf16.mxu0 0
        %1587 = vmatpush1.bf16.msra.mxu0 0
        %1588 = vmatprep.subr.bf16.mxu0 0
        %1589 = vmatpush1.bf16.msra.mxu0 0
        %1590 = vmatprep.subr.bf16.mxu0 0
        %1591 = vmatpush1.bf16.msra.mxu0 0
        %1592 = vmatprep.subr.bf16.mxu0 0
        %1593 = vmatpush1.bf16.msra.mxu0 0
        %1594 = vmatprep.subr.bf16.mxu0 0
        %1595 = vmatpush1.bf16.msra.mxu0 0
        %1596 = vmatprep.subr.bf16.mxu0 0
        %1597 = vmatpush1.bf16.msra.mxu0 0
        %1598 = vmatprep.subr.bf16.mxu0 0
        %1599 = vmatpush1.bf16.msra.mxu0 0
        %1600 = vmatprep.subr.bf16.mxu0 0
        %1601 = vmatpush1.bf16.msra.mxu0 0
        %1602 = vmatprep.mubr.bf16.mxu0 0
        %1603 = vmatmul.mubr.bf16.gmra.mrb[0].mxu0 %v1568
        %v1604 = vpop.f32.mrb[0].mxu0
        %v1605 = vadd.f32 %v1553, %v1604
        %v1606 = vpop.f32.mrb[0].mxu0
        %v1607 = vpop.f32.mrb[0].mxu0
        %v1608 = vpop.f32.mrb[0].mxu0
        %1609 = vdwg.mxu0
        %v1610 = vadd.f32 %v1538, %v1605
        %1612 = vrot.lane.b32.xlu0 %v1610, 120
        %v1613 = vpop.permute.xlu0 %1612
        %1615 = vrot.lane.b32.xlu0 %v1610, 112
        %v1616 = vpop.permute.xlu0 %1615
        %1618 = vrot.lane.b32.xlu0 %v1610, 104
        %v1619 = vpop.permute.xlu0 %1618
        %1622 = vrot.lane.b32.xlu0 %v1538, 120
        %v1623 = vpop.permute.xlu0 %1622
        %1625 = vrot.lane.b32.xlu0 %v1538, 112
        %v1626 = vpop.permute.xlu0 %1625
        %1628 = vrot.lane.b32.xlu0 %v1538, 104
        %v1629 = vpop.permute.xlu0 %1628
        %v1631 = vpack.c.bf16 %v1610, %v1610
        %v1632 = vpack.c.bf16 %v1613, %v1613
        %v1633 = vpack.c.bf16 %v1616, %v1616
        %v1634 = vpack.c.bf16 %v1619, %v1619
        %1636 = vrot.lane.b32.xlu0 %v1631, 96
        %v1637 = vpop.permute.xlu0 %1636
        %vm1638 = vcmask 64512
        %v1640 = vsel %vm1638, %v1631, 0
        %v1643 = vsel %vm1638, %v1637, 0
        %1645 = vmatprep.subr.bf16.mxu0 0
        %1646 = vmatpush1.bf16.xpose.msra.mxu0 %v1643
        %1647 = vmatprep.subr.bf16.mxu0 0
        %1648 = vmatpush1.bf16.xpose.msra.mxu0 0
        %1649 = vmatprep.subr.bf16.mxu0 0
        %1650 = vmatpush1.bf16.xpose.msra.mxu0 0
        %1651 = vmatprep.subr.bf16.mxu0 0
        %1652 = vmatpush1.bf16.xpose.msra.mxu0 0
        %1653 = vmatprep.subr.bf16.mxu0 0
        %1654 = vmatpush1.bf16.xpose.msra.mxu0 0
        %1655 = vmatprep.subr.bf16.mxu0 0
        %1656 = vmatpush1.bf16.xpose.msra.mxu0 0
        %1657 = vmatprep.subr.bf16.mxu0 0
        %1658 = vmatpush1.bf16.xpose.msra.mxu0 0
        %1659 = vmatprep.subr.bf16.mxu0 0
        %1660 = vmatpush1.bf16.xpose.msra.mxu0 0
        %1661 = vmatprep.subr.bf16.mxu0 0
        %1662 = vmatpush1.bf16.xpose.msra.mxu0 0
        %1663 = vmatprep.subr.bf16.mxu0 0
        %1664 = vmatpush1.bf16.xpose.msra.mxu0 0
        %1665 = vmatprep.subr.bf16.mxu0 0
        %1666 = vmatpush1.bf16.xpose.msra.mxu0 0
        %1667 = vmatprep.subr.bf16.mxu0 0
        %1668 = vmatpush1.bf16.xpose.msra.mxu0 0
        %1669 = vmatprep.subr.bf16.mxu0 0
        %1670 = vmatpush1.bf16.xpose.msra.mxu0 0
        %1671 = vmatprep.subr.bf16.mxu0 0
        %1672 = vmatpush1.bf16.xpose.msra.mxu0 0
        %1673 = vmatprep.subr.bf16.mxu0 0
        %1674 = vmatpush1.bf16.xpose.msra.mxu0 0
        %1675 = vmatprep.subr.bf16.mxu0 0
        %1676 = vmatpush1.bf16.xpose.msra.mxu0 0
        %1677 = vmatprep.mubr.bf16.mxu0 0
        %1678 = vmatmul.mubr.bf16.gmra.mrb[0].mxu0 %v1640
        %v1679 = vpop.f32.mrb[0].mxu0
        %v1680 = vadd.f32 0.0, %v1679
        %v1681 = vpop.f32.mrb[0].mxu0
        %v1682 = vpop.f32.mrb[0].mxu0
        %v1683 = vpop.f32.mrb[0].mxu0
        %1684 = vdwg.mxu0
        %1686 = vrot.lane.b32.xlu0 %v1632, 96
        %v1687 = vpop.permute.xlu0 %1686
        %v1689 = vsel %vm1638, %v1632, 0
        %v1692 = vsel %vm1638, %v1687, 0
        %1694 = vmatprep.subr.bf16.mxu0 0
        %1695 = vmatpush1.bf16.xpose.msra.mxu0 %v1692
        %1696 = vmatprep.subr.bf16.mxu0 0
        %1697 = vmatpush1.bf16.xpose.msra.mxu0 0
        %1698 = vmatprep.subr.bf16.mxu0 0
        %1699 = vmatpush1.bf16.xpose.msra.mxu0 0
        %1700 = vmatprep.subr.bf16.mxu0 0
        %1701 = vmatpush1.bf16.xpose.msra.mxu0 0
        %1702 = vmatprep.subr.bf16.mxu0 0
        %1703 = vmatpush1.bf16.xpose.msra.mxu0 0
        %1704 = vmatprep.subr.bf16.mxu0 0
        %1705 = vmatpush1.bf16.xpose.msra.mxu0 0
        %1706 = vmatprep.subr.bf16.mxu0 0
        %1707 = vmatpush1.bf16.xpose.msra.mxu0 0
        %1708 = vmatprep.subr.bf16.mxu0 0
        %1709 = vmatpush1.bf16.xpose.msra.mxu0 0
        %1710 = vmatprep.subr.bf16.mxu0 0
        %1711 = vmatpush1.bf16.xpose.msra.mxu0 0
        %1712 = vmatprep.subr.bf16.mxu0 0
        %1713 = vmatpush1.bf16.xpose.msra.mxu0 0
        %1714 = vmatprep.subr.bf16.mxu0 0
        %1715 = vmatpush1.bf16.xpose.msra.mxu0 0
        %1716 = vmatprep.subr.bf16.mxu0 0
        %1717 = vmatpush1.bf16.xpose.msra.mxu0 0
        %1718 = vmatprep.subr.bf16.mxu0 0
        %1719 = vmatpush1.bf16.xpose.msra.mxu0 0
        %1720 = vmatprep.subr.bf16.mxu0 0
        %1721 = vmatpush1.bf16.xpose.msra.mxu0 0
        %1722 = vmatprep.subr.bf16.mxu0 0
        %1723 = vmatpush1.bf16.xpose.msra.mxu0 0
        %1724 = vmatprep.subr.bf16.mxu0 0
        %1725 = vmatpush1.bf16.xpose.msra.mxu0 0
        %1726 = vmatprep.mubr.bf16.mxu0 0
        %1727 = vmatmul.mubr.bf16.gmra.mrb[0].mxu0 %v1689
        %v1728 = vpop.f32.mrb[0].mxu0
        %v1729 = vadd.f32 0.0, %v1728
        %v1730 = vpop.f32.mrb[0].mxu0
        %v1731 = vpop.f32.mrb[0].mxu0
        %v1732 = vpop.f32.mrb[0].mxu0
        %1733 = vdwg.mxu0
        %1735 = vrot.lane.b32.xlu0 %v1633, 96
        %v1736 = vpop.permute.xlu0 %1735
        %v1738 = vsel %vm1638, %v1633, 0
        %v1741 = vsel %vm1638, %v1736, 0
        %1743 = vmatprep.subr.bf16.mxu0 0
        %1744 = vmatpush1.bf16.xpose.msra.mxu0 %v1741
        %1745 = vmatprep.subr.bf16.mxu0 0
        %1746 = vmatpush1.bf16.xpose.msra.mxu0 0
        %1747 = vmatprep.subr.bf16.mxu0 0
        %1748 = vmatpush1.bf16.xpose.msra.mxu0 0
        %1749 = vmatprep.subr.bf16.mxu0 0
        %1750 = vmatpush1.bf16.xpose.msra.mxu0 0
        %1751 = vmatprep.subr.bf16.mxu0 0
        %1752 = vmatpush1.bf16.xpose.msra.mxu0 0
        %1753 = vmatprep.subr.bf16.mxu0 0
        %1754 = vmatpush1.bf16.xpose.msra.mxu0 0
        %1755 = vmatprep.subr.bf16.mxu0 0
        %1756 = vmatpush1.bf16.xpose.msra.mxu0 0
        %1757 = vmatprep.subr.bf16.mxu0 0
        %1758 = vmatpush1.bf16.xpose.msra.mxu0 0
        %1759 = vmatprep.subr.bf16.mxu0 0
        %1760 = vmatpush1.bf16.xpose.msra.mxu0 0
        %1761 = vmatprep.subr.bf16.mxu0 0
        %1762 = vmatpush1.bf16.xpose.msra.mxu0 0
        %1763 = vmatprep.subr.bf16.mxu0 0
        %1764 = vmatpush1.bf16.xpose.msra.mxu0 0
        %1765 = vmatprep.subr.bf16.mxu0 0
        %1766 = vmatpush1.bf16.xpose.msra.mxu0 0
        %1767 = vmatprep.subr.bf16.mxu0 0
        %1768 = vmatpush1.bf16.xpose.msra.mxu0 0
        %1769 = vmatprep.subr.bf16.mxu0 0
        %1770 = vmatpush1.bf16.xpose.msra.mxu0 0
        %1771 = vmatprep.subr.bf16.mxu0 0
        %1772 = vmatpush1.bf16.xpose.msra.mxu0 0
        %1773 = vmatprep.subr.bf16.mxu0 0
        %1774 = vmatpush1.bf16.xpose.msra.mxu0 0
        %1775 = vmatprep.mubr.bf16.mxu0 0
        %1776 = vmatmul.mubr.bf16.gmra.mrb[0].mxu0 %v1738
        %v1777 = vpop.f32.mrb[0].mxu0
        %v1778 = vadd.f32 0.0, %v1777
        %v1779 = vpop.f32.mrb[0].mxu0
        %v1780 = vpop.f32.mrb[0].mxu0
        %v1781 = vpop.f32.mrb[0].mxu0
        %1782 = vdwg.mxu0
        %1784 = vrot.lane.b32.xlu0 %v1634, 96
        %v1785 = vpop.permute.xlu0 %1784
        %v1787 = vsel %vm1638, %v1634, 0
        %v1790 = vsel %vm1638, %v1785, 0
        %1792 = vmatprep.subr.bf16.mxu0 0
        %1793 = vmatpush1.bf16.xpose.msra.mxu0 %v1790
        %1794 = vmatprep.subr.bf16.mxu0 0
        %1795 = vmatpush1.bf16.xpose.msra.mxu0 0
        %1796 = vmatprep.subr.bf16.mxu0 0
        %1797 = vmatpush1.bf16.xpose.msra.mxu0 0
        %1798 = vmatprep.subr.bf16.mxu0 0
        %1799 = vmatpush1.bf16.xpose.msra.mxu0 0
        %1800 = vmatprep.subr.bf16.mxu0 0
        %1801 = vmatpush1.bf16.xpose.msra.mxu0 0
        %1802 = vmatprep.subr.bf16.mxu0 0
        %1803 = vmatpush1.bf16.xpose.msra.mxu0 0
        %1804 = vmatprep.subr.bf16.mxu0 0
        %1805 = vmatpush1.bf16.xpose.msra.mxu0 0
        %1806 = vmatprep.subr.bf16.mxu0 0
        %1807 = vmatpush1.bf16.xpose.msra.mxu0 0
        %1808 = vmatprep.subr.bf16.mxu0 0
        %1809 = vmatpush1.bf16.xpose.msra.mxu0 0
        %1810 = vmatprep.subr.bf16.mxu0 0
        %1811 = vmatpush1.bf16.xpose.msra.mxu0 0
        %1812 = vmatprep.subr.bf16.mxu0 0
        %1813 = vmatpush1.bf16.xpose.msra.mxu0 0
        %1814 = vmatprep.subr.bf16.mxu0 0
        %1815 = vmatpush1.bf16.xpose.msra.mxu0 0
        %1816 = vmatprep.subr.bf16.mxu0 0
        %1817 = vmatpush1.bf16.xpose.msra.mxu0 0
        %1818 = vmatprep.subr.bf16.mxu0 0
        %1819 = vmatpush1.bf16.xpose.msra.mxu0 0
        %1820 = vmatprep.subr.bf16.mxu0 0
        %1821 = vmatpush1.bf16.xpose.msra.mxu0 0
        %1822 = vmatprep.subr.bf16.mxu0 0
        %1823 = vmatpush1.bf16.xpose.msra.mxu0 0
        %1824 = vmatprep.mubr.bf16.mxu0 0
        %1825 = vmatmul.mubr.bf16.gmra.mrb[0].mxu0 %v1787
        %v1826 = vpop.f32.mrb[0].mxu0
        %v1827 = vadd.f32 0.0, %v1826
        %v1828 = vpop.f32.mrb[0].mxu0
        %v1829 = vpop.f32.mrb[0].mxu0
        %v1830 = vpop.f32.mrb[0].mxu0
        %1831 = vdwg.mxu0
        %v1832 = vsel %vm1638, %v1680, -inf
        %1833 = vmax.xlane.f32.xlu0 %v1832
        %v1834 = vpop.xlane.xlu0 %1833
        %v1835 = vsel %vm1638, %v1729, -inf
        %1836 = vmax.xlane.f32.xlu0 %v1835
        %v1837 = vpop.xlane.xlu0 %1836
        %v1838 = vsel %vm1638, %v1778, -inf
        %1839 = vmax.xlane.f32.xlu0 %v1838
        %v1840 = vpop.xlane.xlu0 %1839
        %v1841 = vsel %vm1638, %v1827, -inf
        %1842 = vmax.xlane.f32.xlu0 %v1841
        %v1843 = vpop.xlane.xlu0 %1842
        %v1844 = vsub.f32 %v1680, %v1834
        %v1845 = vsub.f32 %v1729, %v1837
        %v1846 = vsub.f32 %v1778, %v1840
        %v1847 = vsub.f32 %v1827, %v1843
        %v1848 = vmul.f32 %v1844, 1.442695
        %v1849 = vpow.pop %v1848
        %v1850 = vmul.f32 %v1845, 1.442695
        %v1851 = vpow.pop %v1850
        %v1852 = vmul.f32 %v1846, 1.442695
        %v1853 = vpow.pop %v1852
        %v1854 = vmul.f32 %v1847, 1.442695
        %v1855 = vpow.pop %v1854
        %v1856 = vsel %vm1638, %v1849, 0.0
        %1857 = vadd.xlane.f32.xlu0 %v1856
        %v1858 = vpop.xlane.xlu0 %1857
        %v1859 = vsel %vm1638, %v1851, 0.0
        %1860 = vadd.xlane.f32.xlu0 %v1859
        %v1861 = vpop.xlane.xlu0 %1860
        %v1862 = vsel %vm1638, %v1853, 0.0
        %1863 = vadd.xlane.f32.xlu0 %v1862
        %v1864 = vpop.xlane.xlu0 %1863
        %v1865 = vsel %vm1638, %v1855, 0.0
        %1866 = vadd.xlane.f32.xlu0 %v1865
        %v1867 = vpop.xlane.xlu0 %1866
        %v1868 = vrcp.pop %v1858
        %v1869 = vmul.f32 1.0, %v1868
        %v1870 = vrcp.pop %v1861
        %v1871 = vmul.f32 1.0, %v1870
        %v1872 = vrcp.pop %v1864
        %v1873 = vmul.f32 1.0, %v1872
        %v1874 = vrcp.pop %v1867
        %v1875 = vmul.f32 1.0, %v1874
        %v1876 = vmul.f32 %v1849, %v1869
        %v1877 = vmul.f32 %v1851, %v1871
        %v1878 = vmul.f32 %v1853, %v1873
        %v1879 = vmul.f32 %v1855, %v1875
        %v1880 = vpack.c.bf16 %v1876, %v1876
        %v1881 = vpack.c.bf16 %v1877, %v1877
        %v1882 = vpack.c.bf16 %v1878, %v1878
        %v1883 = vpack.c.bf16 %v1879, %v1879
        %v1884 = vpack.c.bf16 %v1538, %v1538
        %v1885 = vpack.c.bf16 %v1623, %v1623
        %v1886 = vpack.c.bf16 %v1626, %v1626
        %v1887 = vpack.c.bf16 %v1629, %v1629
        %1889 = vrot.lane.b32.xlu0 %v1884, 64
        %v1890 = vpop.permute.xlu0 %1889
        %v1892 = vsel %vm1638, %v1880, 0
        %vm1894 = vcmask 1043456
        %v1896 = vsel %vm1894, %v1890, 0
        %1898 = vmatprep.subr.bf16.mxu0 0
        %1899 = vmatpush1.bf16.msra.mxu0 %v1896
        %1900 = vmatprep.subr.bf16.mxu0 0
        %1901 = vmatpush1.bf16.msra.mxu0 0
        %1902 = vmatprep.subr.bf16.mxu0 0
        %1903 = vmatpush1.bf16.msra.mxu0 0
        %1904 = vmatprep.subr.bf16.mxu0 0
        %1905 = vmatpush1.bf16.msra.mxu0 0
        %1906 = vmatprep.subr.bf16.mxu0 0
        %1907 = vmatpush1.bf16.msra.mxu0 0
        %1908 = vmatprep.subr.bf16.mxu0 0
        %1909 = vmatpush1.bf16.msra.mxu0 0
        %1910 = vmatprep.subr.bf16.mxu0 0
        %1911 = vmatpush1.bf16.msra.mxu0 0
        %1912 = vmatprep.subr.bf16.mxu0 0
        %1913 = vmatpush1.bf16.msra.mxu0 0
        %1914 = vmatprep.subr.bf16.mxu0 0
        %1915 = vmatpush1.bf16.msra.mxu0 0
        %1916 = vmatprep.subr.bf16.mxu0 0
        %1917 = vmatpush1.bf16.msra.mxu0 0
        %1918 = vmatprep.subr.bf16.mxu0 0
        %1919 = vmatpush1.bf16.msra.mxu0 0
        %1920 = vmatprep.subr.bf16.mxu0 0
        %1921 = vmatpush1.bf16.msra.mxu0 0
        %1922 = vmatprep.subr.bf16.mxu0 0
        %1923 = vmatpush1.bf16.msra.mxu0 0
        %1924 = vmatprep.subr.bf16.mxu0 0
        %1925 = vmatpush1.bf16.msra.mxu0 0
        %1926 = vmatprep.subr.bf16.mxu0 0
        %1927 = vmatpush1.bf16.msra.mxu0 0
        %1928 = vmatprep.subr.bf16.mxu0 0
        %1929 = vmatpush1.bf16.msra.mxu0 0
        %1930 = vmatprep.mubr.bf16.mxu0 0
        %1931 = vmatmul.mubr.bf16.gmra.mrb[0].mxu0 %v1892
        %v1932 = vpop.f32.mrb[0].mxu0
        %v1933 = vadd.f32 0.0, %v1932
        %v1934 = vpop.f32.mrb[0].mxu0
        %v1935 = vpop.f32.mrb[0].mxu0
        %v1936 = vpop.f32.mrb[0].mxu0
        %1937 = vdwg.mxu0
        %1939 = vrot.lane.b32.xlu0 %v1885, 64
        %v1940 = vpop.permute.xlu0 %1939
        %v1942 = vsel %vm1638, %v1881, 0
        %v1945 = vsel %vm1894, %v1940, 0
        %1947 = vmatprep.subr.bf16.mxu0 0
        %1948 = vmatpush1.bf16.msra.mxu0 %v1945
        %1949 = vmatprep.subr.bf16.mxu0 0
        %1950 = vmatpush1.bf16.msra.mxu0 0
        %1951 = vmatprep.subr.bf16.mxu0 0
        %1952 = vmatpush1.bf16.msra.mxu0 0
        %1953 = vmatprep.subr.bf16.mxu0 0
        %1954 = vmatpush1.bf16.msra.mxu0 0
        %1955 = vmatprep.subr.bf16.mxu0 0
        %1956 = vmatpush1.bf16.msra.mxu0 0
        %1957 = vmatprep.subr.bf16.mxu0 0
        %1958 = vmatpush1.bf16.msra.mxu0 0
        %1959 = vmatprep.subr.bf16.mxu0 0
        %1960 = vmatpush1.bf16.msra.mxu0 0
        %1961 = vmatprep.subr.bf16.mxu0 0
        %1962 = vmatpush1.bf16.msra.mxu0 0
        %1963 = vmatprep.subr.bf16.mxu0 0
        %1964 = vmatpush1.bf16.msra.mxu0 0
        %1965 = vmatprep.subr.bf16.mxu0 0
        %1966 = vmatpush1.bf16.msra.mxu0 0
        %1967 = vmatprep.subr.bf16.mxu0 0
        %1968 = vmatpush1.bf16.msra.mxu0 0
        %1969 = vmatprep.subr.bf16.mxu0 0
        %1970 = vmatpush1.bf16.msra.mxu0 0
        %1971 = vmatprep.subr.bf16.mxu0 0
        %1972 = vmatpush1.bf16.msra.mxu0 0
        %1973 = vmatprep.subr.bf16.mxu0 0
        %1974 = vmatpush1.bf16.msra.mxu0 0
        %1975 = vmatprep.subr.bf16.mxu0 0
        %1976 = vmatpush1.bf16.msra.mxu0 0
        %1977 = vmatprep.subr.bf16.mxu0 0
        %1978 = vmatpush1.bf16.msra.mxu0 0
        %1979 = vmatprep.mubr.bf16.mxu0 0
        %1980 = vmatmul.mubr.bf16.gmra.mrb[0].mxu0 %v1942
        %v1981 = vpop.f32.mrb[0].mxu0
        %v1982 = vadd.f32 0.0, %v1981
        %v1983 = vpop.f32.mrb[0].mxu0
        %v1984 = vpop.f32.mrb[0].mxu0
        %v1985 = vpop.f32.mrb[0].mxu0
        %1986 = vdwg.mxu0
        %1988 = vrot.lane.b32.xlu0 %v1886, 64
        %v1989 = vpop.permute.xlu0 %1988
        %v1991 = vsel %vm1638, %v1882, 0
        %v1994 = vsel %vm1894, %v1989, 0
        %1996 = vmatprep.subr.bf16.mxu0 0
        %1997 = vmatpush1.bf16.msra.mxu0 %v1994
        %1998 = vmatprep.subr.bf16.mxu0 0
        %1999 = vmatpush1.bf16.msra.mxu0 0
        %2000 = vmatprep.subr.bf16.mxu0 0
        %2001 = vmatpush1.bf16.msra.mxu0 0
        %2002 = vmatprep.subr.bf16.mxu0 0
        %2003 = vmatpush1.bf16.msra.mxu0 0
        %2004 = vmatprep.subr.bf16.mxu0 0
        %2005 = vmatpush1.bf16.msra.mxu0 0
        %2006 = vmatprep.subr.bf16.mxu0 0
        %2007 = vmatpush1.bf16.msra.mxu0 0
        %2008 = vmatprep.subr.bf16.mxu0 0
        %2009 = vmatpush1.bf16.msra.mxu0 0
        %2010 = vmatprep.subr.bf16.mxu0 0
        %2011 = vmatpush1.bf16.msra.mxu0 0
        %2012 = vmatprep.subr.bf16.mxu0 0
        %2013 = vmatpush1.bf16.msra.mxu0 0
        %2014 = vmatprep.subr.bf16.mxu0 0
        %2015 = vmatpush1.bf16.msra.mxu0 0
        %2016 = vmatprep.subr.bf16.mxu0 0
        %2017 = vmatpush1.bf16.msra.mxu0 0
        %2018 = vmatprep.subr.bf16.mxu0 0
        %2019 = vmatpush1.bf16.msra.mxu0 0
        %2020 = vmatprep.subr.bf16.mxu0 0
        %2021 = vmatpush1.bf16.msra.mxu0 0
        %2022 = vmatprep.subr.bf16.mxu0 0
        %2023 = vmatpush1.bf16.msra.mxu0 0
        %2024 = vmatprep.subr.bf16.mxu0 0
        %2025 = vmatpush1.bf16.msra.mxu0 0
        %2026 = vmatprep.subr.bf16.mxu0 0
        %2027 = vmatpush1.bf16.msra.mxu0 0
        %2028 = vmatprep.mubr.bf16.mxu0 0
        %2029 = vmatmul.mubr.bf16.gmra.mrb[0].mxu0 %v1991
        %v2030 = vpop.f32.mrb[0].mxu0
        %v2031 = vadd.f32 0.0, %v2030
        %v2032 = vpop.f32.mrb[0].mxu0
        %v2033 = vpop.f32.mrb[0].mxu0
        %v2034 = vpop.f32.mrb[0].mxu0
        %2035 = vdwg.mxu0
        %2037 = vrot.lane.b32.xlu0 %v1887, 64
        %v2038 = vpop.permute.xlu0 %2037
        %v2040 = vsel %vm1638, %v1883, 0
        %v2043 = vsel %vm1894, %v2038, 0
        %2045 = vmatprep.subr.bf16.mxu0 0
        %2046 = vmatpush1.bf16.msra.mxu0 %v2043
        %2047 = vmatprep.subr.bf16.mxu0 0
        %2048 = vmatpush1.bf16.msra.mxu0 0
        %2049 = vmatprep.subr.bf16.mxu0 0
        %2050 = vmatpush1.bf16.msra.mxu0 0
        %2051 = vmatprep.subr.bf16.mxu0 0
        %2052 = vmatpush1.bf16.msra.mxu0 0
        %2053 = vmatprep.subr.bf16.mxu0 0
        %2054 = vmatpush1.bf16.msra.mxu0 0
        %2055 = vmatprep.subr.bf16.mxu0 0
        %2056 = vmatpush1.bf16.msra.mxu0 0
        %2057 = vmatprep.subr.bf16.mxu0 0
        %2058 = vmatpush1.bf16.msra.mxu0 0
        %2059 = vmatprep.subr.bf16.mxu0 0
        %2060 = vmatpush1.bf16.msra.mxu0 0
        %2061 = vmatprep.subr.bf16.mxu0 0
        %2062 = vmatpush1.bf16.msra.mxu0 0
        %2063 = vmatprep.subr.bf16.mxu0 0
        %2064 = vmatpush1.bf16.msra.mxu0 0
        %2065 = vmatprep.subr.bf16.mxu0 0
        %2066 = vmatpush1.bf16.msra.mxu0 0
        %2067 = vmatprep.subr.bf16.mxu0 0
        %2068 = vmatpush1.bf16.msra.mxu0 0
        %2069 = vmatprep.subr.bf16.mxu0 0
        %2070 = vmatpush1.bf16.msra.mxu0 0
        %2071 = vmatprep.subr.bf16.mxu0 0
        %2072 = vmatpush1.bf16.msra.mxu0 0
        %2073 = vmatprep.subr.bf16.mxu0 0
        %2074 = vmatpush1.bf16.msra.mxu0 0
        %2075 = vmatprep.subr.bf16.mxu0 0
        %2076 = vmatpush1.bf16.msra.mxu0 0
        %2077 = vmatprep.mubr.bf16.mxu0 0
        %2078 = vmatmul.mubr.bf16.gmra.mrb[0].mxu0 %v2040
        %v2079 = vpop.f32.mrb[0].mxu0
        %v2080 = vadd.f32 0.0, %v2079
        %v2081 = vpop.f32.mrb[0].mxu0
        %v2082 = vpop.f32.mrb[0].mxu0
        %v2083 = vpop.f32.mrb[0].mxu0
        %2084 = vdwg.mxu0
        %v2085 = vpack.c.bf16 %v1933, %v1933
        %v2086 = vpack.c.bf16 %v1982, %v1982
        %v2087 = vpack.c.bf16 %v2031, %v2031
        %v2088 = vpack.c.bf16 %v2080, %v2080
        %v2089 = vld [vmem:[#allocation17] sm:$0xf]
        %v2090 = vld [vmem:[#allocation17 + $0x4] sm:$0xf]
        %v2091 = vld [vmem:[#allocation17 + $0x8] sm:$0xf]
        %v2092 = vld [vmem:[#allocation17 + $0xc] sm:$0xf]
        %v2094 = vsel %vm1638, %v2085, 0
        %v2097 = vsel %vm1894, %v2089, 0
        %2099 = vmatprep.subr.bf16.mxu0 0
        %2100 = vmatpush1.bf16.msra.mxu0 %v2097
        %2101 = vmatprep.subr.bf16.mxu0 0
        %2102 = vmatpush1.bf16.msra.mxu0 0
        %2103 = vmatprep.subr.bf16.mxu0 0
        %2104 = vmatpush1.bf16.msra.mxu0 0
        %2105 = vmatprep.subr.bf16.mxu0 0
        %2106 = vmatpush1.bf16.msra.mxu0 0
        %2107 = vmatprep.subr.bf16.mxu0 0
        %2108 = vmatpush1.bf16.msra.mxu0 0
        %2109 = vmatprep.subr.bf16.mxu0 0
        %2110 = vmatpush1.bf16.msra.mxu0 0
        %2111 = vmatprep.subr.bf16.mxu0 0
        %2112 = vmatpush1.bf16.msra.mxu0 0
        %2113 = vmatprep.subr.bf16.mxu0 0
        %2114 = vmatpush1.bf16.msra.mxu0 0
        %2115 = vmatprep.subr.bf16.mxu0 0
        %2116 = vmatpush1.bf16.msra.mxu0 0
        %2117 = vmatprep.subr.bf16.mxu0 0
        %2118 = vmatpush1.bf16.msra.mxu0 0
        %2119 = vmatprep.subr.bf16.mxu0 0
        %2120 = vmatpush1.bf16.msra.mxu0 0
        %2121 = vmatprep.subr.bf16.mxu0 0
        %2122 = vmatpush1.bf16.msra.mxu0 0
        %2123 = vmatprep.subr.bf16.mxu0 0
        %2124 = vmatpush1.bf16.msra.mxu0 0
        %2125 = vmatprep.subr.bf16.mxu0 0
        %2126 = vmatpush1.bf16.msra.mxu0 0
        %2127 = vmatprep.subr.bf16.mxu0 0
        %2128 = vmatpush1.bf16.msra.mxu0 0
        %2129 = vmatprep.subr.bf16.mxu0 0
        %2130 = vmatpush1.bf16.msra.mxu0 0
        %2131 = vmatprep.mubr.bf16.mxu0 0
        %2132 = vmatmul.mubr.bf16.gmra.mrb[0].mxu0 %v2094
        %v2133 = vpop.f32.mrb[0].mxu0
        %v2134 = vadd.f32 0.0, %v2133
        %v2135 = vpop.f32.mrb[0].mxu0
        %v2136 = vpop.f32.mrb[0].mxu0
        %v2137 = vpop.f32.mrb[0].mxu0
        %2138 = vdwg.mxu0
        %v2140 = vsel %vm1638, %v2086, 0
        %v2143 = vsel %vm1894, %v2090, 0
        %2145 = vmatprep.subr.bf16.mxu0 0
        %2146 = vmatpush1.bf16.msra.mxu0 %v2143
        %2147 = vmatprep.subr.bf16.mxu0 0
        %2148 = vmatpush1.bf16.msra.mxu0 0
        %2149 = vmatprep.subr.bf16.mxu0 0
        %2150 = vmatpush1.bf16.msra.mxu0 0
        %2151 = vmatprep.subr.bf16.mxu0 0
        %2152 = vmatpush1.bf16.msra.mxu0 0
        %2153 = vmatprep.subr.bf16.mxu0 0
        %2154 = vmatpush1.bf16.msra.mxu0 0
        %2155 = vmatprep.subr.bf16.mxu0 0
        %2156 = vmatpush1.bf16.msra.mxu0 0
        %2157 = vmatprep.subr.bf16.mxu0 0
        %2158 = vmatpush1.bf16.msra.mxu0 0
        %2159 = vmatprep.subr.bf16.mxu0 0
        %2160 = vmatpush1.bf16.msra.mxu0 0
        %2161 = vmatprep.subr.bf16.mxu0 0
        %2162 = vmatpush1.bf16.msra.mxu0 0
        %2163 = vmatprep.subr.bf16.mxu0 0
        %2164 = vmatpush1.bf16.msra.mxu0 0
        %2165 = vmatprep.subr.bf16.mxu0 0
        %2166 = vmatpush1.bf16.msra.mxu0 0
        %2167 = vmatprep.subr.bf16.mxu0 0
        %2168 = vmatpush1.bf16.msra.mxu0 0
        %2169 = vmatprep.subr.bf16.mxu0 0
        %2170 = vmatpush1.bf16.msra.mxu0 0
        %2171 = vmatprep.subr.bf16.mxu0 0
        %2172 = vmatpush1.bf16.msra.mxu0 0
        %2173 = vmatprep.subr.bf16.mxu0 0
        %2174 = vmatpush1.bf16.msra.mxu0 0
        %2175 = vmatprep.subr.bf16.mxu0 0
        %2176 = vmatpush1.bf16.msra.mxu0 0
        %2177 = vmatprep.mubr.bf16.mxu0 0
        %2178 = vmatmul.mubr.bf16.gmra.mrb[0].mxu0 %v2140
        %v2179 = vpop.f32.mrb[0].mxu0
        %v2180 = vadd.f32 0.0, %v2179
        %v2181 = vpop.f32.mrb[0].mxu0
        %v2182 = vpop.f32.mrb[0].mxu0
        %v2183 = vpop.f32.mrb[0].mxu0
        %2184 = vdwg.mxu0
        %v2186 = vsel %vm1638, %v2087, 0
        %v2189 = vsel %vm1894, %v2091, 0
        %2191 = vmatprep.subr.bf16.mxu0 0
        %2192 = vmatpush1.bf16.msra.mxu0 %v2189
        %2193 = vmatprep.subr.bf16.mxu0 0
        %2194 = vmatpush1.bf16.msra.mxu0 0
        %2195 = vmatprep.subr.bf16.mxu0 0
        %2196 = vmatpush1.bf16.msra.mxu0 0
        %2197 = vmatprep.subr.bf16.mxu0 0
        %2198 = vmatpush1.bf16.msra.mxu0 0
        %2199 = vmatprep.subr.bf16.mxu0 0
        %2200 = vmatpush1.bf16.msra.mxu0 0
        %2201 = vmatprep.subr.bf16.mxu0 0
        %2202 = vmatpush1.bf16.msra.mxu0 0
        %2203 = vmatprep.subr.bf16.mxu0 0
        %2204 = vmatpush1.bf16.msra.mxu0 0
        %2205 = vmatprep.subr.bf16.mxu0 0
        %2206 = vmatpush1.bf16.msra.mxu0 0
        %2207 = vmatprep.subr.bf16.mxu0 0
        %2208 = vmatpush1.bf16.msra.mxu0 0
        %2209 = vmatprep.subr.bf16.mxu0 0
        %2210 = vmatpush1.bf16.msra.mxu0 0
        %2211 = vmatprep.subr.bf16.mxu0 0
        %2212 = vmatpush1.bf16.msra.mxu0 0
        %2213 = vmatprep.subr.bf16.mxu0 0
        %2214 = vmatpush1.bf16.msra.mxu0 0
        %2215 = vmatprep.subr.bf16.mxu0 0
        %2216 = vmatpush1.bf16.msra.mxu0 0
        %2217 = vmatprep.subr.bf16.mxu0 0
        %2218 = vmatpush1.bf16.msra.mxu0 0
        %2219 = vmatprep.subr.bf16.mxu0 0
        %2220 = vmatpush1.bf16.msra.mxu0 0
        %2221 = vmatprep.subr.bf16.mxu0 0
        %2222 = vmatpush1.bf16.msra.mxu0 0
        %2223 = vmatprep.mubr.bf16.mxu0 0
        %2224 = vmatmul.mubr.bf16.gmra.mrb[0].mxu0 %v2186
        %v2225 = vpop.f32.mrb[0].mxu0
        %v2226 = vadd.f32 0.0, %v2225
        %v2227 = vpop.f32.mrb[0].mxu0
        %v2228 = vpop.f32.mrb[0].mxu0
        %v2229 = vpop.f32.mrb[0].mxu0
        %2230 = vdwg.mxu0
        %v2232 = vsel %vm1638, %v2088, 0
        %v2235 = vsel %vm1894, %v2092, 0
        %2237 = vmatprep.subr.bf16.mxu0 0
        %2238 = vmatpush1.bf16.msra.mxu0 %v2235
        %2239 = vmatprep.subr.bf16.mxu0 0
        %2240 = vmatpush1.bf16.msra.mxu0 0
        %2241 = vmatprep.subr.bf16.mxu0 0
        %2242 = vmatpush1.bf16.msra.mxu0 0
        %2243 = vmatprep.subr.bf16.mxu0 0
        %2244 = vmatpush1.bf16.msra.mxu0 0
        %2245 = vmatprep.subr.bf16.mxu0 0
        %2246 = vmatpush1.bf16.msra.mxu0 0
        %2247 = vmatprep.subr.bf16.mxu0 0
        %2248 = vmatpush1.bf16.msra.mxu0 0
        %2249 = vmatprep.subr.bf16.mxu0 0
        %2250 = vmatpush1.bf16.msra.mxu0 0
        %2251 = vmatprep.subr.bf16.mxu0 0
        %2252 = vmatpush1.bf16.msra.mxu0 0
        %2253 = vmatprep.subr.bf16.mxu0 0
        %2254 = vmatpush1.bf16.msra.mxu0 0
        %2255 = vmatprep.subr.bf16.mxu0 0
        %2256 = vmatpush1.bf16.msra.mxu0 0
        %2257 = vmatprep.subr.bf16.mxu0 0
        %2258 = vmatpush1.bf16.msra.mxu0 0
        %2259 = vmatprep.subr.bf16.mxu0 0
        %2260 = vmatpush1.bf16.msra.mxu0 0
        %2261 = vmatprep.subr.bf16.mxu0 0
        %2262 = vmatpush1.bf16.msra.mxu0 0
        %2263 = vmatprep.subr.bf16.mxu0 0
        %2264 = vmatpush1.bf16.msra.mxu0 0
        %2265 = vmatprep.subr.bf16.mxu0 0
        %2266 = vmatpush1.bf16.msra.mxu0 0
        %2267 = vmatprep.subr.bf16.mxu0 0
        %2268 = vmatpush1.bf16.msra.mxu0 0
        %2269 = vmatprep.mubr.bf16.mxu0 0
        %2270 = vmatmul.mubr.bf16.gmra.mrb[0].mxu0 %v2232
        %v2271 = vpop.f32.mrb[0].mxu0
        %v2272 = vadd.f32 0.0, %v2271
        %v2273 = vpop.f32.mrb[0].mxu0
        %v2274 = vpop.f32.mrb[0].mxu0
        %v2275 = vpop.f32.mrb[0].mxu0
        %2276 = vdwg.mxu0
        %v2277 = vsel %vm1499, %v2134, 0.0
        %v2278 = vsel %vm1499, %v2180, 0.0
        %v2279 = vadd.f32 %v2277, %v2278
        %v2280 = vsel %vm1499, %v2226, 0.0
        %v2281 = vadd.f32 %v2279, %v2280
        %v2282 = vsel %vm1499, %v2272, 0.0
        %v2283 = vadd.f32 %v2281, %v2282
        %v2284 = vld [vmem:[#allocation19] sm:$0x1]
        %v2286 = vlaneseq
        %v2287 = vshrl.u32 %v2286, 7
        %v2288 = vsub.s32 0, %v2287
        %v2289 = vrot.slane %v2284, %v2288
        %v2291 = vadd.f32 %v2283, %v2289
        %v2292 = vadd.f32 %v1468, %v2291
        %v2293 = vsel %vm1499, %v2292, 0.0
        %2294 = vadd.xlane.f32.xlu0 %v2293
        %v2295 = vpop.xlane.xlu0 %2294
        %v2296 = vrcp.pop 32.0
        %v2297 = vmul.f32 %v2295, %v2296
        %v2298 = vsub.f32 %v2292, %v2297
        %v2299 = vmul.f32 %v2298, %v2298
        %v2300 = vsel %vm1499, %v2299, 0.0
        %2301 = vadd.xlane.f32.xlu0 %v2300
        %v2302 = vpop.xlane.xlu0 %2301
        %v2303 = vmul.f32 %v2302, %v2296
        %v2304 = vadd.f32 %v2303, 1e-05
        %v2305 = vrsqrt.pop %v2304
        %v2306 = vmul.f32 %v2298, %v2305
        %v2307 = vld [vmem:[#allocation20] sm:$0x1]
        %v2309 = vlaneseq
        %v2310 = vshrl.u32 %v2309, 7
        %v2311 = vsub.s32 0, %v2310
        %v2312 = vrot.slane %v2307, %v2311
        %v2314 = vmul.f32 %v2306, %v2312
        %v2315 = vld [vmem:[#allocation22] sm:$0x1]
        %v2317 = vlaneseq
        %v2318 = vshrl.u32 %v2317, 7
        %v2319 = vsub.s32 0, %v2318
        %v2320 = vrot.slane %v2315, %v2319
        %v2322 = vadd.f32 %v2314, %v2320
        %v2323 = vpack.c.bf16 %v2322, %v2322
        %v2324 = vld [vmem:[#allocation23] sm:$0xf]
        %v2325 = vld [vmem:[#allocation23 + $0x4] sm:$0xf]
        %v2326 = vld [vmem:[#allocation23 + $0x8] sm:$0xf]
        %v2327 = vld [vmem:[#allocation23 + $0xc] sm:$0xf]
        %v2328 = vld [vmem:[#allocation25] sm:$0x1]
        %v2330 = vlaneseq
        %v2331 = vshrl.u32 %v2330, 7
        %v2332 = vsub.s32 0, %v2331
        %v2333 = vrot.slane %v2328, %v2332
        %v2339 = vunpack.c.l.b16 %v2324
        %v2340 = vunpack.c.l.b16 %v2325
        %v2341 = vunpack.c.l.b16 %v2326
        %v2342 = vunpack.c.l.b16 %v2327
        %v2343 = vpack.c.b16 %v2340, %v2339
        %v2344 = vpack.c.b16 %v2342, %v2341
        %v2348 = vsel %vm1499, %v2323, 0
        %2350 = vmatprep.subr.bf16.mxu0 0
        %2351 = vmatpush1.bf16.msra.mxu0 %v2343
        %2352 = vmatprep.subr.bf16.mxu0 0
        %2353 = vmatpush1.bf16.msra.mxu0 %v2344
        %2354 = vmatprep.subr.bf16.mxu0 0
        %2355 = vmatpush1.bf16.msra.mxu0 0
        %2356 = vmatprep.subr.bf16.mxu0 0
        %2357 = vmatpush1.bf16.msra.mxu0 0
        %2358 = vmatprep.subr.bf16.mxu0 0
        %2359 = vmatpush1.bf16.msra.mxu0 0
        %2360 = vmatprep.subr.bf16.mxu0 0
        %2361 = vmatpush1.bf16.msra.mxu0 0
        %2362 = vmatprep.subr.bf16.mxu0 0
        %2363 = vmatpush1.bf16.msra.mxu0 0
        %2364 = vmatprep.subr.bf16.mxu0 0
        %2365 = vmatpush1.bf16.msra.mxu0 0
        %2366 = vmatprep.subr.bf16.mxu0 0
        %2367 = vmatpush1.bf16.msra.mxu0 0
        %2368 = vmatprep.subr.bf16.mxu0 0
        %2369 = vmatpush1.bf16.msra.mxu0 0
        %2370 = vmatprep.subr.bf16.mxu0 0
        %2371 = vmatpush1.bf16.msra.mxu0 0
        %2372 = vmatprep.subr.bf16.mxu0 0
        %2373 = vmatpush1.bf16.msra.mxu0 0
        %2374 = vmatprep.subr.bf16.mxu0 0
        %2375 = vmatpush1.bf16.msra.mxu0 0
        %2376 = vmatprep.subr.bf16.mxu0 0
        %2377 = vmatpush1.bf16.msra.mxu0 0
        %2378 = vmatprep.subr.bf16.mxu0 0
        %2379 = vmatpush1.bf16.msra.mxu0 0
        %2380 = vmatprep.subr.bf16.mxu0 0
        %2381 = vmatpush1.bf16.msra.mxu0 0
        %2382 = vmatprep.mubr.bf16.mxu0 0
        %2383 = vmatmul.mubr.bf16.gmra.mrb[0].mxu0 %v2348
        %v2384 = vpop.f32.mrb[0].mxu0
        %v2385 = vadd.f32 %v2333, %v2384
        %v2386 = vpop.f32.mrb[0].mxu0
        %v2387 = vpop.f32.mrb[0].mxu0
        %v2388 = vpop.f32.mrb[0].mxu0
        %2389 = vdwg.mxu0
        %2391 = vrot.lane.b32.xlu0 %v2385, 120
        %v2392 = vpop.permute.xlu0 %2391
        %2394 = vrot.lane.b32.xlu0 %v2385, 112
        %v2395 = vpop.permute.xlu0 %2394
        %2397 = vrot.lane.b32.xlu0 %v2385, 104
        %v2398 = vpop.permute.xlu0 %2397
        %v2400 = vpack.c.bf16 %v1470, %v1470
        %v2401 = vld [vmem:[#allocation26] sm:$0xf]
        %v2402 = vld [vmem:[#allocation26 + $0x4] sm:$0xf]
        %v2403 = vld [vmem:[#allocation26 + $0x8] sm:$0xf]
        %v2404 = vld [vmem:[#allocation26 + $0xc] sm:$0xf]
        %v2405 = vld [vmem:[#allocation28] sm:$0x1]
        %v2407 = vlaneseq
        %v2408 = vshrl.u32 %v2407, 7
        %v2409 = vsub.s32 0, %v2408
        %v2410 = vrot.slane %v2405, %v2409
        %v2416 = vunpack.c.l.b16 %v2401
        %v2417 = vunpack.c.l.b16 %v2402
        %v2418 = vunpack.c.l.b16 %v2403
        %v2419 = vunpack.c.l.b16 %v2404
        %v2420 = vpack.c.b16 %v2417, %v2416
        %v2421 = vpack.c.b16 %v2419, %v2418
        %v2425 = vsel %vm1499, %v2400, 0
        %2427 = vmatprep.subr.bf16.mxu0 0
        %2428 = vmatpush1.bf16.msra.mxu0 %v2420
        %2429 = vmatprep.subr.bf16.mxu0 0
        %2430 = vmatpush1.bf16.msra.mxu0 %v2421
        %2431 = vmatprep.subr.bf16.mxu0 0
        %2432 = vmatpush1.bf16.msra.mxu0 0
        %2433 = vmatprep.subr.bf16.mxu0 0
        %2434 = vmatpush1.bf16.msra.mxu0 0
        %2435 = vmatprep.subr.bf16.mxu0 0
        %2436 = vmatpush1.bf16.msra.mxu0 0
        %2437 = vmatprep.subr.bf16.mxu0 0
        %2438 = vmatpush1.bf16.msra.mxu0 0
        %2439 = vmatprep.subr.bf16.mxu0 0
        %2440 = vmatpush1.bf16.msra.mxu0 0
        %2441 = vmatprep.subr.bf16.mxu0 0
        %2442 = vmatpush1.bf16.msra.mxu0 0
        %2443 = vmatprep.subr.bf16.mxu0 0
        %2444 = vmatpush1.bf16.msra.mxu0 0
        %2445 = vmatprep.subr.bf16.mxu0 0
        %2446 = vmatpush1.bf16.msra.mxu0 0
        %2447 = vmatprep.subr.bf16.mxu0 0
        %2448 = vmatpush1.bf16.msra.mxu0 0
        %2449 = vmatprep.subr.bf16.mxu0 0
        %2450 = vmatpush1.bf16.msra.mxu0 0
        %2451 = vmatprep.subr.bf16.mxu0 0
        %2452 = vmatpush1.bf16.msra.mxu0 0
        %2453 = vmatprep.subr.bf16.mxu0 0
        %2454 = vmatpush1.bf16.msra.mxu0 0
        %2455 = vmatprep.subr.bf16.mxu0 0
        %2456 = vmatpush1.bf16.msra.mxu0 0
        %2457 = vmatprep.subr.bf16.mxu0 0
        %2458 = vmatpush1.bf16.msra.mxu0 0
        %2459 = vmatprep.mubr.bf16.mxu0 0
        %2460 = vmatmul.mubr.bf16.gmra.mrb[0].mxu0 %v2425
        %v2461 = vpop.f32.mrb[0].mxu0
        %v2462 = vadd.f32 %v2410, %v2461
        %v2463 = vpop.f32.mrb[0].mxu0
        %v2464 = vpop.f32.mrb[0].mxu0
        %v2465 = vpop.f32.mrb[0].mxu0
        %2466 = vdwg.mxu0
        %2468 = vrot.lane.b32.xlu0 %v2462, 120
        %v2469 = vpop.permute.xlu0 %2468
        %2471 = vrot.lane.b32.xlu0 %v2462, 112
        %v2472 = vpop.permute.xlu0 %2471
        %2474 = vrot.lane.b32.xlu0 %v2462, 104
        %v2475 = vpop.permute.xlu0 %2474
        %v2477 = vpack.c.bf16 %v1472, %v1471
        %v2478 = vld [vmem:[#allocation29] sm:$0xf]
        %v2479 = vld [vmem:[#allocation29 + $0x4] sm:$0xf]
        %v2480 = vld [vmem:[#allocation29 + $0x8] sm:$0xf]
        %v2481 = vld [vmem:[#allocation29 + $0xc] sm:$0xf]
        %v2482 = vld [vmem:[#allocation31] sm:$0x1]
        %v2484 = vlaneseq
        %v2485 = vshrl.u32 %v2484, 7
        %v2486 = vsub.s32 0, %v2485
        %v2487 = vrot.slane %v2482, %v2486
        %v2493 = vunpack.c.l.b16 %v2478
        %v2494 = vunpack.c.l.b16 %v2479
        %v2495 = vunpack.c.l.b16 %v2480
        %v2496 = vunpack.c.l.b16 %v2481
        %v2497 = vpack.c.b16 %v2494, %v2493
        %v2498 = vpack.c.b16 %v2496, %v2495
        %v2502 = vsel %vm1499, %v2477, 0
        %2504 = vmatprep.subr.bf16.mxu0 0
        %2505 = vmatpush1.bf16.msra.mxu0 %v2497
        %2506 = vmatprep.subr.bf16.mxu0 0
        %2507 = vmatpush1.bf16.msra.mxu0 %v2498
        %2508 = vmatprep.subr.bf16.mxu0 0
        %2509 = vmatpush1.bf16.msra.mxu0 0
        %2510 = vmatprep.subr.bf16.mxu0 0
        %2511 = vmatpush1.bf16.msra.mxu0 0
        %2512 = vmatprep.subr.bf16.mxu0 0
        %2513 = vmatpush1.bf16.msra.mxu0 0
        %2514 = vmatprep.subr.bf16.mxu0 0
        %2515 = vmatpush1.bf16.msra.mxu0 0
        %2516 = vmatprep.subr.bf16.mxu0 0
        %2517 = vmatpush1.bf16.msra.mxu0 0
        %2518 = vmatprep.subr.bf16.mxu0 0
        %2519 = vmatpush1.bf16.msra.mxu0 0
        %2520 = vmatprep.subr.bf16.mxu0 0
        %2521 = vmatpush1.bf16.msra.mxu0 0
        %2522 = vmatprep.subr.bf16.mxu0 0
        %2523 = vmatpush1.bf16.msra.mxu0 0
        %2524 = vmatprep.subr.bf16.mxu0 0
        %2525 = vmatpush1.bf16.msra.mxu0 0
        %2526 = vmatprep.subr.bf16.mxu0 0
        %2527 = vmatpush1.bf16.msra.mxu0 0
        %2528 = vmatprep.subr.bf16.mxu0 0
        %2529 = vmatpush1.bf16.msra.mxu0 0
        %2530 = vmatprep.subr.bf16.mxu0 0
        %2531 = vmatpush1.bf16.msra.mxu0 0
        %2532 = vmatprep.subr.bf16.mxu0 0
        %2533 = vmatpush1.bf16.msra.mxu0 0
        %2534 = vmatprep.subr.bf16.mxu0 0
        %2535 = vmatpush1.bf16.msra.mxu0 0
        %2536 = vmatprep.mubr.bf16.mxu0 0
        %2537 = vmatmul.mubr.bf16.gmra.mrb[0].mxu0 %v2502
        %v2538 = vpop.f32.mrb[0].mxu0
        %v2539 = vadd.f32 %v2487, %v2538
        %v2540 = vpop.f32.mrb[0].mxu0
        %v2541 = vpop.f32.mrb[0].mxu0
        %v2542 = vadd.f32 %v2487, %v2541
        %v2543 = vpop.f32.mrb[0].mxu0
        %2544 = vdwg.mxu0
        %2547 = vrot.lane.b32.xlu0 %v2539, 120
        %v2548 = vpop.permute.xlu0 %2547
        %2549 = vrot.lane.b32.xlu0 %v2542, 120
        %v2550 = vpop.permute.xlu0 %2549
        %2553 = vrot.lane.b32.xlu0 %v2539, 112
        %v2554 = vpop.permute.xlu0 %2553
        %2555 = vrot.lane.b32.xlu0 %v2542, 112
        %v2556 = vpop.permute.xlu0 %2555
        %2559 = vrot.lane.b32.xlu0 %v2539, 104
        %v2560 = vpop.permute.xlu0 %2559
        %2561 = vrot.lane.b32.xlu0 %v2542, 104
        %v2562 = vpop.permute.xlu0 %2561
        %v2565 = vpack.c.bf16 %v1474, %v1473
        %v2566 = vld [vmem:[#allocation32] sm:$0xf]
        %v2567 = vld [vmem:[#allocation32 + $0x4] sm:$0xf]
        %v2568 = vld [vmem:[#allocation32 + $0x8] sm:$0xf]
        %v2569 = vld [vmem:[#allocation32 + $0xc] sm:$0xf]
        %v2570 = vld [vmem:[#allocation34] sm:$0x1]
        %v2572 = vlaneseq
        %v2573 = vshrl.u32 %v2572, 7
        %v2574 = vsub.s32 0, %v2573
        %v2575 = vrot.slane %v2570, %v2574
        %v2581 = vunpack.c.l.b16 %v2566
        %v2582 = vunpack.c.l.b16 %v2567
        %v2583 = vunpack.c.l.b16 %v2568
        %v2584 = vunpack.c.l.b16 %v2569
        %v2585 = vpack.c.b16 %v2582, %v2581
        %v2586 = vpack.c.b16 %v2584, %v2583
        %v2590 = vsel %vm1499, %v2565, 0
        %2592 = vmatprep.subr.bf16.mxu0 0
        %2593 = vmatpush1.bf16.msra.mxu0 %v2585
        %2594 = vmatprep.subr.bf16.mxu0 0
        %2595 = vmatpush1.bf16.msra.mxu0 %v2586
        %2596 = vmatprep.subr.bf16.mxu0 0
        %2597 = vmatpush1.bf16.msra.mxu0 0
        %2598 = vmatprep.subr.bf16.mxu0 0
        %2599 = vmatpush1.bf16.msra.mxu0 0
        %2600 = vmatprep.subr.bf16.mxu0 0
        %2601 = vmatpush1.bf16.msra.mxu0 0
        %2602 = vmatprep.subr.bf16.mxu0 0
        %2603 = vmatpush1.bf16.msra.mxu0 0
        %2604 = vmatprep.subr.bf16.mxu0 0
        %2605 = vmatpush1.bf16.msra.mxu0 0
        %2606 = vmatprep.subr.bf16.mxu0 0
        %2607 = vmatpush1.bf16.msra.mxu0 0
        %2608 = vmatprep.subr.bf16.mxu0 0
        %2609 = vmatpush1.bf16.msra.mxu0 0
        %2610 = vmatprep.subr.bf16.mxu0 0
        %2611 = vmatpush1.bf16.msra.mxu0 0
        %2612 = vmatprep.subr.bf16.mxu0 0
        %2613 = vmatpush1.bf16.msra.mxu0 0
        %2614 = vmatprep.subr.bf16.mxu0 0
        %2615 = vmatpush1.bf16.msra.mxu0 0
        %2616 = vmatprep.subr.bf16.mxu0 0
        %2617 = vmatpush1.bf16.msra.mxu0 0
        %2618 = vmatprep.subr.bf16.mxu0 0
        %2619 = vmatpush1.bf16.msra.mxu0 0
        %2620 = vmatprep.subr.bf16.mxu0 0
        %2621 = vmatpush1.bf16.msra.mxu0 0
        %2622 = vmatprep.subr.bf16.mxu0 0
        %2623 = vmatpush1.bf16.msra.mxu0 0
        %2624 = vmatprep.mubr.bf16.mxu0 0
        %2625 = vmatmul.mubr.bf16.gmra.mrb[0].mxu0 %v2590
        %v2626 = vpop.f32.mrb[0].mxu0
        %v2627 = vadd.f32 %v2575, %v2626
        %v2628 = vpop.f32.mrb[0].mxu0
        %v2629 = vpop.f32.mrb[0].mxu0
        %v2630 = vadd.f32 %v2575, %v2629
        %v2631 = vpop.f32.mrb[0].mxu0
        %2632 = vdwg.mxu0
        %2635 = vrot.lane.b32.xlu0 %v2627, 120
        %v2636 = vpop.permute.xlu0 %2635
        %2637 = vrot.lane.b32.xlu0 %v2630, 120
        %v2638 = vpop.permute.xlu0 %2637
        %2641 = vrot.lane.b32.xlu0 %v2627, 112
        %v2642 = vpop.permute.xlu0 %2641
        %2643 = vrot.lane.b32.xlu0 %v2630, 112
        %v2644 = vpop.permute.xlu0 %2643
        %2647 = vrot.lane.b32.xlu0 %v2627, 104
        %v2648 = vpop.permute.xlu0 %2647
        %2649 = vrot.lane.b32.xlu0 %v2630, 104
        %v2650 = vpop.permute.xlu0 %2649
        %v2653 = vpack.c.bf16 %v2385, %v2385
        %v2654 = vpack.c.bf16 %v2392, %v2392
        %v2655 = vpack.c.bf16 %v2395, %v2395
        %v2656 = vpack.c.bf16 %v2398, %v2398
        %v2657 = vpack.c.bf16 %v2542, %v2539
        %v2658 = vpack.c.bf16 %v2550, %v2548
        %v2659 = vpack.c.bf16 %v2556, %v2554
        %v2660 = vpack.c.bf16 %v2562, %v2560
        %v2661 = vpack.c.bf16 %v2462, %v2462
        %v2662 = vpack.c.bf16 %v2469, %v2469
        %v2663 = vpack.c.bf16 %v2472, %v2472
        %v2664 = vpack.c.bf16 %v2475, %v2475
        %v2665 = vpack.c.bf16 %v2630, %v2627
        %v2666 = vpack.c.bf16 %v2638, %v2636
        %v2667 = vpack.c.bf16 %v2644, %v2642
        %v2668 = vpack.c.bf16 %v2650, %v2648
        %v2670 = vsel %vm1638, %v2661, 0
        %v2673 = vsel %vm1638, %v2665, 0
        %2675 = vmatprep.subr.bf16.mxu0 0
        %2676 = vmatpush1.bf16.xpose.msra.mxu0 %v2673
        %2677 = vmatprep.subr.bf16.mxu0 0
        %2678 = vmatpush1.bf16.xpose.msra.mxu0 0
        %2679 = vmatprep.subr.bf16.mxu0 0
        %2680 = vmatpush1.bf16.xpose.msra.mxu0 0
        %2681 = vmatprep.subr.bf16.mxu0 0
        %2682 = vmatpush1.bf16.xpose.msra.mxu0 0
        %2683 = vmatprep.subr.bf16.mxu0 0
        %2684 = vmatpush1.bf16.xpose.msra.mxu0 0
        %2685 = vmatprep.subr.bf16.mxu0 0
        %2686 = vmatpush1.bf16.xpose.msra.mxu0 0
        %2687 = vmatprep.subr.bf16.mxu0 0
        %2688 = vmatpush1.bf16.xpose.msra.mxu0 0
        %2689 = vmatprep.subr.bf16.mxu0 0
        %2690 = vmatpush1.bf16.xpose.msra.mxu0 0
        %2691 = vmatprep.subr.bf16.mxu0 0
        %2692 = vmatpush1.bf16.xpose.msra.mxu0 0
        %2693 = vmatprep.subr.bf16.mxu0 0
        %2694 = vmatpush1.bf16.xpose.msra.mxu0 0
        %2695 = vmatprep.subr.bf16.mxu0 0
        %2696 = vmatpush1.bf16.xpose.msra.mxu0 0
        %2697 = vmatprep.subr.bf16.mxu0 0
        %2698 = vmatpush1.bf16.xpose.msra.mxu0 0
        %2699 = vmatprep.subr.bf16.mxu0 0
        %2700 = vmatpush1.bf16.xpose.msra.mxu0 0
        %2701 = vmatprep.subr.bf16.mxu0 0
        %2702 = vmatpush1.bf16.xpose.msra.mxu0 0
        %2703 = vmatprep.subr.bf16.mxu0 0
        %2704 = vmatpush1.bf16.xpose.msra.mxu0 0
        %2705 = vmatprep.subr.bf16.mxu0 0
        %2706 = vmatpush1.bf16.xpose.msra.mxu0 0
        %2707 = vmatprep.mubr.bf16.mxu0 0
        %2708 = vmatmul.mubr.bf16.gmra.mrb[0].mxu0 %v2670
        %v2709 = vpop.f32.mrb[0].mxu0
        %v2710 = vadd.f32 0.0, %v2709
        %v2711 = vpop.f32.mrb[0].mxu0
        %v2712 = vpop.f32.mrb[0].mxu0
        %v2713 = vpop.f32.mrb[0].mxu0
        %2714 = vdwg.mxu0
        %v2716 = vsel %vm1638, %v2662, 0
        %v2719 = vsel %vm1638, %v2666, 0
        %2721 = vmatprep.subr.bf16.mxu0 0
        %2722 = vmatpush1.bf16.xpose.msra.mxu0 %v2719
        %2723 = vmatprep.subr.bf16.mxu0 0
        %2724 = vmatpush1.bf16.xpose.msra.mxu0 0
        %2725 = vmatprep.subr.bf16.mxu0 0
        %2726 = vmatpush1.bf16.xpose.msra.mxu0 0
        %2727 = vmatprep.subr.bf16.mxu0 0
        %2728 = vmatpush1.bf16.xpose.msra.mxu0 0
        %2729 = vmatprep.subr.bf16.mxu0 0
        %2730 = vmatpush1.bf16.xpose.msra.mxu0 0
        %2731 = vmatprep.subr.bf16.mxu0 0
        %2732 = vmatpush1.bf16.xpose.msra.mxu0 0
        %2733 = vmatprep.subr.bf16.mxu0 0
        %2734 = vmatpush1.bf16.xpose.msra.mxu0 0
        %2735 = vmatprep.subr.bf16.mxu0 0
        %2736 = vmatpush1.bf16.xpose.msra.mxu0 0
        %2737 = vmatprep.subr.bf16.mxu0 0
        %2738 = vmatpush1.bf16.xpose.msra.mxu0 0
        %2739 = vmatprep.subr.bf16.mxu0 0
        %2740 = vmatpush1.bf16.xpose.msra.mxu0 0
        %2741 = vmatprep.subr.bf16.mxu0 0
        %2742 = vmatpush1.bf16.xpose.msra.mxu0 0
        %2743 = vmatprep.subr.bf16.mxu0 0
        %2744 = vmatpush1.bf16.xpose.msra.mxu0 0
        %2745 = vmatprep.subr.bf16.mxu0 0
        %2746 = vmatpush1.bf16.xpose.msra.mxu0 0
        %2747 = vmatprep.subr.bf16.mxu0 0
        %2748 = vmatpush1.bf16.xpose.msra.mxu0 0
        %2749 = vmatprep.subr.bf16.mxu0 0
        %2750 = vmatpush1.bf16.xpose.msra.mxu0 0
        %2751 = vmatprep.subr.bf16.mxu0 0
        %2752 = vmatpush1.bf16.xpose.msra.mxu0 0
        %2753 = vmatprep.mubr.bf16.mxu0 0
        %2754 = vmatmul.mubr.bf16.gmra.mrb[0].mxu0 %v2716
        %v2755 = vpop.f32.mrb[0].mxu0
        %v2756 = vadd.f32 0.0, %v2755
        %v2757 = vpop.f32.mrb[0].mxu0
        %v2758 = vpop.f32.mrb[0].mxu0
        %v2759 = vpop.f32.mrb[0].mxu0
        %2760 = vdwg.mxu0
        %v2762 = vsel %vm1638, %v2663, 0
        %v2765 = vsel %vm1638, %v2667, 0
        %2767 = vmatprep.subr.bf16.mxu0 0
        %2768 = vmatpush1.bf16.xpose.msra.mxu0 %v2765
        %2769 = vmatprep.subr.bf16.mxu0 0
        %2770 = vmatpush1.bf16.xpose.msra.mxu0 0
        %2771 = vmatprep.subr.bf16.mxu0 0
        %2772 = vmatpush1.bf16.xpose.msra.mxu0 0
        %2773 = vmatprep.subr.bf16.mxu0 0
        %2774 = vmatpush1.bf16.xpose.msra.mxu0 0
        %2775 = vmatprep.subr.bf16.mxu0 0
        %2776 = vmatpush1.bf16.xpose.msra.mxu0 0
        %2777 = vmatprep.subr.bf16.mxu0 0
        %2778 = vmatpush1.bf16.xpose.msra.mxu0 0
        %2779 = vmatprep.subr.bf16.mxu0 0
        %2780 = vmatpush1.bf16.xpose.msra.mxu0 0
        %2781 = vmatprep.subr.bf16.mxu0 0
        %2782 = vmatpush1.bf16.xpose.msra.mxu0 0
        %2783 = vmatprep.subr.bf16.mxu0 0
        %2784 = vmatpush1.bf16.xpose.msra.mxu0 0
        %2785 = vmatprep.subr.bf16.mxu0 0
        %2786 = vmatpush1.bf16.xpose.msra.mxu0 0
        %2787 = vmatprep.subr.bf16.mxu0 0
        %2788 = vmatpush1.bf16.xpose.msra.mxu0 0
        %2789 = vmatprep.subr.bf16.mxu0 0
        %2790 = vmatpush1.bf16.xpose.msra.mxu0 0
        %2791 = vmatprep.subr.bf16.mxu0 0
        %2792 = vmatpush1.bf16.xpose.msra.mxu0 0
        %2793 = vmatprep.subr.bf16.mxu0 0
        %2794 = vmatpush1.bf16.xpose.msra.mxu0 0
        %2795 = vmatprep.subr.bf16.mxu0 0
        %2796 = vmatpush1.bf16.xpose.msra.mxu0 0
        %2797 = vmatprep.subr.bf16.mxu0 0
        %2798 = vmatpush1.bf16.xpose.msra.mxu0 0
        %2799 = vmatprep.mubr.bf16.mxu0 0
        %2800 = vmatmul.mubr.bf16.gmra.mrb[0].mxu0 %v2762
        %v2801 = vpop.f32.mrb[0].mxu0
        %v2802 = vadd.f32 0.0, %v2801
        %v2803 = vpop.f32.mrb[0].mxu0
        %v2804 = vpop.f32.mrb[0].mxu0
        %v2805 = vpop.f32.mrb[0].mxu0
        %2806 = vdwg.mxu0
        %v2808 = vsel %vm1638, %v2664, 0
        %v2811 = vsel %vm1638, %v2668, 0
        %2813 = vmatprep.subr.bf16.mxu0 0
        %2814 = vmatpush1.bf16.xpose.msra.mxu0 %v2811
        %2815 = vmatprep.subr.bf16.mxu0 0
        %2816 = vmatpush1.bf16.xpose.msra.mxu0 0
        %2817 = vmatprep.subr.bf16.mxu0 0
        %2818 = vmatpush1.bf16.xpose.msra.mxu0 0
        %2819 = vmatprep.subr.bf16.mxu0 0
        %2820 = vmatpush1.bf16.xpose.msra.mxu0 0
        %2821 = vmatprep.subr.bf16.mxu0 0
        %2822 = vmatpush1.bf16.xpose.msra.mxu0 0
        %2823 = vmatprep.subr.bf16.mxu0 0
        %2824 = vmatpush1.bf16.xpose.msra.mxu0 0
        %2825 = vmatprep.subr.bf16.mxu0 0
        %2826 = vmatpush1.bf16.xpose.msra.mxu0 0
        %2827 = vmatprep.subr.bf16.mxu0 0
        %2828 = vmatpush1.bf16.xpose.msra.mxu0 0
        %2829 = vmatprep.subr.bf16.mxu0 0
        %2830 = vmatpush1.bf16.xpose.msra.mxu0 0
        %2831 = vmatprep.subr.bf16.mxu0 0
        %2832 = vmatpush1.bf16.xpose.msra.mxu0 0
        %2833 = vmatprep.subr.bf16.mxu0 0
        %2834 = vmatpush1.bf16.xpose.msra.mxu0 0
        %2835 = vmatprep.subr.bf16.mxu0 0
        %2836 = vmatpush1.bf16.xpose.msra.mxu0 0
        %2837 = vmatprep.subr.bf16.mxu0 0
        %2838 = vmatpush1.bf16.xpose.msra.mxu0 0
        %2839 = vmatprep.subr.bf16.mxu0 0
        %2840 = vmatpush1.bf16.xpose.msra.mxu0 0
        %2841 = vmatprep.subr.bf16.mxu0 0
        %2842 = vmatpush1.bf16.xpose.msra.mxu0 0
        %2843 = vmatprep.subr.bf16.mxu0 0
        %2844 = vmatpush1.bf16.xpose.msra.mxu0 0
        %2845 = vmatprep.mubr.bf16.mxu0 0
        %2846 = vmatmul.mubr.bf16.gmra.mrb[0].mxu0 %v2808
        %v2847 = vpop.f32.mrb[0].mxu0
        %v2848 = vadd.f32 0.0, %v2847
        %v2849 = vpop.f32.mrb[0].mxu0
        %v2850 = vpop.f32.mrb[0].mxu0
        %v2851 = vpop.f32.mrb[0].mxu0
        %2852 = vdwg.mxu0
        %v2854 = vsel %vm1638, %v2653, 0
        %v2857 = vsel %vm1638, %v2657, 0
        %2859 = vmatprep.subr.bf16.mxu0 0
        %2860 = vmatpush1.bf16.xpose.msra.mxu0 %v2857
        %2861 = vmatprep.subr.bf16.mxu0 0
        %2862 = vmatpush1.bf16.xpose.msra.mxu0 0
        %2863 = vmatprep.subr.bf16.mxu0 0
        %2864 = vmatpush1.bf16.xpose.msra.mxu0 0
        %2865 = vmatprep.subr.bf16.mxu0 0
        %2866 = vmatpush1.bf16.xpose.msra.mxu0 0
        %2867 = vmatprep.subr.bf16.mxu0 0
        %2868 = vmatpush1.bf16.xpose.msra.mxu0 0
        %2869 = vmatprep.subr.bf16.mxu0 0
        %2870 = vmatpush1.bf16.xpose.msra.mxu0 0
        %2871 = vmatprep.subr.bf16.mxu0 0
        %2872 = vmatpush1.bf16.xpose.msra.mxu0 0
        %2873 = vmatprep.subr.bf16.mxu0 0
        %2874 = vmatpush1.bf16.xpose.msra.mxu0 0
        %2875 = vmatprep.subr.bf16.mxu0 0
        %2876 = vmatpush1.bf16.xpose.msra.mxu0 0
        %2877 = vmatprep.subr.bf16.mxu0 0
        %2878 = vmatpush1.bf16.xpose.msra.mxu0 0
        %2879 = vmatprep.subr.bf16.mxu0 0
        %2880 = vmatpush1.bf16.xpose.msra.mxu0 0
        %2881 = vmatprep.subr.bf16.mxu0 0
        %2882 = vmatpush1.bf16.xpose.msra.mxu0 0
        %2883 = vmatprep.subr.bf16.mxu0 0
        %2884 = vmatpush1.bf16.xpose.msra.mxu0 0
        %2885 = vmatprep.subr.bf16.mxu0 0
        %2886 = vmatpush1.bf16.xpose.msra.mxu0 0
        %2887 = vmatprep.subr.bf16.mxu0 0
        %2888 = vmatpush1.bf16.xpose.msra.mxu0 0
        %2889 = vmatprep.subr.bf16.mxu0 0
        %2890 = vmatpush1.bf16.xpose.msra.mxu0 0
        %2891 = vmatprep.mubr.bf16.mxu0 0
        %2892 = vmatmul.mubr.bf16.gmra.mrb[0].mxu0 %v2854
        %v2893 = vpop.f32.mrb[0].mxu0
        %v2894 = vadd.f32 %v2710, %v2893
        %v2895 = vpop.f32.mrb[0].mxu0
        %v2896 = vpop.f32.mrb[0].mxu0
        %v2897 = vpop.f32.mrb[0].mxu0
        %2898 = vdwg.mxu0
        %v2900 = vsel %vm1638, %v2654, 0
        %v2903 = vsel %vm1638, %v2658, 0
        %2905 = vmatprep.subr.bf16.mxu0 0
        %2906 = vmatpush1.bf16.xpose.msra.mxu0 %v2903
        %2907 = vmatprep.subr.bf16.mxu0 0
        %2908 = vmatpush1.bf16.xpose.msra.mxu0 0
        %2909 = vmatprep.subr.bf16.mxu0 0
        %2910 = vmatpush1.bf16.xpose.msra.mxu0 0
        %2911 = vmatprep.subr.bf16.mxu0 0
        %2912 = vmatpush1.bf16.xpose.msra.mxu0 0
        %2913 = vmatprep.subr.bf16.mxu0 0
        %2914 = vmatpush1.bf16.xpose.msra.mxu0 0
        %2915 = vmatprep.subr.bf16.mxu0 0
        %2916 = vmatpush1.bf16.xpose.msra.mxu0 0
        %2917 = vmatprep.subr.bf16.mxu0 0
        %2918 = vmatpush1.bf16.xpose.msra.mxu0 0
        %2919 = vmatprep.subr.bf16.mxu0 0
        %2920 = vmatpush1.bf16.xpose.msra.mxu0 0
        %2921 = vmatprep.subr.bf16.mxu0 0
        %2922 = vmatpush1.bf16.xpose.msra.mxu0 0
        %2923 = vmatprep.subr.bf16.mxu0 0
        %2924 = vmatpush1.bf16.xpose.msra.mxu0 0
        %2925 = vmatprep.subr.bf16.mxu0 0
        %2926 = vmatpush1.bf16.xpose.msra.mxu0 0
        %2927 = vmatprep.subr.bf16.mxu0 0
        %2928 = vmatpush1.bf16.xpose.msra.mxu0 0
        %2929 = vmatprep.subr.bf16.mxu0 0
        %2930 = vmatpush1.bf16.xpose.msra.mxu0 0
        %2931 = vmatprep.subr.bf16.mxu0 0
        %2932 = vmatpush1.bf16.xpose.msra.mxu0 0
        %2933 = vmatprep.subr.bf16.mxu0 0
        %2934 = vmatpush1.bf16.xpose.msra.mxu0 0
        %2935 = vmatprep.subr.bf16.mxu0 0
        %2936 = vmatpush1.bf16.xpose.msra.mxu0 0
        %2937 = vmatprep.mubr.bf16.mxu0 0
        %2938 = vmatmul.mubr.bf16.gmra.mrb[0].mxu0 %v2900
        %v2939 = vpop.f32.mrb[0].mxu0
        %v2940 = vadd.f32 %v2756, %v2939
        %v2941 = vpop.f32.mrb[0].mxu0
        %v2942 = vpop.f32.mrb[0].mxu0
        %v2943 = vpop.f32.mrb[0].mxu0
        %2944 = vdwg.mxu0
        %v2946 = vsel %vm1638, %v2655, 0
        %v2949 = vsel %vm1638, %v2659, 0
        %2951 = vmatprep.subr.bf16.mxu0 0
        %2952 = vmatpush1.bf16.xpose.msra.mxu0 %v2949
        %2953 = vmatprep.subr.bf16.mxu0 0
        %2954 = vmatpush1.bf16.xpose.msra.mxu0 0
        %2955 = vmatprep.subr.bf16.mxu0 0
        %2956 = vmatpush1.bf16.xpose.msra.mxu0 0
        %2957 = vmatprep.subr.bf16.mxu0 0
        %2958 = vmatpush1.bf16.xpose.msra.mxu0 0
        %2959 = vmatprep.subr.bf16.mxu0 0
        %2960 = vmatpush1.bf16.xpose.msra.mxu0 0
        %2961 = vmatprep.subr.bf16.mxu0 0
        %2962 = vmatpush1.bf16.xpose.msra.mxu0 0
        %2963 = vmatprep.subr.bf16.mxu0 0
        %2964 = vmatpush1.bf16.xpose.msra.mxu0 0
        %2965 = vmatprep.subr.bf16.mxu0 0
        %2966 = vmatpush1.bf16.xpose.msra.mxu0 0
        %2967 = vmatprep.subr.bf16.mxu0 0
        %2968 = vmatpush1.bf16.xpose.msra.mxu0 0
        %2969 = vmatprep.subr.bf16.mxu0 0
        %2970 = vmatpush1.bf16.xpose.msra.mxu0 0
        %2971 = vmatprep.subr.bf16.mxu0 0
        %2972 = vmatpush1.bf16.xpose.msra.mxu0 0
        %2973 = vmatprep.subr.bf16.mxu0 0
        %2974 = vmatpush1.bf16.xpose.msra.mxu0 0
        %2975 = vmatprep.subr.bf16.mxu0 0
        %2976 = vmatpush1.bf16.xpose.msra.mxu0 0
        %2977 = vmatprep.subr.bf16.mxu0 0
        %2978 = vmatpush1.bf16.xpose.msra.mxu0 0
        %2979 = vmatprep.subr.bf16.mxu0 0
        %2980 = vmatpush1.bf16.xpose.msra.mxu0 0
        %2981 = vmatprep.subr.bf16.mxu0 0
        %2982 = vmatpush1.bf16.xpose.msra.mxu0 0
        %2983 = vmatprep.mubr.bf16.mxu0 0
        %2984 = vmatmul.mubr.bf16.gmra.mrb[0].mxu0 %v2946
        %v2985 = vpop.f32.mrb[0].mxu0
        %v2986 = vadd.f32 %v2802, %v2985
        %v2987 = vpop.f32.mrb[0].mxu0
        %v2988 = vpop.f32.mrb[0].mxu0
        %v2989 = vpop.f32.mrb[0].mxu0
        %2990 = vdwg.mxu0
        %v2992 = vsel %vm1638, %v2656, 0
        %v2995 = vsel %vm1638, %v2660, 0
        %2997 = vmatprep.subr.bf16.mxu0 0
        %2998 = vmatpush1.bf16.xpose.msra.mxu0 %v2995
        %2999 = vmatprep.subr.bf16.mxu0 0
        %3000 = vmatpush1.bf16.xpose.msra.mxu0 0
        %3001 = vmatprep.subr.bf16.mxu0 0
        %3002 = vmatpush1.bf16.xpose.msra.mxu0 0
        %3003 = vmatprep.subr.bf16.mxu0 0
        %3004 = vmatpush1.bf16.xpose.msra.mxu0 0
        %3005 = vmatprep.subr.bf16.mxu0 0
        %3006 = vmatpush1.bf16.xpose.msra.mxu0 0
        %3007 = vmatprep.subr.bf16.mxu0 0
        %3008 = vmatpush1.bf16.xpose.msra.mxu0 0
        %3009 = vmatprep.subr.bf16.mxu0 0
        %3010 = vmatpush1.bf16.xpose.msra.mxu0 0
        %3011 = vmatprep.subr.bf16.mxu0 0
        %3012 = vmatpush1.bf16.xpose.msra.mxu0 0
        %3013 = vmatprep.subr.bf16.mxu0 0
        %3014 = vmatpush1.bf16.xpose.msra.mxu0 0
        %3015 = vmatprep.subr.bf16.mxu0 0
        %3016 = vmatpush1.bf16.xpose.msra.mxu0 0
        %3017 = vmatprep.subr.bf16.mxu0 0
        %3018 = vmatpush1.bf16.xpose.msra.mxu0 0
        %3019 = vmatprep.subr.bf16.mxu0 0
        %3020 = vmatpush1.bf16.xpose.msra.mxu0 0
        %3021 = vmatprep.subr.bf16.mxu0 0
        %3022 = vmatpush1.bf16.xpose.msra.mxu0 0
        %3023 = vmatprep.subr.bf16.mxu0 0
        %3024 = vmatpush1.bf16.xpose.msra.mxu0 0
        %3025 = vmatprep.subr.bf16.mxu0 0
        %3026 = vmatpush1.bf16.xpose.msra.mxu0 0
        %3027 = vmatprep.subr.bf16.mxu0 0
        %3028 = vmatpush1.bf16.xpose.msra.mxu0 0
        %3029 = vmatprep.mubr.bf16.mxu0 0
        %3030 = vmatmul.mubr.bf16.gmra.mrb[0].mxu0 %v2992
        %v3031 = vpop.f32.mrb[0].mxu0
        %v3032 = vadd.f32 %v2848, %v3031
        %v3033 = vpop.f32.mrb[0].mxu0
        %v3034 = vpop.f32.mrb[0].mxu0
        %v3035 = vpop.f32.mrb[0].mxu0
        %3036 = vdwg.mxu0
        %vm3037 = vcmask 130048
        %v3038 = vsel %vm3037, %v2894, -inf
        %3039 = vmax.xlane.f32.xlu0 %v3038
        %v3040 = vpop.xlane.xlu0 %3039
        %v3041 = vsel %vm3037, %v2940, -inf
        %3042 = vmax.xlane.f32.xlu0 %v3041
        %v3043 = vpop.xlane.xlu0 %3042
        %v3044 = vsel %vm3037, %v2986, -inf
        %3045 = vmax.xlane.f32.xlu0 %v3044
        %v3046 = vpop.xlane.xlu0 %3045
        %v3047 = vsel %vm3037, %v3032, -inf
        %3048 = vmax.xlane.f32.xlu0 %v3047
        %v3049 = vpop.xlane.xlu0 %3048
        %v3050 = vsub.f32 %v2894, %v3040
        %v3051 = vsub.f32 %v2940, %v3043
        %v3052 = vsub.f32 %v2986, %v3046
        %v3053 = vsub.f32 %v3032, %v3049
        %v3054 = vmul.f32 %v3050, 1.442695
        %v3055 = vpow.pop %v3054
        %v3056 = vmul.f32 %v3051, 1.442695
        %v3057 = vpow.pop %v3056
        %v3058 = vmul.f32 %v3052, 1.442695
        %v3059 = vpow.pop %v3058
        %v3060 = vmul.f32 %v3053, 1.442695
        %v3061 = vpow.pop %v3060
        %v3062 = vsel %vm3037, %v3055, 0.0
        %3063 = vadd.xlane.f32.xlu0 %v3062
        %v3064 = vpop.xlane.xlu0 %3063
        %v3065 = vsel %vm3037, %v3057, 0.0
        %3066 = vadd.xlane.f32.xlu0 %v3065
        %v3067 = vpop.xlane.xlu0 %3066
        %v3068 = vsel %vm3037, %v3059, 0.0
        %3069 = vadd.xlane.f32.xlu0 %v3068
        %v3070 = vpop.xlane.xlu0 %3069
        %v3071 = vsel %vm3037, %v3061, 0.0
        %3072 = vadd.xlane.f32.xlu0 %v3071
        %v3073 = vpop.xlane.xlu0 %3072
        %v3074 = vrcp.pop %v3064
        %v3075 = vmul.f32 1.0, %v3074
        %v3076 = vrcp.pop %v3067
        %v3077 = vmul.f32 1.0, %v3076
        %v3078 = vrcp.pop %v3070
        %v3079 = vmul.f32 1.0, %v3078
        %v3080 = vrcp.pop %v3073
        %v3081 = vmul.f32 1.0, %v3080
        %v3082 = vmul.f32 %v3055, %v3075
        %v3083 = vmul.f32 %v3057, %v3077
        %v3084 = vmul.f32 %v3059, %v3079
        %v3085 = vmul.f32 %v3061, %v3081
        %v3086 = vpack.c.bf16 %v3082, %v3082
        %v3087 = vpack.c.bf16 %v3083, %v3083
        %v3088 = vpack.c.bf16 %v3084, %v3084
        %v3089 = vpack.c.bf16 %v3085, %v3085
        %3091 = vrot.lane.b32.xlu0 %v2657, 96
        %v3092 = vpop.permute.xlu0 %3091
        %v3095 = vsel %vm3037, %v3086, 0
        %3097 = vmatprep.subr.bf16.mxu0 0
        %3098 = vmatpush1.bf16.msra.mxu0 %v3092
        %3099 = vmatprep.subr.bf16.mxu0 0
        %3100 = vmatpush1.bf16.msra.mxu0 0
        %3101 = vmatprep.subr.bf16.mxu0 0
        %3102 = vmatpush1.bf16.msra.mxu0 0
        %3103 = vmatprep.subr.bf16.mxu0 0
        %3104 = vmatpush1.bf16.msra.mxu0 0
        %3105 = vmatprep.subr.bf16.mxu0 0
        %3106 = vmatpush1.bf16.msra.mxu0 0
        %3107 = vmatprep.subr.bf16.mxu0 0
        %3108 = vmatpush1.bf16.msra.mxu0 0
        %3109 = vmatprep.subr.bf16.mxu0 0
        %3110 = vmatpush1.bf16.msra.mxu0 0
        %3111 = vmatprep.subr.bf16.mxu0 0
        %3112 = vmatpush1.bf16.msra.mxu0 0
        %3113 = vmatprep.subr.bf16.mxu0 0
        %3114 = vmatpush1.bf16.msra.mxu0 0
        %3115 = vmatprep.subr.bf16.mxu0 0
        %3116 = vmatpush1.bf16.msra.mxu0 0
        %3117 = vmatprep.subr.bf16.mxu0 0
        %3118 = vmatpush1.bf16.msra.mxu0 0
        %3119 = vmatprep.subr.bf16.mxu0 0
        %3120 = vmatpush1.bf16.msra.mxu0 0
        %3121 = vmatprep.subr.bf16.mxu0 0
        %3122 = vmatpush1.bf16.msra.mxu0 0
        %3123 = vmatprep.subr.bf16.mxu0 0
        %3124 = vmatpush1.bf16.msra.mxu0 0
        %3125 = vmatprep.subr.bf16.mxu0 0
        %3126 = vmatpush1.bf16.msra.mxu0 0
        %3127 = vmatprep.subr.bf16.mxu0 0
        %3128 = vmatpush1.bf16.msra.mxu0 0
        %3129 = vmatprep.mubr.bf16.mxu0 0
        %3130 = vmatmul.mubr.bf16.gmra.mrb[0].mxu0 %v3095
        %v3131 = vpop.f32.mrb[0].mxu0
        %v3132 = vadd.f32 0.0, %v3131
        %v3133 = vpop.f32.mrb[0].mxu0
        %v3134 = vpop.f32.mrb[0].mxu0
        %v3135 = vpop.f32.mrb[0].mxu0
        %3136 = vdwg.mxu0
        %3138 = vrot.lane.b32.xlu0 %v2658, 96
        %v3139 = vpop.permute.xlu0 %3138
        %v3142 = vsel %vm3037, %v3087, 0
        %3144 = vmatprep.subr.bf16.mxu0 0
        %3145 = vmatpush1.bf16.msra.mxu0 %v3139
        %3146 = vmatprep.subr.bf16.mxu0 0
        %3147 = vmatpush1.bf16.msra.mxu0 0
        %3148 = vmatprep.subr.bf16.mxu0 0
        %3149 = vmatpush1.bf16.msra.mxu0 0
        %3150 = vmatprep.subr.bf16.mxu0 0
        %3151 = vmatpush1.bf16.msra.mxu0 0
        %3152 = vmatprep.subr.bf16.mxu0 0
        %3153 = vmatpush1.bf16.msra.mxu0 0
        %3154 = vmatprep.subr.bf16.mxu0 0
        %3155 = vmatpush1.bf16.msra.mxu0 0
        %3156 = vmatprep.subr.bf16.mxu0 0
        %3157 = vmatpush1.bf16.msra.mxu0 0
        %3158 = vmatprep.subr.bf16.mxu0 0
        %3159 = vmatpush1.bf16.msra.mxu0 0
        %3160 = vmatprep.subr.bf16.mxu0 0
        %3161 = vmatpush1.bf16.msra.mxu0 0
        %3162 = vmatprep.subr.bf16.mxu0 0
        %3163 = vmatpush1.bf16.msra.mxu0 0
        %3164 = vmatprep.subr.bf16.mxu0 0
        %3165 = vmatpush1.bf16.msra.mxu0 0
        %3166 = vmatprep.subr.bf16.mxu0 0
        %3167 = vmatpush1.bf16.msra.mxu0 0
        %3168 = vmatprep.subr.bf16.mxu0 0
        %3169 = vmatpush1.bf16.msra.mxu0 0
        %3170 = vmatprep.subr.bf16.mxu0 0
        %3171 = vmatpush1.bf16.msra.mxu0 0
        %3172 = vmatprep.subr.bf16.mxu0 0
        %3173 = vmatpush1.bf16.msra.mxu0 0
        %3174 = vmatprep.subr.bf16.mxu0 0
        %3175 = vmatpush1.bf16.msra.mxu0 0
        %3176 = vmatprep.mubr.bf16.mxu0 0
        %3177 = vmatmul.mubr.bf16.gmra.mrb[0].mxu0 %v3142
        %v3178 = vpop.f32.mrb[0].mxu0
        %v3179 = vadd.f32 0.0, %v3178
        %v3180 = vpop.f32.mrb[0].mxu0
        %v3181 = vpop.f32.mrb[0].mxu0
        %v3182 = vpop.f32.mrb[0].mxu0
        %3183 = vdwg.mxu0
        %3185 = vrot.lane.b32.xlu0 %v2659, 96
        %v3186 = vpop.permute.xlu0 %3185
        %v3189 = vsel %vm3037, %v3088, 0
        %3191 = vmatprep.subr.bf16.mxu0 0
        %3192 = vmatpush1.bf16.msra.mxu0 %v3186
        %3193 = vmatprep.subr.bf16.mxu0 0
        %3194 = vmatpush1.bf16.msra.mxu0 0
        %3195 = vmatprep.subr.bf16.mxu0 0
        %3196 = vmatpush1.bf16.msra.mxu0 0
        %3197 = vmatprep.subr.bf16.mxu0 0
        %3198 = vmatpush1.bf16.msra.mxu0 0
        %3199 = vmatprep.subr.bf16.mxu0 0
        %3200 = vmatpush1.bf16.msra.mxu0 0
        %3201 = vmatprep.subr.bf16.mxu0 0
        %3202 = vmatpush1.bf16.msra.mxu0 0
        %3203 = vmatprep.subr.bf16.mxu0 0
        %3204 = vmatpush1.bf16.msra.mxu0 0
        %3205 = vmatprep.subr.bf16.mxu0 0
        %3206 = vmatpush1.bf16.msra.mxu0 0
        %3207 = vmatprep.subr.bf16.mxu0 0
        %3208 = vmatpush1.bf16.msra.mxu0 0
        %3209 = vmatprep.subr.bf16.mxu0 0
        %3210 = vmatpush1.bf16.msra.mxu0 0
        %3211 = vmatprep.subr.bf16.mxu0 0
        %3212 = vmatpush1.bf16.msra.mxu0 0
        %3213 = vmatprep.subr.bf16.mxu0 0
        %3214 = vmatpush1.bf16.msra.mxu0 0
        %3215 = vmatprep.subr.bf16.mxu0 0
        %3216 = vmatpush1.bf16.msra.mxu0 0
        %3217 = vmatprep.subr.bf16.mxu0 0
        %3218 = vmatpush1.bf16.msra.mxu0 0
        %3219 = vmatprep.subr.bf16.mxu0 0
        %3220 = vmatpush1.bf16.msra.mxu0 0
        %3221 = vmatprep.subr.bf16.mxu0 0
        %3222 = vmatpush1.bf16.msra.mxu0 0
        %3223 = vmatprep.mubr.bf16.mxu0 0
        %3224 = vmatmul.mubr.bf16.gmra.mrb[0].mxu0 %v3189
        %v3225 = vpop.f32.mrb[0].mxu0
        %v3226 = vadd.f32 0.0, %v3225
        %v3227 = vpop.f32.mrb[0].mxu0
        %v3228 = vpop.f32.mrb[0].mxu0
        %v3229 = vpop.f32.mrb[0].mxu0
        %3230 = vdwg.mxu0
        %3232 = vrot.lane.b32.xlu0 %v2660, 96
        %v3233 = vpop.permute.xlu0 %3232
        %v3236 = vsel %vm3037, %v3089, 0
        %3238 = vmatprep.subr.bf16.mxu0 0
        %3239 = vmatpush1.bf16.msra.mxu0 %v3233
        %3240 = vmatprep.subr.bf16.mxu0 0
        %3241 = vmatpush1.bf16.msra.mxu0 0
        %3242 = vmatprep.subr.bf16.mxu0 0
        %3243 = vmatpush1.bf16.msra.mxu0 0
        %3244 = vmatprep.subr.bf16.mxu0 0
        %3245 = vmatpush1.bf16.msra.mxu0 0
        %3246 = vmatprep.subr.bf16.mxu0 0
        %3247 = vmatpush1.bf16.msra.mxu0 0
        %3248 = vmatprep.subr.bf16.mxu0 0
        %3249 = vmatpush1.bf16.msra.mxu0 0
        %3250 = vmatprep.subr.bf16.mxu0 0
        %3251 = vmatpush1.bf16.msra.mxu0 0
        %3252 = vmatprep.subr.bf16.mxu0 0
        %3253 = vmatpush1.bf16.msra.mxu0 0
        %3254 = vmatprep.subr.bf16.mxu0 0
        %3255 = vmatpush1.bf16.msra.mxu0 0
        %3256 = vmatprep.subr.bf16.mxu0 0
        %3257 = vmatpush1.bf16.msra.mxu0 0
        %3258 = vmatprep.subr.bf16.mxu0 0
        %3259 = vmatpush1.bf16.msra.mxu0 0
        %3260 = vmatprep.subr.bf16.mxu0 0
        %3261 = vmatpush1.bf16.msra.mxu0 0
        %3262 = vmatprep.subr.bf16.mxu0 0
        %3263 = vmatpush1.bf16.msra.mxu0 0
        %3264 = vmatprep.subr.bf16.mxu0 0
        %3265 = vmatpush1.bf16.msra.mxu0 0
        %3266 = vmatprep.subr.bf16.mxu0 0
        %3267 = vmatpush1.bf16.msra.mxu0 0
        %3268 = vmatprep.subr.bf16.mxu0 0
        %3269 = vmatpush1.bf16.msra.mxu0 0
        %3270 = vmatprep.mubr.bf16.mxu0 0
        %3271 = vmatmul.mubr.bf16.gmra.mrb[0].mxu0 %v3236
        %v3272 = vpop.f32.mrb[0].mxu0
        %v3273 = vadd.f32 0.0, %v3272
        %v3274 = vpop.f32.mrb[0].mxu0
        %v3275 = vpop.f32.mrb[0].mxu0
        %v3276 = vpop.f32.mrb[0].mxu0
        %3277 = vdwg.mxu0
        %v3278 = vpack.c.bf16 %v3132, %v3132
        %v3279 = vpack.c.bf16 %v3179, %v3179
        %v3280 = vpack.c.bf16 %v3226, %v3226
        %v3281 = vpack.c.bf16 %v3273, %v3273
        %v3282 = vld [vmem:[#allocation35] sm:$0xf]
        %v3283 = vld [vmem:[#allocation35 + $0x4] sm:$0xf]
        %v3284 = vld [vmem:[#allocation35 + $0x8] sm:$0xf]
        %v3285 = vld [vmem:[#allocation35 + $0xc] sm:$0xf]
        %v3287 = vsel %vm1638, %v3278, 0
        %v3290 = vsel %vm1894, %v3282, 0
        %3292 = vmatprep.subr.bf16.mxu0 0
        %3293 = vmatpush1.bf16.msra.mxu0 %v3290
        %3294 = vmatprep.subr.bf16.mxu0 0
        %3295 = vmatpush1.bf16.msra.mxu0 0
        %3296 = vmatprep.subr.bf16.mxu0 0
        %3297 = vmatpush1.bf16.msra.mxu0 0
        %3298 = vmatprep.subr.bf16.mxu0 0
        %3299 = vmatpush1.bf16.msra.mxu0 0
        %3300 = vmatprep.subr.bf16.mxu0 0
        %3301 = vmatpush1.bf16.msra.mxu0 0
        %3302 = vmatprep.subr.bf16.mxu0 0
        %3303 = vmatpush1.bf16.msra.mxu0 0
        %3304 = vmatprep.subr.bf16.mxu0 0
        %3305 = vmatpush1.bf16.msra.mxu0 0
        %3306 = vmatprep.subr.bf16.mxu0 0
        %3307 = vmatpush1.bf16.msra.mxu0 0
        %3308 = vmatprep.subr.bf16.mxu0 0
        %3309 = vmatpush1.bf16.msra.mxu0 0
        %3310 = vmatprep.subr.bf16.mxu0 0
        %3311 = vmatpush1.bf16.msra.mxu0 0
        %3312 = vmatprep.subr.bf16.mxu0 0
        %3313 = vmatpush1.bf16.msra.mxu0 0
        %3314 = vmatprep.subr.bf16.mxu0 0
        %3315 = vmatpush1.bf16.msra.mxu0 0
        %3316 = vmatprep.subr.bf16.mxu0 0
        %3317 = vmatpush1.bf16.msra.mxu0 0
        %3318 = vmatprep.subr.bf16.mxu0 0
        %3319 = vmatpush1.bf16.msra.mxu0 0
        %3320 = vmatprep.subr.bf16.mxu0 0
        %3321 = vmatpush1.bf16.msra.mxu0 0
        %3322 = vmatprep.subr.bf16.mxu0 0
        %3323 = vmatpush1.bf16.msra.mxu0 0
        %3324 = vmatprep.mubr.bf16.mxu0 0
        %3325 = vmatmul.mubr.bf16.gmra.mrb[0].mxu0 %v3287
        %v3326 = vpop.f32.mrb[0].mxu0
        %v3327 = vadd.f32 0.0, %v3326
        %v3328 = vpop.f32.mrb[0].mxu0
        %v3329 = vpop.f32.mrb[0].mxu0
        %v3330 = vpop.f32.mrb[0].mxu0
        %3331 = vdwg.mxu0
        %v3333 = vsel %vm1638, %v3279, 0
        %v3336 = vsel %vm1894, %v3283, 0
        %3338 = vmatprep.subr.bf16.mxu0 0
        %3339 = vmatpush1.bf16.msra.mxu0 %v3336
        %3340 = vmatprep.subr.bf16.mxu0 0
        %3341 = vmatpush1.bf16.msra.mxu0 0
        %3342 = vmatprep.subr.bf16.mxu0 0
        %3343 = vmatpush1.bf16.msra.mxu0 0
        %3344 = vmatprep.subr.bf16.mxu0 0
        %3345 = vmatpush1.bf16.msra.mxu0 0
        %3346 = vmatprep.subr.bf16.mxu0 0
        %3347 = vmatpush1.bf16.msra.mxu0 0
        %3348 = vmatprep.subr.bf16.mxu0 0
        %3349 = vmatpush1.bf16.msra.mxu0 0
        %3350 = vmatprep.subr.bf16.mxu0 0
        %3351 = vmatpush1.bf16.msra.mxu0 0
        %3352 = vmatprep.subr.bf16.mxu0 0
        %3353 = vmatpush1.bf16.msra.mxu0 0
        %3354 = vmatprep.subr.bf16.mxu0 0
        %3355 = vmatpush1.bf16.msra.mxu0 0
        %3356 = vmatprep.subr.bf16.mxu0 0
        %3357 = vmatpush1.bf16.msra.mxu0 0
        %3358 = vmatprep.subr.bf16.mxu0 0
        %3359 = vmatpush1.bf16.msra.mxu0 0
        %3360 = vmatprep.subr.bf16.mxu0 0
        %3361 = vmatpush1.bf16.msra.mxu0 0
        %3362 = vmatprep.subr.bf16.mxu0 0
        %3363 = vmatpush1.bf16.msra.mxu0 0
        %3364 = vmatprep.subr.bf16.mxu0 0
        %3365 = vmatpush1.bf16.msra.mxu0 0
        %3366 = vmatprep.subr.bf16.mxu0 0
        %3367 = vmatpush1.bf16.msra.mxu0 0
        %3368 = vmatprep.subr.bf16.mxu0 0
        %3369 = vmatpush1.bf16.msra.mxu0 0
        %3370 = vmatprep.mubr.bf16.mxu0 0
        %3371 = vmatmul.mubr.bf16.gmra.mrb[0].mxu0 %v3333
        %v3372 = vpop.f32.mrb[0].mxu0
        %v3373 = vadd.f32 0.0, %v3372
        %v3374 = vpop.f32.mrb[0].mxu0
        %v3375 = vpop.f32.mrb[0].mxu0
        %v3376 = vpop.f32.mrb[0].mxu0
        %3377 = vdwg.mxu0
        %v3379 = vsel %vm1638, %v3280, 0
        %v3382 = vsel %vm1894, %v3284, 0
        %3384 = vmatprep.subr.bf16.mxu0 0
        %3385 = vmatpush1.bf16.msra.mxu0 %v3382
        %3386 = vmatprep.subr.bf16.mxu0 0
        %3387 = vmatpush1.bf16.msra.mxu0 0
        %3388 = vmatprep.subr.bf16.mxu0 0
        %3389 = vmatpush1.bf16.msra.mxu0 0
        %3390 = vmatprep.subr.bf16.mxu0 0
        %3391 = vmatpush1.bf16.msra.mxu0 0
        %3392 = vmatprep.subr.bf16.mxu0 0
        %3393 = vmatpush1.bf16.msra.mxu0 0
        %3394 = vmatprep.subr.bf16.mxu0 0
        %3395 = vmatpush1.bf16.msra.mxu0 0
        %3396 = vmatprep.subr.bf16.mxu0 0
        %3397 = vmatpush1.bf16.msra.mxu0 0
        %3398 = vmatprep.subr.bf16.mxu0 0
        %3399 = vmatpush1.bf16.msra.mxu0 0
        %3400 = vmatprep.subr.bf16.mxu0 0
        %3401 = vmatpush1.bf16.msra.mxu0 0
        %3402 = vmatprep.subr.bf16.mxu0 0
        %3403 = vmatpush1.bf16.msra.mxu0 0
        %3404 = vmatprep.subr.bf16.mxu0 0
        %3405 = vmatpush1.bf16.msra.mxu0 0
        %3406 = vmatprep.subr.bf16.mxu0 0
        %3407 = vmatpush1.bf16.msra.mxu0 0
        %3408 = vmatprep.subr.bf16.mxu0 0
        %3409 = vmatpush1.bf16.msra.mxu0 0
        %3410 = vmatprep.subr.bf16.mxu0 0
        %3411 = vmatpush1.bf16.msra.mxu0 0
        %3412 = vmatprep.subr.bf16.mxu0 0
        %3413 = vmatpush1.bf16.msra.mxu0 0
        %3414 = vmatprep.subr.bf16.mxu0 0
        %3415 = vmatpush1.bf16.msra.mxu0 0
        %3416 = vmatprep.mubr.bf16.mxu0 0
        %3417 = vmatmul.mubr.bf16.gmra.mrb[0].mxu0 %v3379
        %v3418 = vpop.f32.mrb[0].mxu0
        %v3419 = vadd.f32 0.0, %v3418
        %v3420 = vpop.f32.mrb[0].mxu0
        %v3421 = vpop.f32.mrb[0].mxu0
        %v3422 = vpop.f32.mrb[0].mxu0
        %3423 = vdwg.mxu0
        %v3425 = vsel %vm1638, %v3281, 0
        %v3428 = vsel %vm1894, %v3285, 0
        %3430 = vmatprep.subr.bf16.mxu0 0
        %3431 = vmatpush1.bf16.msra.mxu0 %v3428
        %3432 = vmatprep.subr.bf16.mxu0 0
        %3433 = vmatpush1.bf16.msra.mxu0 0
        %3434 = vmatprep.subr.bf16.mxu0 0
        %3435 = vmatpush1.bf16.msra.mxu0 0
        %3436 = vmatprep.subr.bf16.mxu0 0
        %3437 = vmatpush1.bf16.msra.mxu0 0
        %3438 = vmatprep.subr.bf16.mxu0 0
        %3439 = vmatpush1.bf16.msra.mxu0 0
        %3440 = vmatprep.subr.bf16.mxu0 0
        %3441 = vmatpush1.bf16.msra.mxu0 0
        %3442 = vmatprep.subr.bf16.mxu0 0
        %3443 = vmatpush1.bf16.msra.mxu0 0
        %3444 = vmatprep.subr.bf16.mxu0 0
        %3445 = vmatpush1.bf16.msra.mxu0 0
        %3446 = vmatprep.subr.bf16.mxu0 0
        %3447 = vmatpush1.bf16.msra.mxu0 0
        %3448 = vmatprep.subr.bf16.mxu0 0
        %3449 = vmatpush1.bf16.msra.mxu0 0
        %3450 = vmatprep.subr.bf16.mxu0 0
        %3451 = vmatpush1.bf16.msra.mxu0 0
        %3452 = vmatprep.subr.bf16.mxu0 0
        %3453 = vmatpush1.bf16.msra.mxu0 0
        %3454 = vmatprep.subr.bf16.mxu0 0
        %3455 = vmatpush1.bf16.msra.mxu0 0
        %3456 = vmatprep.subr.bf16.mxu0 0
        %3457 = vmatpush1.bf16.msra.mxu0 0
        %3458 = vmatprep.subr.bf16.mxu0 0
        %3459 = vmatpush1.bf16.msra.mxu0 0
        %3460 = vmatprep.subr.bf16.mxu0 0
        %3461 = vmatpush1.bf16.msra.mxu0 0
        %3462 = vmatprep.mubr.bf16.mxu0 0
        %3463 = vmatmul.mubr.bf16.gmra.mrb[0].mxu0 %v3425
        %v3464 = vpop.f32.mrb[0].mxu0
        %v3465 = vadd.f32 0.0, %v3464
        %v3466 = vpop.f32.mrb[0].mxu0
        %v3467 = vpop.f32.mrb[0].mxu0
        %v3468 = vpop.f32.mrb[0].mxu0
        %3469 = vdwg.mxu0
        %v3470 = vsel %vm1499, %v3327, 0.0
        %v3471 = vsel %vm1499, %v3373, 0.0
        %v3472 = vadd.f32 %v3470, %v3471
        %v3473 = vsel %vm1499, %v3419, 0.0
        %v3474 = vadd.f32 %v3472, %v3473
        %v3475 = vsel %vm1499, %v3465, 0.0
        %v3476 = vadd.f32 %v3474, %v3475
        %v3477 = vld [vmem:[#allocation37] sm:$0x1]
        %v3479 = vlaneseq
        %v3480 = vshrl.u32 %v3479, 7
        %v3481 = vsub.s32 0, %v3480
        %v3482 = vrot.slane %v3477, %v3481
        %v3484 = vadd.f32 %v3476, %v3482
        %v3485 = vadd.f32 %v2322, %v3484
        %v3486 = vsel %vm1499, %v3485, 0.0
        %3487 = vadd.xlane.f32.xlu0 %v3486
        %v3488 = vpop.xlane.xlu0 %3487
        %v3489 = vmul.f32 %v3488, %v2296
        %v3490 = vsub.f32 %v3485, %v3489
        %v3491 = vmul.f32 %v3490, %v3490
        %v3492 = vsel %vm1499, %v3491, 0.0
        %3493 = vadd.xlane.f32.xlu0 %v3492
        %v3494 = vpop.xlane.xlu0 %3493
        %v3495 = vmul.f32 %v3494, %v2296
        %v3496 = vadd.f32 %v3495, 1e-05
        %v3497 = vrsqrt.pop %v3496
        %v3498 = vmul.f32 %v3490, %v3497
        %v3499 = vld [vmem:[#allocation38] sm:$0x1]
        %v3501 = vlaneseq
        %v3502 = vshrl.u32 %v3501, 7
        %v3503 = vsub.s32 0, %v3502
        %v3504 = vrot.slane %v3499, %v3503
        %v3506 = vmul.f32 %v3498, %v3504
        %v3507 = vld [vmem:[#allocation40] sm:$0x1]
        %v3509 = vlaneseq
        %v3510 = vshrl.u32 %v3509, 7
        %v3511 = vsub.s32 0, %v3510
        %v3512 = vrot.slane %v3507, %v3511
        %v3514 = vadd.f32 %v3506, %v3512
        %v3515 = vpack.c.bf16 %v3514, %v3514
        %v3516 = vld [vmem:[#allocation41] sm:$0xf]
        %v3517 = vld [vmem:[#allocation41 + $0x4] sm:$0xf]
        %v3518 = vld [vmem:[#allocation41 + $0x8] sm:$0xf]
        %v3519 = vld [vmem:[#allocation41 + $0xc] sm:$0xf]
        %v3520 = vld [vmem:[#allocation43] sm:$0x1]
        %v3522 = vlaneseq
        %v3523 = vshrl.u32 %v3522, 7
        %v3524 = vsub.s32 0, %v3523
        %v3525 = vrot.slane %v3520, %v3524
        %v3531 = vunpack.c.l.b16 %v3516
        %v3532 = vunpack.c.l.b16 %v3517
        %v3533 = vunpack.c.l.b16 %v3518
        %v3534 = vunpack.c.l.b16 %v3519
        %v3535 = vpack.c.b16 %v3532, %v3531
        %v3536 = vpack.c.b16 %v3534, %v3533
        %v3540 = vsel %vm1499, %v3515, 0
        %3542 = vmatprep.subr.bf16.mxu0 0
        %3543 = vmatpush1.bf16.msra.mxu0 %v3535
        %3544 = vmatprep.subr.bf16.mxu0 0
        %3545 = vmatpush1.bf16.msra.mxu0 %v3536
        %3546 = vmatprep.subr.bf16.mxu0 0
        %3547 = vmatpush1.bf16.msra.mxu0 0
        %3548 = vmatprep.subr.bf16.mxu0 0
        %3549 = vmatpush1.bf16.msra.mxu0 0
        %3550 = vmatprep.subr.bf16.mxu0 0
        %3551 = vmatpush1.bf16.msra.mxu0 0
        %3552 = vmatprep.subr.bf16.mxu0 0
        %3553 = vmatpush1.bf16.msra.mxu0 0
        %3554 = vmatprep.subr.bf16.mxu0 0
        %3555 = vmatpush1.bf16.msra.mxu0 0
        %3556 = vmatprep.subr.bf16.mxu0 0
        %3557 = vmatpush1.bf16.msra.mxu0 0
        %3558 = vmatprep.subr.bf16.mxu0 0
        %3559 = vmatpush1.bf16.msra.mxu0 0
        %3560 = vmatprep.subr.bf16.mxu0 0
        %3561 = vmatpush1.bf16.msra.mxu0 0
        %3562 = vmatprep.subr.bf16.mxu0 0
        %3563 = vmatpush1.bf16.msra.mxu0 0
        %3564 = vmatprep.subr.bf16.mxu0 0
        %3565 = vmatpush1.bf16.msra.mxu0 0
        %3566 = vmatprep.subr.bf16.mxu0 0
        %3567 = vmatpush1.bf16.msra.mxu0 0
        %3568 = vmatprep.subr.bf16.mxu0 0
        %3569 = vmatpush1.bf16.msra.mxu0 0
        %3570 = vmatprep.subr.bf16.mxu0 0
        %3571 = vmatpush1.bf16.msra.mxu0 0
        %3572 = vmatprep.subr.bf16.mxu0 0
        %3573 = vmatpush1.bf16.msra.mxu0 0
        %3574 = vmatprep.mubr.bf16.mxu0 0
        %3575 = vmatmul.mubr.bf16.gmra.mrb[0].mxu0 %v3540
        %v3576 = vpop.f32.mrb[0].mxu0
        %v3577 = vadd.f32 %v3525, %v3576
        %v3578 = vpop.f32.mrb[0].mxu0
        %v3579 = vpop.f32.mrb[0].mxu0
        %v3580 = vpop.f32.mrb[0].mxu0
        %3581 = vdwg.mxu0
        %v3582 = vmax.f32 %v3577, 0.0
        %v3583 = vpack.c.bf16 %v3582, %v3582
        %v3584 = vld [vmem:[#allocation44] sm:$0xf]
        %v3585 = vld [vmem:[#allocation44 + $0x4] sm:$0xf]
        %v3586 = vld [vmem:[#allocation44 + $0x8] sm:$0xf]
        %v3587 = vld [vmem:[#allocation44 + $0xc] sm:$0xf]
        %v3588 = vld [vmem:[#allocation44 + $0x10] sm:$0xf]
        %v3589 = vld [vmem:[#allocation44 + $0x14] sm:$0xf]
        %v3590 = vld [vmem:[#allocation44 + $0x18] sm:$0xf]
        %v3591 = vld [vmem:[#allocation44 + $0x1c] sm:$0xf]
        %v3592 = vld [vmem:[#allocation46] sm:$0x1]
        %v3594 = vlaneseq
        %v3595 = vshrl.u32 %v3594, 7
        %v3596 = vsub.s32 0, %v3595
        %v3597 = vrot.slane %v3592, %v3596
        %v3607 = vunpack.c.l.b16 %v3584
        %v3608 = vunpack.c.l.b16 %v3585
        %v3609 = vunpack.c.l.b16 %v3586
        %v3610 = vunpack.c.l.b16 %v3587
        %v3611 = vunpack.c.l.b16 %v3588
        %v3612 = vunpack.c.l.b16 %v3589
        %v3613 = vunpack.c.l.b16 %v3590
        %v3614 = vunpack.c.l.b16 %v3591
        %v3615 = vpack.c.b16 %v3608, %v3607
        %v3616 = vpack.c.b16 %v3610, %v3609
        %v3617 = vpack.c.b16 %v3612, %v3611
        %v3618 = vpack.c.b16 %v3614, %v3613
        %vm3623 = vcmask 523264
        %v3625 = vsel %vm3623, %v3583, 0
        %3627 = vmatprep.subr.bf16.mxu0 0
        %3628 = vmatpush1.bf16.msra.mxu0 %v3615
        %3629 = vmatprep.subr.bf16.mxu0 0
        %3630 = vmatpush1.bf16.msra.mxu0 %v3616
        %3631 = vmatprep.subr.bf16.mxu0 0
        %3632 = vmatpush1.bf16.msra.mxu0 %v3617
        %3633 = vmatprep.subr.bf16.mxu0 0
        %3634 = vmatpush1.bf16.msra.mxu0 %v3618
        %3635 = vmatprep.subr.bf16.mxu0 0
        %3636 = vmatpush1.bf16.msra.mxu0 0
        %3637 = vmatprep.subr.bf16.mxu0 0
        %3638 = vmatpush1.bf16.msra.mxu0 0
        %3639 = vmatprep.subr.bf16.mxu0 0
        %3640 = vmatpush1.bf16.msra.mxu0 0
        %3641 = vmatprep.subr.bf16.mxu0 0
        %3642 = vmatpush1.bf16.msra.mxu0 0
        %3643 = vmatprep.subr.bf16.mxu0 0
        %3644 = vmatpush1.bf16.msra.mxu0 0
        %3645 = vmatprep.subr.bf16.mxu0 0
        %3646 = vmatpush1.bf16.msra.mxu0 0
        %3647 = vmatprep.subr.bf16.mxu0 0
        %3648 = vmatpush1.bf16.msra.mxu0 0
        %3649 = vmatprep.subr.bf16.mxu0 0
        %3650 = vmatpush1.bf16.msra.mxu0 0
        %3651 = vmatprep.subr.bf16.mxu0 0
        %3652 = vmatpush1.bf16.msra.mxu0 0
        %3653 = vmatprep.subr.bf16.mxu0 0
        %3654 = vmatpush1.bf16.msra.mxu0 0
        %3655 = vmatprep.subr.bf16.mxu0 0
        %3656 = vmatpush1.bf16.msra.mxu0 0
        %3657 = vmatprep.subr.bf16.mxu0 0
        %3658 = vmatpush1.bf16.msra.mxu0 0
        %3659 = vmatprep.mubr.bf16.mxu0 0
        %3660 = vmatmul.mubr.bf16.gmra.mrb[0].mxu0 %v3625
        %v3661 = vpop.f32.mrb[0].mxu0
        %v3662 = vadd.f32 %v3597, %v3661
        %v3663 = vpop.f32.mrb[0].mxu0
        %v3664 = vpop.f32.mrb[0].mxu0
        %v3665 = vpop.f32.mrb[0].mxu0
        %3666 = vdwg.mxu0
        %v3667 = vadd.f32 %v3514, %v3662
        %v3668 = vsel %vm1499, %v3667, 0.0
        %3669 = vadd.xlane.f32.xlu0 %v3668
        %v3670 = vpop.xlane.xlu0 %3669
        %v3671 = vmul.f32 %v3670, %v2296
        %v3672 = vsub.f32 %v3667, %v3671
        %v3673 = vmul.f32 %v3672, %v3672
        %v3674 = vsel %vm1499, %v3673, 0.0
        %3675 = vadd.xlane.f32.xlu0 %v3674
        %v3676 = vpop.xlane.xlu0 %3675
        %v3677 = vmul.f32 %v3676, %v2296
        %v3678 = vadd.f32 %v3677, 1e-05
        %v3679 = vrsqrt.pop %v3678
        %v3680 = vmul.f32 %v3672, %v3679
        %v3681 = vld [vmem:[#allocation47] sm:$0x1]
        %v3683 = vlaneseq
        %v3684 = vshrl.u32 %v3683, 7
        %v3685 = vsub.s32 0, %v3684
        %v3686 = vrot.slane %v3681, %v3685
        %v3688 = vmul.f32 %v3680, %v3686
        %v3689 = vld [vmem:[#allocation49] sm:$0x1]
        %v3691 = vlaneseq
        %v3692 = vshrl.u32 %v3691, 7
        %v3693 = vsub.s32 0, %v3692
        %v3694 = vrot.slane %v3689, %v3693
        %v3696 = vadd.f32 %v3688, %v3694
        %3697 = vst.msk [vmem:[%s1466] sm:$0xff] %vm1499, %v3696
        %s3698 = sand.u32 %s783, 1
        %s3699 = scalar_lea.sflag [#allocation4], %s3698
        %s3700 = sand.u32 %s783, 1
        %s3701 = smul.addr %s3700, 8
        %s3702 = scalar_lea.vmem [#allocation50], %s3701
        // Predicated region
        $region269: #{transformer_decoder_layer.1} parent=143 // pred_check
          %p3703 = pneg %p793
        $region270: #{transformer_decoder_layer.1} parent=143 // pred_check_branch
          %3705 = sbr.rel (%p3703) target = $region272
        $region271: #{transformer_decoder_layer.1} parent=143 // pred_region
          %s3707 = ssub.s32 128, 128
          %3708 = vsyncadd %s3699, %s3707
          %s3709 = smul.addr %s99, 128
          %s3710 = scalar_lea.hbm %s63, %s3709
          %s3712 = sshll.u32 %s3702, 4
          %s3713 = int_to_ptr.vmem [resolvable:$true] %s3712
          %3715 = dma.vmem_to_hbm [thread:$0]  %s3713, 128, %s3710, %s3699
        $region272: #{transformer_decoder_layer.1} parent=143 // pred_fallthru
          _
      $region144: #{transformer_decoder_layer.1} parent=5 // pred_fallthru
        _
      %p3716 = scmp.le.s32.totalorder 2, %s94
      // Predicated region
      $region273: #{transformer_decoder_layer.1} parent=5 // pred_check
        %p3717 = pneg %p3716
      $region274: #{transformer_decoder_layer.1} parent=5 // pred_check_branch
        %3719 = sbr.rel (%p3717) target = $region276
      $region275: #{transformer_decoder_layer.1} parent=5 // pred_region
        %s3720 = ssub.s32 %s94, 2
        // Predicated region
        $region277: #{transformer_decoder_layer.1} parent=275 // pred_check
          %p3721 = pneg %p799
        $region278: #{transformer_decoder_layer.1} parent=275 // pred_check_branch
          %3723 = sbr.rel (%p3721) target = $region280
        $region279: #{transformer_decoder_layer.1} parent=275 // pred_region
          %s3724 = sand.u32 %s784, 1
          %s3725 = scalar_lea.sflag [#allocation4], %s3724
          %s3726 = sand.u32 %s784, 1
          %s3727 = smul.addr %s3726, 8
          %s3728 = scalar_lea.vmem [#allocation50], %s3727
          %3729 = dma.done %s3725, 128
        $region280: #{transformer_decoder_layer.1} parent=275 // pred_fallthru
          _
      $region276: #{transformer_decoder_layer.1} parent=5 // pred_fallthru
        _
    $region6: #{transformer_decoder_layer.1} parent=1 // loop_footer
      %s98 = sadd.s32 1, %s94
    $region7: #{transformer_decoder_layer.1} parent=1 // loop_footer_branch
      %93 = sbr.rel target = $region3
    $region8: #{transformer_decoder_layer.1} parent=1 // loop_exit
      _
    %3730 = vsyncpa [#allocation3], 1
    %s3731 = scalar_lea.sflag [#allocation3], 1
    %3732 = vsyncpa %s3731, 1
    %3733 = vsyncpa [#allocation6], 1
    %s3734 = scalar_lea.sflag [#allocation6], 1
    %3735 = vsyncpa %s3734, 1
    %3736 = vsyncpa [#allocation9], 1
    %s3737 = scalar_lea.sflag [#allocation9], 1
    %3738 = vsyncpa %s3737, 1
    %3739 = vsyncpa [#allocation12], 1
    %3740 = vsyncpa [#allocation15], 1
    %3741 = vsyncpa [#allocation18], 1
    %3742 = vsyncpa [#allocation21], 1
    %3743 = vsyncpa [#allocation24], 1
    %3744 = vsyncpa [#allocation27], 1
    %3745 = vsyncpa [#allocation30], 1
    %3746 = vsyncpa [#allocation33], 1
    %3747 = vsyncpa [#allocation36], 1
    %3748 = vsyncpa [#allocation39], 1
    %3749 = vsyncpa [#allocation42], 1
    %3750 = vsyncpa [#allocation45], 1
    %3751 = vsyncpa [#allocation48], 1
    %3752 = vsyncpa [#allocation4], 1
    %s3753 = scalar_lea.sflag [#allocation4], 1
    %3754 = vsyncpa %s3753, 1

</llo_original>
